<compile_context>
chip_gen: v6e
topology: v6e:2x2x1
jax: 0.10.0
libtpu: 0.0.40
codegen_flags: <defaults>
</compile_context>

<pallas_src>
import jax
import jax.numpy as jnp
from jax.experimental import pallas as pl
from jax.experimental.pallas import tpu as pltpu

K_IN = 28 * 28          # 784
K_PAD = 896             # 7 * 128  (padded contraction dim for layer 1)
H1 = 512
H2 = 256
N_OUT = 10
N_OUT_PAD = 128         # lane-dense padded output width


def mlp_kernel(x_ref, w1_ref, b1_ref, w2_ref, b2_ref, w3_ref, b3_ref, o_ref):
    # One (TM, K_PAD) bf16 batch tile through the whole 3-layer MLP.
    # bf16 x bf16 MXU dots with f32 accumulate; bias add / ReLU in f32 (VPU).
    x = x_ref[...]                                                  # bf16
    h1 = jnp.dot(x, w1_ref[...],
                 preferred_element_type=jnp.float32) + b1_ref[...]  # f32
    h1 = jnp.maximum(h1, 0.0)
    h2 = jnp.dot(h1.astype(jnp.bfloat16), w2_ref[...],
                 preferred_element_type=jnp.float32) + b2_ref[...]  # f32
    h2 = jnp.maximum(h2, 0.0)
    out = jnp.dot(h2.astype(jnp.bfloat16), w3_ref[...],
                  preferred_element_type=jnp.float32) + b3_ref[...]
    o_ref[...] = out.astype(o_ref.dtype)                            # bf16 store


def net_forward(x, params, tm=512):
    """x: (N, 1, 28, 28) or anything reshapeable to (N, 784). Returns (N, 10) f32."""
    w1, b1, w2, b2, w3, b3 = params
    batch = x.reshape(-1, K_IN).shape[0]

    # Row tile: multiple of 128, no bigger than the (rounded-up) batch.
    n_rows = 128 * pl.cdiv(batch, 128)
    tm = min(tm, n_rows)
    # v7x: the batch axis is the only "parallel" axis sharded across the two
    # TensorCores -> keep the grid at >= 2 steps once the batch needs >= 256 rows.
    if n_rows >= 256:
        tm = max(128, min(tm, ((n_rows // 2) // 128) * 128))
    n_pad = tm * pl.cdiv(batch, tm)

    # Fuse reshape + cast-to-bf16 + zero-pad (batch rows -> n_pad, K 784 -> 896)
    # into one expression so XLA doesn't materialize an extra f32 round trip.
    x_pad = jnp.pad(x.reshape(-1, K_IN).astype(jnp.bfloat16),
                    ((0, n_pad - batch), (0, K_PAD - K_IN)))

    grid = (n_pad // tm,)
    resident = pl.Buffered(1)  # constant index_map -> no double buffering needed

    grid_spec = pltpu.PrefetchScalarGridSpec(
        num_scalar_prefetch=0,
        grid=grid,
        in_specs=[
            pl.BlockSpec((tm, K_PAD), lambda i: (i, 0)),                 # x tile (bf16)
            pl.BlockSpec((K_PAD, H1), lambda i: (0, 0),
                         pipeline_mode=resident),                        # w1 (resident)
            pl.BlockSpec((1, H1), lambda i: (0, 0),
                         pipeline_mode=resident),                        # b1
            pl.BlockSpec((H1, H2), lambda i: (0, 0),
                         pipeline_mode=resident),                        # w2
            pl.BlockSpec((1, H2), lambda i: (0, 0),
                         pipeline_mode=resident),                        # b2
            pl.BlockSpec((H2, N_OUT_PAD), lambda i: (0, 0),
                         pipeline_mode=resident),                        # w3 (padded)
            pl.BlockSpec((1, N_OUT_PAD), lambda i: (0, 0),
                         pipeline_mode=resident),                        # b3 (padded)
        ],
        out_specs=pl.BlockSpec((tm, N_OUT_PAD), lambda i: (i, 0)),
    )

    flops = 2 * n_pad * (K_PAD * H1 + H1 * H2 + H2 * N_OUT_PAD)
    bytes_accessed = (
        x_pad.size * 2                       # bf16 x stream
        + n_pad * N_OUT_PAD * 2              # bf16 output writeback
        + sum(a.size * a.dtype.itemsize for a in (w1, b1, w2, b2, w3, b3))
    )

    out_pad = pl.pallas_call(
        mlp_kernel,
        out_shape=jax.ShapeDtypeStruct((n_pad, N_OUT_PAD), jnp.bfloat16),
        grid_spec=grid_spec,
        compiler_params=pltpu.CompilerParams(
            dimension_semantics=("parallel",),
        ),
        cost_estimate=pl.CostEstimate(
            flops=flops, transcendentals=0, bytes_accessed=bytes_accessed
        ),
    )(x_pad, w1, b1, w2, b2, w3, b3)

    # Drop padded rows / padded output lanes; return f32 logits.
    return out_pad[:batch, :N_OUT].astype(jnp.float32)


def init_params(key):
    """nn.Linear-style init (uniform +/- 1/sqrt(fan_in)), stored transposed
    (in, out). Weights kept in bf16; w1 is K-padded to 896 rows (zero rows)
    and w3/b3 are zero-padded to 128 output columns so the kernel is lane-dense.
    Biases stay f32 (added on the f32 accumulator).
    """
    k1, k2, k3, k4, k5, k6 = jax.random.split(key, 6)

    def linear(kw, kb, fan_in, fan_out, k_pad=None, n_pad=None):
        bound = 1.0 / (fan_in ** 0.5)
        w = jax.random.uniform(kw, (fan_in, fan_out), jnp.float32, -bound, bound)
        b = jax.random.uniform(kb, (1, fan_out), jnp.float32, -bound, bound)
        if k_pad is not None:
            w = jnp.pad(w, ((0, k_pad - fan_in), (0, 0)))
        if n_pad is not None:
            w = jnp.pad(w, ((0, 0), (0, n_pad - fan_out)))
            b = jnp.pad(b, ((0, 0), (0, n_pad - fan_out)))
        return w.astype(jnp.bfloat16), b

    w1, b1 = linear(k1, k2, K_IN, H1, k_pad=K_PAD)
    w2, b2 = linear(k3, k4, H1, H2)
    w3, b3 = linear(k5, k6, H2, N_OUT, n_pad=N_OUT_PAD)
    return (w1, b1, w2, b2, w3, b3)


def net_forward_ref(x, params):
    """Pure-JAX reference using the same bf16 weights and bf16 dot operands
    with f32 accumulation (mirrors the kernel's numerics)."""
    w1, b1, w2, b2, w3, b3 = params
    x2d = x.reshape(-1, K_IN).astype(jnp.bfloat16)
    x_pad = jnp.pad(x2d, ((0, 0), (0, K_PAD - K_IN)))
    h1 = jnp.maximum(
        jnp.dot(x_pad, w1, preferred_element_type=jnp.float32) + b1, 0.0)
    h2 = jnp.maximum(
        jnp.dot(h1.astype(jnp.bfloat16), w2, preferred_element_type=jnp.float32) + b2, 0.0)
    out = jnp.dot(h2.astype(jnp.bfloat16), w3, preferred_element_type=jnp.float32) + b3
    return out[:, :N_OUT]


if __name__ == "__main__":
    key = jax.random.PRNGKey(0)
    kx, kp = jax.random.split(key)

    # Small MNIST-like batch: (N, C, H, W) = (8, 1, 28, 28)
    x = jax.random.normal(kx, (8, 1, 28, 28), dtype=jnp.float32)
    params = init_params(kp)

    fwd = jax.jit(net_forward)
    out = fwd(x, params)
    out = jax.block_until_ready(out)

    ref = net_forward_ref(x, params)
    assert out.shape == (8, 10), out.shape
    # bf16 dot operands + bf16 output store -> slightly looser tolerance.
    assert jnp.allclose(out, ref, atol=2e-2, rtol=2e-2), "mismatch vs JAX reference"

    print("KERNEL_OK")
</pallas_src>

<mosaic_0001>
module attributes {stable_mosaic.version = 11 : i64} {
  func.func @mlp_kernel(%arg0: i32, %arg1: memref<128x896xbf16, #tpu.memory_space<vmem>>, %arg2: memref<896x512xbf16, #tpu.memory_space<vmem>>, %arg3: memref<1x512xf32, #tpu.memory_space<vmem>>, %arg4: memref<512x256xbf16, #tpu.memory_space<vmem>>, %arg5: memref<1x256xf32, #tpu.memory_space<vmem>>, %arg6: memref<256x128xbf16, #tpu.memory_space<vmem>>, %arg7: memref<1x128xf32, #tpu.memory_space<vmem>>, %arg8: memref<128x128xbf16, #tpu.memory_space<vmem>>) attributes {dimension_semantics = [#tpu.dimension_semantics<parallel>], iteration_bounds = array<i64: 1>, scalar_prefetch = 0 : i64, scratch_operands = 0 : i64, tpu.core_type = #tpu.core_type<tc>, window_params = [{transform_indices = @transform_0, window_bounds = array<i64: 128, 896>}, {pipeline_mode = #tpu.pipeline_mode<synchronous>, transform_indices = @transform_1, window_bounds = array<i64: 896, 512>}, {pipeline_mode = #tpu.pipeline_mode<synchronous>, transform_indices = @transform_2, window_bounds = array<i64: 1, 512>}, {pipeline_mode = #tpu.pipeline_mode<synchronous>, transform_indices = @transform_3, window_bounds = array<i64: 512, 256>}, {pipeline_mode = #tpu.pipeline_mode<synchronous>, transform_indices = @transform_4, window_bounds = array<i64: 1, 256>}, {pipeline_mode = #tpu.pipeline_mode<synchronous>, transform_indices = @transform_5, window_bounds = array<i64: 256, 128>}, {pipeline_mode = #tpu.pipeline_mode<synchronous>, transform_indices = @transform_6, window_bounds = array<i64: 1, 128>}, {transform_indices = @transform_7, window_bounds = array<i64: 128, 128>}]} {
    %c0 = arith.constant 0 : index
    %c0_0 = arith.constant 0 : index
    %0 = vector.load %arg1[%c0, %c0_0] : memref<128x896xbf16, #tpu.memory_space<vmem>>, vector<128x896xbf16>
    %c0_1 = arith.constant 0 : index
    %c0_2 = arith.constant 0 : index
    %1 = vector.load %arg2[%c0_1, %c0_2] : memref<896x512xbf16, #tpu.memory_space<vmem>>, vector<896x512xbf16>
    %cst = arith.constant dense<0.000000e+00> : vector<128x512xf32>
    %2 = tpu.matmul %0, %1, %cst {dimension_numbers = #tpu.dot_dimension_numbers<[1], [0], [0], [1], [0, 0, 1, 1], [], []>} : vector<128x896xbf16>, vector<896x512xbf16>, vector<128x512xf32> -> vector<128x512xf32>
    %c0_3 = arith.constant 0 : index
    %c0_4 = arith.constant 0 : index
    %3 = vector.load %arg3[%c0_3, %c0_4] : memref<1x512xf32, #tpu.memory_space<vmem>>, vector<1x512xf32>
    %4 = vector.broadcast %3 : vector<1x512xf32> to vector<128x512xf32>
    %5 = arith.addf %2, %4 : vector<128x512xf32>
    %cst_5 = arith.constant 0.000000e+00 : f32
    %6 = vector.broadcast %cst_5 : f32 to vector<128x512xf32>
    %7 = arith.maximumf %5, %6 : vector<128x512xf32>
    %8 = arith.truncf %7 : vector<128x512xf32> to vector<128x512xbf16>
    %c0_6 = arith.constant 0 : index
    %c0_7 = arith.constant 0 : index
    %9 = vector.load %arg4[%c0_6, %c0_7] : memref<512x256xbf16, #tpu.memory_space<vmem>>, vector<512x256xbf16>
    %cst_8 = arith.constant dense<0.000000e+00> : vector<128x256xf32>
    %10 = tpu.matmul %8, %9, %cst_8 {dimension_numbers = #tpu.dot_dimension_numbers<[1], [0], [0], [1], [0, 0, 1, 1], [], []>} : vector<128x512xbf16>, vector<512x256xbf16>, vector<128x256xf32> -> vector<128x256xf32>
    %c0_9 = arith.constant 0 : index
    %c0_10 = arith.constant 0 : index
    %11 = vector.load %arg5[%c0_9, %c0_10] : memref<1x256xf32, #tpu.memory_space<vmem>>, vector<1x256xf32>
    %12 = vector.broadcast %11 : vector<1x256xf32> to vector<128x256xf32>
    %13 = arith.addf %10, %12 : vector<128x256xf32>
    %cst_11 = arith.constant 0.000000e+00 : f32
    %14 = vector.broadcast %cst_11 : f32 to vector<128x256xf32>
    %15 = arith.maximumf %13, %14 : vector<128x256xf32>
    %16 = arith.truncf %15 : vector<128x256xf32> to vector<128x256xbf16>
    %c0_12 = arith.constant 0 : index
    %c0_13 = arith.constant 0 : index
    %17 = vector.load %arg6[%c0_12, %c0_13] : memref<256x128xbf16, #tpu.memory_space<vmem>>, vector<256x128xbf16>
    %cst_14 = arith.constant dense<0.000000e+00> : vector<128x128xf32>
    %18 = tpu.matmul %16, %17, %cst_14 {dimension_numbers = #tpu.dot_dimension_numbers<[1], [0], [0], [1], [0, 0, 1, 1], [], []>} : vector<128x256xbf16>, vector<256x128xbf16>, vector<128x128xf32> -> vector<128x128xf32>
    %c0_15 = arith.constant 0 : index
    %c0_16 = arith.constant 0 : index
    %19 = vector.load %arg7[%c0_15, %c0_16] : memref<1x128xf32, #tpu.memory_space<vmem>>, vector<1x128xf32>
    %20 = vector.broadcast %19 : vector<1x128xf32> to vector<128x128xf32>
    %21 = arith.addf %18, %20 : vector<128x128xf32>
    %22 = arith.truncf %21 : vector<128x128xf32> to vector<128x128xbf16>
    %c0_17 = arith.constant 0 : index
    %c0_18 = arith.constant 0 : index
    %23 = vector.load %arg8[%c0_17, %c0_18] : memref<128x128xbf16, #tpu.memory_space<vmem>>, vector<128x128xbf16>
    tpu.vector_store %arg8[%c0_17, %c0_18], %22 {strides = array<i32>} : memref<128x128xbf16, #tpu.memory_space<vmem>>, vector<128x128xbf16>,
    return
  }
  func.func @transform_0(%arg0: i32) -> (i32, i32) {
    %c0_i32 = arith.constant 0 : i32
    %c0_i32_0 = arith.constant 0 : i32
    return %arg0, %c0_i32 : i32, i32
  }
  func.func @transform_1(%arg0: i32) -> (i32, i32) {
    %c0_i32 = arith.constant 0 : i32
    %c0_i32_0 = arith.constant 0 : i32
    %c0_i32_1 = arith.constant 0 : i32
    return %c0_i32, %c0_i32_0 : i32, i32
  }
  func.func @transform_2(%arg0: i32) -> (i32, i32) {
    %c0_i32 = arith.constant 0 : i32
    %c0_i32_0 = arith.constant 0 : i32
    %c0_i32_1 = arith.constant 0 : i32
    return %c0_i32, %c0_i32_0 : i32, i32
  }
  func.func @transform_3(%arg0: i32) -> (i32, i32) {
    %c0_i32 = arith.constant 0 : i32
    %c0_i32_0 = arith.constant 0 : i32
    %c0_i32_1 = arith.constant 0 : i32
    return %c0_i32, %c0_i32_0 : i32, i32
  }
  func.func @transform_4(%arg0: i32) -> (i32, i32) {
    %c0_i32 = arith.constant 0 : i32
    %c0_i32_0 = arith.constant 0 : i32
    %c0_i32_1 = arith.constant 0 : i32
    return %c0_i32, %c0_i32_0 : i32, i32
  }
  func.func @transform_5(%arg0: i32) -> (i32, i32) {
    %c0_i32 = arith.constant 0 : i32
    %c0_i32_0 = arith.constant 0 : i32
    %c0_i32_1 = arith.constant 0 : i32
    return %c0_i32, %c0_i32_0 : i32, i32
  }
  func.func @transform_6(%arg0: i32) -> (i32, i32) {
    %c0_i32 = arith.constant 0 : i32
    %c0_i32_0 = arith.constant 0 : i32
    %c0_i32_1 = arith.constant 0 : i32
    return %c0_i32, %c0_i32_0 : i32, i32
  }
  func.func @transform_7(%arg0: i32) -> (i32, i32) {
    %c0_i32 = arith.constant 0 : i32
    %c0_i32_0 = arith.constant 0 : i32
    return %arg0, %c0_i32 : i32, i32
  }
}

</mosaic_0001>

<llo_original>
// kernel: net_forward.1
$region0: #{net_forward.1}
  #allocation0 [shape = 'u32[]', space=smem, size = 0x4, offset = 0x4, fixed_abs, tag = 'smem constant byte address 0x4 - core index']
  #allocation1 [shape = 'u32[144,128]{1,0:T(1,128)}', space=vmem, size = 0x12000, scoped, tag = 'internal scratch']
  %s0 = inlined_call_operand.vmem [shape: bf16[128,896], index: 0, kind: input, shape index: {}]
  %s1 = inlined_call_operand.hbm [shape: bf16[896,512], index: 1, kind: input, shape index: {}]
  %s2 = inlined_call_operand.vmem [shape: f32[1,512], index: 2, kind: input, shape index: {}]
  %s3 = inlined_call_operand.vmem [shape: bf16[512,256], index: 3, kind: input, shape index: {}]
  %s4 = inlined_call_operand.vmem [shape: f32[1,256], index: 4, kind: input, shape index: {}]
  %s5 = inlined_call_operand.vmem [shape: bf16[256,128], index: 5, kind: input, shape index: {}]
  %s6 = inlined_call_operand.vmem [shape: f32[1,128], index: 6, kind: input, shape index: {}]
  %s7 = inlined_call_operand.vmem [shape: bf16[128,128], index: 7, kind: output, shape index: {}]
  %s8 = sld [smem:[#allocation0]]
  $region42: #{net_forward.1} parent=0
    _
  %s10 = ssub.s32 1, %s8
  %s11 = scalar_select 0, %s10, %s8
  $region1: #{net_forward.1} parent=0
    #allocation2 [shape = 'u8[917504]{0}', space=vmem, size = 0xe0000, scoped, tag = 'input window, operand 1, single buffered']
    #allocation3 [shape = 's32[1]{0}', space=sflag, size = 0x4, scoped, tag = 'scoped memory for net_forward.1']
    %12 = vsyncpa [#allocation3], 0
    // Predicated region
    $region2: #{net_forward.1} parent=1 // pred_check
      _
    $region3: #{net_forward.1} parent=1 // pred_check_branch
      %14 = sbr.rel (0) target = $region5
    $region4: #{net_forward.1} parent=1 // pred_region
      _
    $region5: #{net_forward.1} parent=1 // pred_fallthru
      _
    // Predicated region
    $region6: #{net_forward.1} parent=1 // pred_check
      _
    $region7: #{net_forward.1} parent=1 // pred_check_branch
      %16 = sbr.rel (0) target = $region9
    $region8: #{net_forward.1} parent=1 // pred_region
      %s18 = ssub.s32 28672, 28672
      %19 = vsyncadd [#allocation3], %s18
      %s20 = sshll.u32 [#allocation2], 4
      %s21 = int_to_ptr.vmem [resolvable:$true] %s20
      %26 = dma.hbm_to_vmem [thread:$0]  %s1, 28672, %s21, [#allocation3], 256, 256, 16
    $region9: #{net_forward.1} parent=1 // pred_fallthru
      _
    // Predicated region
    $region10: #{net_forward.1} parent=1 // pred_check
      _
    $region11: #{net_forward.1} parent=1 // pred_check_branch
      %28 = sbr.rel (0) target = $region13
    $region12: #{net_forward.1} parent=1 // pred_region
      _
    $region13: #{net_forward.1} parent=1 // pred_fallthru
      _
    // Predicated region
    $region14: #{net_forward.1} parent=1 // pred_check
      _
    $region15: #{net_forward.1} parent=1 // pred_check_branch
      %30 = sbr.rel (0) target = $region17
    $region16: #{net_forward.1} parent=1 // pred_region
      _
    $region17: #{net_forward.1} parent=1 // pred_fallthru
      _
    // Predicated region
    $region18: #{net_forward.1} parent=1 // pred_check
      _
    $region19: #{net_forward.1} parent=1 // pred_check_branch
      %32 = sbr.rel (0) target = $region21
    $region20: #{net_forward.1} parent=1 // pred_region
      _
    $region21: #{net_forward.1} parent=1 // pred_fallthru
      _
    // Predicated region
    $region22: #{net_forward.1} parent=1 // pred_check
      _
    $region23: #{net_forward.1} parent=1 // pred_check_branch
      %34 = sbr.rel (0) target = $region25
    $region24: #{net_forward.1} parent=1 // pred_region
      _
    $region25: #{net_forward.1} parent=1 // pred_fallthru
      _
    // Predicated region
    $region26: #{net_forward.1} parent=1 // pred_check
      _
    $region27: #{net_forward.1} parent=1 // pred_check_branch
      %36 = sbr.rel (0) target = $region29
    $region28: #{net_forward.1} parent=1 // pred_region
      _
    $region29: #{net_forward.1} parent=1 // pred_fallthru
      _
    // Predicated region
    $region30: #{net_forward.1} parent=1 // pred_check
      _
    $region31: #{net_forward.1} parent=1 // pred_check_branch
      %38 = sbr.rel (0) target = $region33
    $region32: #{net_forward.1} parent=1 // pred_region
      %39 = dma.done [#allocation3], 28672
    $region33: #{net_forward.1} parent=1 // pred_fallthru
      _
    %v41 = vld [vmem:[%s0] sm:$0xff]
    %v42 = vld [vmem:[%s0 + $0x8] sm:$0xff]
    %v43 = vld [vmem:[%s0 + $0x10] sm:$0xff]
    %v44 = vld [vmem:[%s0 + $0x18] sm:$0xf]
    %v45 = vld [vmem:[%s0 + $0x1c] sm:$0xff]
    %v46 = vld [vmem:[%s0 + $0x24] sm:$0xff]
    %v47 = vld [vmem:[%s0 + $0x2c] sm:$0xff]
    %v48 = vld [vmem:[%s0 + $0x34] sm:$0xf]
    %v49 = vld [vmem:[%s0 + $0x38] sm:$0xff]
    %v50 = vld [vmem:[%s0 + $0x40] sm:$0xff]
    %v51 = vld [vmem:[%s0 + $0x48] sm:$0xff]
    %v52 = vld [vmem:[%s0 + $0x50] sm:$0xf]
    %v53 = vld [vmem:[%s0 + $0x54] sm:$0xff]
    %v54 = vld [vmem:[%s0 + $0x5c] sm:$0xff]
    %v55 = vld [vmem:[%s0 + $0x64] sm:$0xff]
    %v56 = vld [vmem:[%s0 + $0x6c] sm:$0xf]
    %v57 = vld [vmem:[%s0 + $0x70] sm:$0xff]
    %v58 = vld [vmem:[%s0 + $0x78] sm:$0xff]
    %v59 = vld [vmem:[%s0 + $0x80] sm:$0xff]
    %v60 = vld [vmem:[%s0 + $0x88] sm:$0xf]
    %v61 = vld [vmem:[%s0 + $0x8c] sm:$0xff]
    %v62 = vld [vmem:[%s0 + $0x94] sm:$0xff]
    %v63 = vld [vmem:[%s0 + $0x9c] sm:$0xff]
    %v64 = vld [vmem:[%s0 + $0xa4] sm:$0xf]
    %v65 = vld [vmem:[%s0 + $0xa8] sm:$0xff]
    %v66 = vld [vmem:[%s0 + $0xb0] sm:$0xff]
    %v67 = vld [vmem:[%s0 + $0xb8] sm:$0xff]
    %v68 = vld [vmem:[%s0 + $0xc0] sm:$0xf]
    %v69 = vld [vmem:[%s0 + $0xc4] sm:$0xff]
    %v70 = vld [vmem:[%s0 + $0xcc] sm:$0xff]
    %v71 = vld [vmem:[%s0 + $0xd4] sm:$0xff]
    %v72 = vld [vmem:[%s0 + $0xdc] sm:$0xf]
    %v73 = vld [vmem:[%s0 + $0xe0] sm:$0xff]
    %v74 = vld [vmem:[%s0 + $0xe8] sm:$0xff]
    %v75 = vld [vmem:[%s0 + $0xf0] sm:$0xff]
    %v76 = vld [vmem:[%s0 + $0xf8] sm:$0xf]
    %v77 = vld [vmem:[%s0 + $0xfc] sm:$0xff]
    %v78 = vld [vmem:[%s0 + $0x104] sm:$0xff]
    %v79 = vld [vmem:[%s0 + $0x10c] sm:$0xff]
    %v80 = vld [vmem:[%s0 + $0x114] sm:$0xf]
    %v81 = vld [vmem:[%s0 + $0x118] sm:$0xff]
    %v82 = vld [vmem:[%s0 + $0x120] sm:$0xff]
    %v83 = vld [vmem:[%s0 + $0x128] sm:$0xff]
    %v84 = vld [vmem:[%s0 + $0x130] sm:$0xf]
    %v85 = vld [vmem:[%s0 + $0x134] sm:$0xff]
    %v86 = vld [vmem:[%s0 + $0x13c] sm:$0xff]
    %v87 = vld [vmem:[%s0 + $0x144] sm:$0xff]
    %v88 = vld [vmem:[%s0 + $0x14c] sm:$0xf]
    %v89 = vld [vmem:[%s0 + $0x150] sm:$0xff]
    %v90 = vld [vmem:[%s0 + $0x158] sm:$0xff]
    %v91 = vld [vmem:[%s0 + $0x160] sm:$0xff]
    %v92 = vld [vmem:[%s0 + $0x168] sm:$0xf]
    %v93 = vld [vmem:[%s0 + $0x16c] sm:$0xff]
    %v94 = vld [vmem:[%s0 + $0x174] sm:$0xff]
    %v95 = vld [vmem:[%s0 + $0x17c] sm:$0xff]
    %v96 = vld [vmem:[%s0 + $0x184] sm:$0xf]
    %v97 = vld [vmem:[%s0 + $0x188] sm:$0xff]
    %v98 = vld [vmem:[%s0 + $0x190] sm:$0xff]
    %v99 = vld [vmem:[%s0 + $0x198] sm:$0xff]
    %v100 = vld [vmem:[%s0 + $0x1a0] sm:$0xf]
    %v101 = vld [vmem:[%s0 + $0x1a4] sm:$0xff]
    %v102 = vld [vmem:[%s0 + $0x1ac] sm:$0xff]
    %v103 = vld [vmem:[%s0 + $0x1b4] sm:$0xff]
    %v104 = vld [vmem:[%s0 + $0x1bc] sm:$0xf]
    %v105 = vld [vmem:[#allocation2] sm:$0xff]
    %v106 = vld [vmem:[#allocation2 + $0x8] sm:$0xff]
    %v107 = vld [vmem:[#allocation2 + $0x10] sm:$0xff]
    %v108 = vld [vmem:[#allocation2 + $0x18] sm:$0xff]
    %v109 = vld [vmem:[#allocation2 + $0x20] sm:$0xff]
    %v110 = vld [vmem:[#allocation2 + $0x28] sm:$0xff]
    %v111 = vld [vmem:[#allocation2 + $0x30] sm:$0xff]
    %v112 = vld [vmem:[#allocation2 + $0x38] sm:$0xff]
    %v113 = vld [vmem:[#allocation2 + $0x40] sm:$0xff]
    %v114 = vld [vmem:[#allocation2 + $0x48] sm:$0xff]
    %v115 = vld [vmem:[#allocation2 + $0x50] sm:$0xff]
    %v116 = vld [vmem:[#allocation2 + $0x58] sm:$0xff]
    %v117 = vld [vmem:[#allocation2 + $0x60] sm:$0xff]
    %v118 = vld [vmem:[#allocation2 + $0x68] sm:$0xff]
    %v119 = vld [vmem:[#allocation2 + $0x70] sm:$0xff]
    %v120 = vld [vmem:[#allocation2 + $0x78] sm:$0xff]
    %v121 = vld [vmem:[#allocation2 + $0x80] sm:$0xff]
    %v122 = vld [vmem:[#allocation2 + $0x88] sm:$0xff]
    %v123 = vld [vmem:[#allocation2 + $0x90] sm:$0xff]
    %v124 = vld [vmem:[#allocation2 + $0x98] sm:$0xff]
    %v125 = vld [vmem:[#allocation2 + $0xa0] sm:$0xff]
    %v126 = vld [vmem:[#allocation2 + $0xa8] sm:$0xff]
    %v127 = vld [vmem:[#allocation2 + $0xb0] sm:$0xff]
    %v128 = vld [vmem:[#allocation2 + $0xb8] sm:$0xff]
    %v129 = vld [vmem:[#allocation2 + $0xc0] sm:$0xff]
    %v130 = vld [vmem:[#allocation2 + $0xc8] sm:$0xff]
    %v131 = vld [vmem:[#allocation2 + $0xd0] sm:$0xff]
    %v132 = vld [vmem:[#allocation2 + $0xd8] sm:$0xff]
    %v133 = vld [vmem:[#allocation2 + $0xe0] sm:$0xff]
    %v134 = vld [vmem:[#allocation2 + $0xe8] sm:$0xff]
    %v135 = vld [vmem:[#allocation2 + $0xf0] sm:$0xff]
    %v136 = vld [vmem:[#allocation2 + $0xf8] sm:$0xff]
    %v137 = vld [vmem:[#allocation2 + $0x100] sm:$0xff]
    %v138 = vld [vmem:[#allocation2 + $0x108] sm:$0xff]
    %v139 = vld [vmem:[#allocation2 + $0x110] sm:$0xff]
    %v140 = vld [vmem:[#allocation2 + $0x118] sm:$0xff]
    %v141 = vld [vmem:[#allocation2 + $0x120] sm:$0xff]
    %v142 = vld [vmem:[#allocation2 + $0x128] sm:$0xff]
    %v143 = vld [vmem:[#allocation2 + $0x130] sm:$0xff]
    %v144 = vld [vmem:[#allocation2 + $0x138] sm:$0xff]
    %v145 = vld [vmem:[#allocation2 + $0x140] sm:$0xff]
    %v146 = vld [vmem:[#allocation2 + $0x148] sm:$0xff]
    %v147 = vld [vmem:[#allocation2 + $0x150] sm:$0xff]
    %v148 = vld [vmem:[#allocation2 + $0x158] sm:$0xff]
    %v149 = vld [vmem:[#allocation2 + $0x160] sm:$0xff]
    %v150 = vld [vmem:[#allocation2 + $0x168] sm:$0xff]
    %v151 = vld [vmem:[#allocation2 + $0x170] sm:$0xff]
    %v152 = vld [vmem:[#allocation2 + $0x178] sm:$0xff]
    %v153 = vld [vmem:[#allocation2 + $0x180] sm:$0xff]
    %v154 = vld [vmem:[#allocation2 + $0x188] sm:$0xff]
    %v155 = vld [vmem:[#allocation2 + $0x190] sm:$0xff]
    %v156 = vld [vmem:[#allocation2 + $0x198] sm:$0xff]
    %v157 = vld [vmem:[#allocation2 + $0x1a0] sm:$0xff]
    %v158 = vld [vmem:[#allocation2 + $0x1a8] sm:$0xff]
    %v159 = vld [vmem:[#allocation2 + $0x1b0] sm:$0xff]
    %v160 = vld [vmem:[#allocation2 + $0x1b8] sm:$0xff]
    %v161 = vld [vmem:[#allocation2 + $0x1c0] sm:$0xff]
    %v162 = vld [vmem:[#allocation2 + $0x1c8] sm:$0xff]
    %v163 = vld [vmem:[#allocation2 + $0x1d0] sm:$0xff]
    %v164 = vld [vmem:[#allocation2 + $0x1d8] sm:$0xff]
    %v165 = vld [vmem:[#allocation2 + $0x1e0] sm:$0xff]
    %v166 = vld [vmem:[#allocation2 + $0x1e8] sm:$0xff]
    %v167 = vld [vmem:[#allocation2 + $0x1f0] sm:$0xff]
    %v168 = vld [vmem:[#allocation2 + $0x1f8] sm:$0xff]
    %v169 = vld [vmem:[#allocation2 + $0x200] sm:$0xff]
    %v170 = vld [vmem:[#allocation2 + $0x208] sm:$0xff]
    %v171 = vld [vmem:[#allocation2 + $0x210] sm:$0xff]
    %v172 = vld [vmem:[#allocation2 + $0x218] sm:$0xff]
    %v173 = vld [vmem:[#allocation2 + $0x220] sm:$0xff]
    %v174 = vld [vmem:[#allocation2 + $0x228] sm:$0xff]
    %v175 = vld [vmem:[#allocation2 + $0x230] sm:$0xff]
    %v176 = vld [vmem:[#allocation2 + $0x238] sm:$0xff]
    %v177 = vld [vmem:[#allocation2 + $0x240] sm:$0xff]
    %v178 = vld [vmem:[#allocation2 + $0x248] sm:$0xff]
    %v179 = vld [vmem:[#allocation2 + $0x250] sm:$0xff]
    %v180 = vld [vmem:[#allocation2 + $0x258] sm:$0xff]
    %v181 = vld [vmem:[#allocation2 + $0x260] sm:$0xff]
    %v182 = vld [vmem:[#allocation2 + $0x268] sm:$0xff]
    %v183 = vld [vmem:[#allocation2 + $0x270] sm:$0xff]
    %v184 = vld [vmem:[#allocation2 + $0x278] sm:$0xff]
    %v185 = vld [vmem:[#allocation2 + $0x280] sm:$0xff]
    %v186 = vld [vmem:[#allocation2 + $0x288] sm:$0xff]
    %v187 = vld [vmem:[#allocation2 + $0x290] sm:$0xff]
    %v188 = vld [vmem:[#allocation2 + $0x298] sm:$0xff]
    %v189 = vld [vmem:[#allocation2 + $0x2a0] sm:$0xff]
    %v190 = vld [vmem:[#allocation2 + $0x2a8] sm:$0xff]
    %v191 = vld [vmem:[#allocation2 + $0x2b0] sm:$0xff]
    %v192 = vld [vmem:[#allocation2 + $0x2b8] sm:$0xff]
    %v193 = vld [vmem:[#allocation2 + $0x2c0] sm:$0xff]
    %v194 = vld [vmem:[#allocation2 + $0x2c8] sm:$0xff]
    %v195 = vld [vmem:[#allocation2 + $0x2d0] sm:$0xff]
    %v196 = vld [vmem:[#allocation2 + $0x2d8] sm:$0xff]
    %v197 = vld [vmem:[#allocation2 + $0x2e0] sm:$0xff]
    %v198 = vld [vmem:[#allocation2 + $0x2e8] sm:$0xff]
    %v199 = vld [vmem:[#allocation2 + $0x2f0] sm:$0xff]
    %v200 = vld [vmem:[#allocation2 + $0x2f8] sm:$0xff]
    %v201 = vld [vmem:[#allocation2 + $0x300] sm:$0xff]
    %v202 = vld [vmem:[#allocation2 + $0x308] sm:$0xff]
    %v203 = vld [vmem:[#allocation2 + $0x310] sm:$0xff]
    %v204 = vld [vmem:[#allocation2 + $0x318] sm:$0xff]
    %v205 = vld [vmem:[#allocation2 + $0x320] sm:$0xff]
    %v206 = vld [vmem:[#allocation2 + $0x328] sm:$0xff]
    %v207 = vld [vmem:[#allocation2 + $0x330] sm:$0xff]
    %v208 = vld [vmem:[#allocation2 + $0x338] sm:$0xff]
    %v209 = vld [vmem:[#allocation2 + $0x340] sm:$0xff]
    %v210 = vld [vmem:[#allocation2 + $0x348] sm:$0xff]
    %v211 = vld [vmem:[#allocation2 + $0x350] sm:$0xff]
    %v212 = vld [vmem:[#allocation2 + $0x358] sm:$0xff]
    %v213 = vld [vmem:[#allocation2 + $0x360] sm:$0xff]
    %v214 = vld [vmem:[#allocation2 + $0x368] sm:$0xff]
    %v215 = vld [vmem:[#allocation2 + $0x370] sm:$0xff]
    %v216 = vld [vmem:[#allocation2 + $0x378] sm:$0xff]
    %v217 = vld [vmem:[#allocation2 + $0x380] sm:$0xff]
    %v218 = vld [vmem:[#allocation2 + $0x388] sm:$0xff]
    %v219 = vld [vmem:[#allocation2 + $0x390] sm:$0xff]
    %v220 = vld [vmem:[#allocation2 + $0x398] sm:$0xff]
    %v221 = vld [vmem:[#allocation2 + $0x3a0] sm:$0xff]
    %v222 = vld [vmem:[#allocation2 + $0x3a8] sm:$0xff]
    %v223 = vld [vmem:[#allocation2 + $0x3b0] sm:$0xff]
    %v224 = vld [vmem:[#allocation2 + $0x3b8] sm:$0xff]
    %v225 = vld [vmem:[#allocation2 + $0x3c0] sm:$0xff]
    %v226 = vld [vmem:[#allocation2 + $0x3c8] sm:$0xff]
    %v227 = vld [vmem:[#allocation2 + $0x3d0] sm:$0xff]
    %v228 = vld [vmem:[#allocation2 + $0x3d8] sm:$0xff]
    %v229 = vld [vmem:[#allocation2 + $0x3e0] sm:$0xff]
    %v230 = vld [vmem:[#allocation2 + $0x3e8] sm:$0xff]
    %v231 = vld [vmem:[#allocation2 + $0x3f0] sm:$0xff]
    %v232 = vld [vmem:[#allocation2 + $0x3f8] sm:$0xff]
    %v233 = vld [vmem:[#allocation2 + $0x400] sm:$0xff]
    %v234 = vld [vmem:[#allocation2 + $0x408] sm:$0xff]
    %v235 = vld [vmem:[#allocation2 + $0x410] sm:$0xff]
    %v236 = vld [vmem:[#allocation2 + $0x418] sm:$0xff]
    %v237 = vld [vmem:[#allocation2 + $0x420] sm:$0xff]
    %v238 = vld [vmem:[#allocation2 + $0x428] sm:$0xff]
    %v239 = vld [vmem:[#allocation2 + $0x430] sm:$0xff]
    %v240 = vld [vmem:[#allocation2 + $0x438] sm:$0xff]
    %v241 = vld [vmem:[#allocation2 + $0x440] sm:$0xff]
    %v242 = vld [vmem:[#allocation2 + $0x448] sm:$0xff]
    %v243 = vld [vmem:[#allocation2 + $0x450] sm:$0xff]
    %v244 = vld [vmem:[#allocation2 + $0x458] sm:$0xff]
    %v245 = vld [vmem:[#allocation2 + $0x460] sm:$0xff]
    %v246 = vld [vmem:[#allocation2 + $0x468] sm:$0xff]
    %v247 = vld [vmem:[#allocation2 + $0x470] sm:$0xff]
    %v248 = vld [vmem:[#allocation2 + $0x478] sm:$0xff]
    %v249 = vld [vmem:[#allocation2 + $0x480] sm:$0xff]
    %v250 = vld [vmem:[#allocation2 + $0x488] sm:$0xff]
    %v251 = vld [vmem:[#allocation2 + $0x490] sm:$0xff]
    %v252 = vld [vmem:[#allocation2 + $0x498] sm:$0xff]
    %v253 = vld [vmem:[#allocation2 + $0x4a0] sm:$0xff]
    %v254 = vld [vmem:[#allocation2 + $0x4a8] sm:$0xff]
    %v255 = vld [vmem:[#allocation2 + $0x4b0] sm:$0xff]
    %v256 = vld [vmem:[#allocation2 + $0x4b8] sm:$0xff]
    %v257 = vld [vmem:[#allocation2 + $0x4c0] sm:$0xff]
    %v258 = vld [vmem:[#allocation2 + $0x4c8] sm:$0xff]
    %v259 = vld [vmem:[#allocation2 + $0x4d0] sm:$0xff]
    %v260 = vld [vmem:[#allocation2 + $0x4d8] sm:$0xff]
    %v261 = vld [vmem:[#allocation2 + $0x4e0] sm:$0xff]
    %v262 = vld [vmem:[#allocation2 + $0x4e8] sm:$0xff]
    %v263 = vld [vmem:[#allocation2 + $0x4f0] sm:$0xff]
    %v264 = vld [vmem:[#allocation2 + $0x4f8] sm:$0xff]
    %v265 = vld [vmem:[#allocation2 + $0x500] sm:$0xff]
    %v266 = vld [vmem:[#allocation2 + $0x508] sm:$0xff]
    %v267 = vld [vmem:[#allocation2 + $0x510] sm:$0xff]
    %v268 = vld [vmem:[#allocation2 + $0x518] sm:$0xff]
    %v269 = vld [vmem:[#allocation2 + $0x520] sm:$0xff]
    %v270 = vld [vmem:[#allocation2 + $0x528] sm:$0xff]
    %v271 = vld [vmem:[#allocation2 + $0x530] sm:$0xff]
    %v272 = vld [vmem:[#allocation2 + $0x538] sm:$0xff]
    %v273 = vld [vmem:[#allocation2 + $0x540] sm:$0xff]
    %v274 = vld [vmem:[#allocation2 + $0x548] sm:$0xff]
    %v275 = vld [vmem:[#allocation2 + $0x550] sm:$0xff]
    %v276 = vld [vmem:[#allocation2 + $0x558] sm:$0xff]
    %v277 = vld [vmem:[#allocation2 + $0x560] sm:$0xff]
    %v278 = vld [vmem:[#allocation2 + $0x568] sm:$0xff]
    %v279 = vld [vmem:[#allocation2 + $0x570] sm:$0xff]
    %v280 = vld [vmem:[#allocation2 + $0x578] sm:$0xff]
    %v281 = vld [vmem:[#allocation2 + $0x580] sm:$0xff]
    %v282 = vld [vmem:[#allocation2 + $0x588] sm:$0xff]
    %v283 = vld [vmem:[#allocation2 + $0x590] sm:$0xff]
    %v284 = vld [vmem:[#allocation2 + $0x598] sm:$0xff]
    %v285 = vld [vmem:[#allocation2 + $0x5a0] sm:$0xff]
    %v286 = vld [vmem:[#allocation2 + $0x5a8] sm:$0xff]
    %v287 = vld [vmem:[#allocation2 + $0x5b0] sm:$0xff]
    %v288 = vld [vmem:[#allocation2 + $0x5b8] sm:$0xff]
    %v289 = vld [vmem:[#allocation2 + $0x5c0] sm:$0xff]
    %v290 = vld [vmem:[#allocation2 + $0x5c8] sm:$0xff]
    %v291 = vld [vmem:[#allocation2 + $0x5d0] sm:$0xff]
    %v292 = vld [vmem:[#allocation2 + $0x5d8] sm:$0xff]
    %v293 = vld [vmem:[#allocation2 + $0x5e0] sm:$0xff]
    %v294 = vld [vmem:[#allocation2 + $0x5e8] sm:$0xff]
    %v295 = vld [vmem:[#allocation2 + $0x5f0] sm:$0xff]
    %v296 = vld [vmem:[#allocation2 + $0x5f8] sm:$0xff]
    %v297 = vld [vmem:[#allocation2 + $0x600] sm:$0xff]
    %v298 = vld [vmem:[#allocation2 + $0x608] sm:$0xff]
    %v299 = vld [vmem:[#allocation2 + $0x610] sm:$0xff]
    %v300 = vld [vmem:[#allocation2 + $0x618] sm:$0xff]
    %v301 = vld [vmem:[#allocation2 + $0x620] sm:$0xff]
    %v302 = vld [vmem:[#allocation2 + $0x628] sm:$0xff]
    %v303 = vld [vmem:[#allocation2 + $0x630] sm:$0xff]
    %v304 = vld [vmem:[#allocation2 + $0x638] sm:$0xff]
    %v305 = vld [vmem:[#allocation2 + $0x640] sm:$0xff]
    %v306 = vld [vmem:[#allocation2 + $0x648] sm:$0xff]
    %v307 = vld [vmem:[#allocation2 + $0x650] sm:$0xff]
    %v308 = vld [vmem:[#allocation2 + $0x658] sm:$0xff]
    %v309 = vld [vmem:[#allocation2 + $0x660] sm:$0xff]
    %v310 = vld [vmem:[#allocation2 + $0x668] sm:$0xff]
    %v311 = vld [vmem:[#allocation2 + $0x670] sm:$0xff]
    %v312 = vld [vmem:[#allocation2 + $0x678] sm:$0xff]
    %v313 = vld [vmem:[#allocation2 + $0x680] sm:$0xff]
    %v314 = vld [vmem:[#allocation2 + $0x688] sm:$0xff]
    %v315 = vld [vmem:[#allocation2 + $0x690] sm:$0xff]
    %v316 = vld [vmem:[#allocation2 + $0x698] sm:$0xff]
    %v317 = vld [vmem:[#allocation2 + $0x6a0] sm:$0xff]
    %v318 = vld [vmem:[#allocation2 + $0x6a8] sm:$0xff]
    %v319 = vld [vmem:[#allocation2 + $0x6b0] sm:$0xff]
    %v320 = vld [vmem:[#allocation2 + $0x6b8] sm:$0xff]
    %v321 = vld [vmem:[#allocation2 + $0x6c0] sm:$0xff]
    %v322 = vld [vmem:[#allocation2 + $0x6c8] sm:$0xff]
    %v323 = vld [vmem:[#allocation2 + $0x6d0] sm:$0xff]
    %v324 = vld [vmem:[#allocation2 + $0x6d8] sm:$0xff]
    %v325 = vld [vmem:[#allocation2 + $0x6e0] sm:$0xff]
    %v326 = vld [vmem:[#allocation2 + $0x6e8] sm:$0xff]
    %v327 = vld [vmem:[#allocation2 + $0x6f0] sm:$0xff]
    %v328 = vld [vmem:[#allocation2 + $0x6f8] sm:$0xff]
    %v329 = vld [vmem:[%s2] sm:$0xf]
    %v331 = vlaneseq
    %v332 = vshrl.u32 %v331, 7
    %v333 = vsub.s32 0, %v332
    %v334 = vrot.slane %v329, %v333
    %v335 = vlaneseq
    %v336 = vshrl.u32 %v335, 7
    %v337 = vsub.s32 1, %v336
    %v338 = vrot.slane %v329, %v337
    %v339 = vlaneseq
    %v340 = vshrl.u32 %v339, 7
    %v341 = vsub.s32 2, %v340
    %v342 = vrot.slane %v329, %v341
    %v343 = vlaneseq
    %v344 = vshrl.u32 %v343, 7
    %v345 = vsub.s32 3, %v344
    %v346 = vrot.slane %v329, %v345
    %v415 = vunpack.c.l.b16 %v41
    %v416 = vunpack.c.h.b16 %v41
    %v417 = vunpack.c.l.b16 %v42
    %v418 = vunpack.c.h.b16 %v42
    %v419 = vunpack.c.l.b16 %v43
    %v420 = vunpack.c.h.b16 %v43
    %v421 = vunpack.c.l.b16 %v44
    %v422 = vunpack.c.l.b16 %v45
    %v423 = vunpack.c.h.b16 %v45
    %v424 = vunpack.c.l.b16 %v46
    %v425 = vunpack.c.h.b16 %v46
    %v426 = vunpack.c.l.b16 %v47
    %v427 = vunpack.c.h.b16 %v47
    %v428 = vunpack.c.l.b16 %v48
    %v429 = vunpack.c.l.b16 %v49
    %v430 = vunpack.c.h.b16 %v49
    %v431 = vunpack.c.l.b16 %v50
    %v432 = vunpack.c.h.b16 %v50
    %v433 = vunpack.c.l.b16 %v51
    %v434 = vunpack.c.h.b16 %v51
    %v435 = vunpack.c.l.b16 %v52
    %v436 = vunpack.c.l.b16 %v53
    %v437 = vunpack.c.h.b16 %v53
    %v438 = vunpack.c.l.b16 %v54
    %v439 = vunpack.c.h.b16 %v54
    %v440 = vunpack.c.l.b16 %v55
    %v441 = vunpack.c.h.b16 %v55
    %v442 = vunpack.c.l.b16 %v56
    %v443 = vunpack.c.l.b16 %v57
    %v444 = vunpack.c.h.b16 %v57
    %v445 = vunpack.c.l.b16 %v58
    %v446 = vunpack.c.h.b16 %v58
    %v447 = vunpack.c.l.b16 %v59
    %v448 = vunpack.c.h.b16 %v59
    %v449 = vunpack.c.l.b16 %v60
    %v450 = vunpack.c.l.b16 %v61
    %v451 = vunpack.c.h.b16 %v61
    %v452 = vunpack.c.l.b16 %v62
    %v453 = vunpack.c.h.b16 %v62
    %v454 = vunpack.c.l.b16 %v63
    %v455 = vunpack.c.h.b16 %v63
    %v456 = vunpack.c.l.b16 %v64
    %v457 = vunpack.c.l.b16 %v65
    %v458 = vunpack.c.h.b16 %v65
    %v459 = vunpack.c.l.b16 %v66
    %v460 = vunpack.c.h.b16 %v66
    %v461 = vunpack.c.l.b16 %v67
    %v462 = vunpack.c.h.b16 %v67
    %v463 = vunpack.c.l.b16 %v68
    %v464 = vunpack.c.l.b16 %v69
    %v465 = vunpack.c.h.b16 %v69
    %v466 = vunpack.c.l.b16 %v70
    %v467 = vunpack.c.h.b16 %v70
    %v468 = vunpack.c.l.b16 %v71
    %v469 = vunpack.c.h.b16 %v71
    %v470 = vunpack.c.l.b16 %v72
    %v471 = vunpack.c.l.b16 %v73
    %v472 = vunpack.c.h.b16 %v73
    %v473 = vunpack.c.l.b16 %v74
    %v474 = vunpack.c.h.b16 %v74
    %v475 = vunpack.c.l.b16 %v75
    %v476 = vunpack.c.h.b16 %v75
    %v477 = vunpack.c.l.b16 %v76
    %v478 = vunpack.c.l.b16 %v77
    %v479 = vunpack.c.h.b16 %v77
    %v480 = vunpack.c.l.b16 %v78
    %v481 = vunpack.c.h.b16 %v78
    %v482 = vunpack.c.l.b16 %v79
    %v483 = vunpack.c.h.b16 %v79
    %v484 = vunpack.c.l.b16 %v80
    %v485 = vunpack.c.l.b16 %v81
    %v486 = vunpack.c.h.b16 %v81
    %v487 = vunpack.c.l.b16 %v82
    %v488 = vunpack.c.h.b16 %v82
    %v489 = vunpack.c.l.b16 %v83
    %v490 = vunpack.c.h.b16 %v83
    %v491 = vunpack.c.l.b16 %v84
    %v492 = vunpack.c.l.b16 %v85
    %v493 = vunpack.c.h.b16 %v85
    %v494 = vunpack.c.l.b16 %v86
    %v495 = vunpack.c.h.b16 %v86
    %v496 = vunpack.c.l.b16 %v87
    %v497 = vunpack.c.h.b16 %v87
    %v498 = vunpack.c.l.b16 %v88
    %v499 = vunpack.c.l.b16 %v89
    %v500 = vunpack.c.h.b16 %v89
    %v501 = vunpack.c.l.b16 %v90
    %v502 = vunpack.c.h.b16 %v90
    %v503 = vunpack.c.l.b16 %v91
    %v504 = vunpack.c.h.b16 %v91
    %v505 = vunpack.c.l.b16 %v92
    %v506 = vunpack.c.l.b16 %v93
    %v507 = vunpack.c.h.b16 %v93
    %v508 = vunpack.c.l.b16 %v94
    %v509 = vunpack.c.h.b16 %v94
    %v510 = vunpack.c.l.b16 %v95
    %v511 = vunpack.c.h.b16 %v95
    %v512 = vunpack.c.l.b16 %v96
    %v513 = vunpack.c.l.b16 %v97
    %v514 = vunpack.c.h.b16 %v97
    %v515 = vunpack.c.l.b16 %v98
    %v516 = vunpack.c.h.b16 %v98
    %v517 = vunpack.c.l.b16 %v99
    %v518 = vunpack.c.h.b16 %v99
    %v519 = vunpack.c.l.b16 %v100
    %v520 = vunpack.c.l.b16 %v101
    %v521 = vunpack.c.h.b16 %v101
    %v522 = vunpack.c.l.b16 %v102
    %v523 = vunpack.c.h.b16 %v102
    %v524 = vunpack.c.l.b16 %v103
    %v525 = vunpack.c.h.b16 %v103
    %v526 = vunpack.c.l.b16 %v104
    %v527 = vpack.c.b16 %v422, %v415
    %v528 = vpack.c.b16 %v423, %v416
    %v529 = vpack.c.b16 %v424, %v417
    %v530 = vpack.c.b16 %v425, %v418
    %v531 = vpack.c.b16 %v426, %v419
    %v532 = vpack.c.b16 %v427, %v420
    %v533 = vpack.c.b16 %v428, %v421
    %v534 = vpack.c.b16 %v436, %v429
    %v535 = vpack.c.b16 %v437, %v430
    %v536 = vpack.c.b16 %v438, %v431
    %v537 = vpack.c.b16 %v439, %v432
    %v538 = vpack.c.b16 %v440, %v433
    %v539 = vpack.c.b16 %v441, %v434
    %v540 = vpack.c.b16 %v442, %v435
    %v541 = vpack.c.b16 %v450, %v443
    %v542 = vpack.c.b16 %v451, %v444
    %v543 = vpack.c.b16 %v452, %v445
    %v544 = vpack.c.b16 %v453, %v446
    %v545 = vpack.c.b16 %v454, %v447
    %v546 = vpack.c.b16 %v455, %v448
    %v547 = vpack.c.b16 %v456, %v449
    %v548 = vpack.c.b16 %v464, %v457
    %v549 = vpack.c.b16 %v465, %v458
    %v550 = vpack.c.b16 %v466, %v459
    %v551 = vpack.c.b16 %v467, %v460
    %v552 = vpack.c.b16 %v468, %v461
    %v553 = vpack.c.b16 %v469, %v462
    %v554 = vpack.c.b16 %v470, %v463
    %v555 = vpack.c.b16 %v478, %v471
    %v556 = vpack.c.b16 %v479, %v472
    %v557 = vpack.c.b16 %v480, %v473
    %v558 = vpack.c.b16 %v481, %v474
    %v559 = vpack.c.b16 %v482, %v475
    %v560 = vpack.c.b16 %v483, %v476
    %v561 = vpack.c.b16 %v484, %v477
    %v562 = vpack.c.b16 %v492, %v485
    %v563 = vpack.c.b16 %v493, %v486
    %v564 = vpack.c.b16 %v494, %v487
    %v565 = vpack.c.b16 %v495, %v488
    %v566 = vpack.c.b16 %v496, %v489
    %v567 = vpack.c.b16 %v497, %v490
    %v568 = vpack.c.b16 %v498, %v491
    %v569 = vpack.c.b16 %v506, %v499
    %v570 = vpack.c.b16 %v507, %v500
    %v571 = vpack.c.b16 %v508, %v501
    %v572 = vpack.c.b16 %v509, %v502
    %v573 = vpack.c.b16 %v510, %v503
    %v574 = vpack.c.b16 %v511, %v504
    %v575 = vpack.c.b16 %v512, %v505
    %v576 = vpack.c.b16 %v520, %v513
    %v577 = vpack.c.b16 %v521, %v514
    %v578 = vpack.c.b16 %v522, %v515
    %v579 = vpack.c.b16 %v523, %v516
    %v580 = vpack.c.b16 %v524, %v517
    %v581 = vpack.c.b16 %v525, %v518
    %v582 = vpack.c.b16 %v526, %v519
    %v863 = vunpack.c.l.b16 %v105
    %v864 = vunpack.c.h.b16 %v105
    %v865 = vunpack.c.l.b16 %v106
    %v866 = vunpack.c.h.b16 %v106
    %v867 = vunpack.c.l.b16 %v107
    %v868 = vunpack.c.h.b16 %v107
    %v869 = vunpack.c.l.b16 %v108
    %v870 = vunpack.c.h.b16 %v108
    %v871 = vunpack.c.l.b16 %v109
    %v872 = vunpack.c.h.b16 %v109
    %v873 = vunpack.c.l.b16 %v110
    %v874 = vunpack.c.h.b16 %v110
    %v875 = vunpack.c.l.b16 %v111
    %v876 = vunpack.c.h.b16 %v111
    %v877 = vunpack.c.l.b16 %v112
    %v878 = vunpack.c.h.b16 %v112
    %v879 = vunpack.c.l.b16 %v113
    %v880 = vunpack.c.h.b16 %v113
    %v881 = vunpack.c.l.b16 %v114
    %v882 = vunpack.c.h.b16 %v114
    %v883 = vunpack.c.l.b16 %v115
    %v884 = vunpack.c.h.b16 %v115
    %v885 = vunpack.c.l.b16 %v116
    %v886 = vunpack.c.h.b16 %v116
    %v887 = vunpack.c.l.b16 %v117
    %v888 = vunpack.c.h.b16 %v117
    %v889 = vunpack.c.l.b16 %v118
    %v890 = vunpack.c.h.b16 %v118
    %v891 = vunpack.c.l.b16 %v119
    %v892 = vunpack.c.h.b16 %v119
    %v893 = vunpack.c.l.b16 %v120
    %v894 = vunpack.c.h.b16 %v120
    %v895 = vunpack.c.l.b16 %v121
    %v896 = vunpack.c.h.b16 %v121
    %v897 = vunpack.c.l.b16 %v122
    %v898 = vunpack.c.h.b16 %v122
    %v899 = vunpack.c.l.b16 %v123
    %v900 = vunpack.c.h.b16 %v123
    %v901 = vunpack.c.l.b16 %v124
    %v902 = vunpack.c.h.b16 %v124
    %v903 = vunpack.c.l.b16 %v125
    %v904 = vunpack.c.h.b16 %v125
    %v905 = vunpack.c.l.b16 %v126
    %v906 = vunpack.c.h.b16 %v126
    %v907 = vunpack.c.l.b16 %v127
    %v908 = vunpack.c.h.b16 %v127
    %v909 = vunpack.c.l.b16 %v128
    %v910 = vunpack.c.h.b16 %v128
    %v911 = vunpack.c.l.b16 %v129
    %v912 = vunpack.c.h.b16 %v129
    %v913 = vunpack.c.l.b16 %v130
    %v914 = vunpack.c.h.b16 %v130
    %v915 = vunpack.c.l.b16 %v131
    %v916 = vunpack.c.h.b16 %v131
    %v917 = vunpack.c.l.b16 %v132
    %v918 = vunpack.c.h.b16 %v132
    %v919 = vunpack.c.l.b16 %v133
    %v920 = vunpack.c.h.b16 %v133
    %v921 = vunpack.c.l.b16 %v134
    %v922 = vunpack.c.h.b16 %v134
    %v923 = vunpack.c.l.b16 %v135
    %v924 = vunpack.c.h.b16 %v135
    %v925 = vunpack.c.l.b16 %v136
    %v926 = vunpack.c.h.b16 %v136
    %v927 = vunpack.c.l.b16 %v137
    %v928 = vunpack.c.h.b16 %v137
    %v929 = vunpack.c.l.b16 %v138
    %v930 = vunpack.c.h.b16 %v138
    %v931 = vunpack.c.l.b16 %v139
    %v932 = vunpack.c.h.b16 %v139
    %v933 = vunpack.c.l.b16 %v140
    %v934 = vunpack.c.h.b16 %v140
    %v935 = vunpack.c.l.b16 %v141
    %v936 = vunpack.c.h.b16 %v141
    %v937 = vunpack.c.l.b16 %v142
    %v938 = vunpack.c.h.b16 %v142
    %v939 = vunpack.c.l.b16 %v143
    %v940 = vunpack.c.h.b16 %v143
    %v941 = vunpack.c.l.b16 %v144
    %v942 = vunpack.c.h.b16 %v144
    %v943 = vunpack.c.l.b16 %v145
    %v944 = vunpack.c.h.b16 %v145
    %v945 = vunpack.c.l.b16 %v146
    %v946 = vunpack.c.h.b16 %v146
    %v947 = vunpack.c.l.b16 %v147
    %v948 = vunpack.c.h.b16 %v147
    %v949 = vunpack.c.l.b16 %v148
    %v950 = vunpack.c.h.b16 %v148
    %v951 = vunpack.c.l.b16 %v149
    %v952 = vunpack.c.h.b16 %v149
    %v953 = vunpack.c.l.b16 %v150
    %v954 = vunpack.c.h.b16 %v150
    %v955 = vunpack.c.l.b16 %v151
    %v956 = vunpack.c.h.b16 %v151
    %v957 = vunpack.c.l.b16 %v152
    %v958 = vunpack.c.h.b16 %v152
    %v959 = vunpack.c.l.b16 %v153
    %v960 = vunpack.c.h.b16 %v153
    %v961 = vunpack.c.l.b16 %v154
    %v962 = vunpack.c.h.b16 %v154
    %v963 = vunpack.c.l.b16 %v155
    %v964 = vunpack.c.h.b16 %v155
    %v965 = vunpack.c.l.b16 %v156
    %v966 = vunpack.c.h.b16 %v156
    %v967 = vunpack.c.l.b16 %v157
    %v968 = vunpack.c.h.b16 %v157
    %v969 = vunpack.c.l.b16 %v158
    %v970 = vunpack.c.h.b16 %v158
    %v971 = vunpack.c.l.b16 %v159
    %v972 = vunpack.c.h.b16 %v159
    %v973 = vunpack.c.l.b16 %v160
    %v974 = vunpack.c.h.b16 %v160
    %v975 = vunpack.c.l.b16 %v161
    %v976 = vunpack.c.h.b16 %v161
    %v977 = vunpack.c.l.b16 %v162
    %v978 = vunpack.c.h.b16 %v162
    %v979 = vunpack.c.l.b16 %v163
    %v980 = vunpack.c.h.b16 %v163
    %v981 = vunpack.c.l.b16 %v164
    %v982 = vunpack.c.h.b16 %v164
    %v983 = vunpack.c.l.b16 %v165
    %v984 = vunpack.c.h.b16 %v165
    %v985 = vunpack.c.l.b16 %v166
    %v986 = vunpack.c.h.b16 %v166
    %v987 = vunpack.c.l.b16 %v167
    %v988 = vunpack.c.h.b16 %v167
    %v989 = vunpack.c.l.b16 %v168
    %v990 = vunpack.c.h.b16 %v168
    %v991 = vunpack.c.l.b16 %v169
    %v992 = vunpack.c.h.b16 %v169
    %v993 = vunpack.c.l.b16 %v170
    %v994 = vunpack.c.h.b16 %v170
    %v995 = vunpack.c.l.b16 %v171
    %v996 = vunpack.c.h.b16 %v171
    %v997 = vunpack.c.l.b16 %v172
    %v998 = vunpack.c.h.b16 %v172
    %v999 = vunpack.c.l.b16 %v173
    %v1000 = vunpack.c.h.b16 %v173
    %v1001 = vunpack.c.l.b16 %v174
    %v1002 = vunpack.c.h.b16 %v174
    %v1003 = vunpack.c.l.b16 %v175
    %v1004 = vunpack.c.h.b16 %v175
    %v1005 = vunpack.c.l.b16 %v176
    %v1006 = vunpack.c.h.b16 %v176
    %v1007 = vunpack.c.l.b16 %v177
    %v1008 = vunpack.c.h.b16 %v177
    %v1009 = vunpack.c.l.b16 %v178
    %v1010 = vunpack.c.h.b16 %v178
    %v1011 = vunpack.c.l.b16 %v179
    %v1012 = vunpack.c.h.b16 %v179
    %v1013 = vunpack.c.l.b16 %v180
    %v1014 = vunpack.c.h.b16 %v180
    %v1015 = vunpack.c.l.b16 %v181
    %v1016 = vunpack.c.h.b16 %v181
    %v1017 = vunpack.c.l.b16 %v182
    %v1018 = vunpack.c.h.b16 %v182
    %v1019 = vunpack.c.l.b16 %v183
    %v1020 = vunpack.c.h.b16 %v183
    %v1021 = vunpack.c.l.b16 %v184
    %v1022 = vunpack.c.h.b16 %v184
    %v1023 = vunpack.c.l.b16 %v185
    %v1024 = vunpack.c.h.b16 %v185
    %v1025 = vunpack.c.l.b16 %v186
    %v1026 = vunpack.c.h.b16 %v186
    %v1027 = vunpack.c.l.b16 %v187
    %v1028 = vunpack.c.h.b16 %v187
    %v1029 = vunpack.c.l.b16 %v188
    %v1030 = vunpack.c.h.b16 %v188
    %v1031 = vunpack.c.l.b16 %v189
    %v1032 = vunpack.c.h.b16 %v189
    %v1033 = vunpack.c.l.b16 %v190
    %v1034 = vunpack.c.h.b16 %v190
    %v1035 = vunpack.c.l.b16 %v191
    %v1036 = vunpack.c.h.b16 %v191
    %v1037 = vunpack.c.l.b16 %v192
    %v1038 = vunpack.c.h.b16 %v192
    %v1039 = vunpack.c.l.b16 %v193
    %v1040 = vunpack.c.h.b16 %v193
    %v1041 = vunpack.c.l.b16 %v194
    %v1042 = vunpack.c.h.b16 %v194
    %v1043 = vunpack.c.l.b16 %v195
    %v1044 = vunpack.c.h.b16 %v195
    %v1045 = vunpack.c.l.b16 %v196
    %v1046 = vunpack.c.h.b16 %v196
    %v1047 = vunpack.c.l.b16 %v197
    %v1048 = vunpack.c.h.b16 %v197
    %v1049 = vunpack.c.l.b16 %v198
    %v1050 = vunpack.c.h.b16 %v198
    %v1051 = vunpack.c.l.b16 %v199
    %v1052 = vunpack.c.h.b16 %v199
    %v1053 = vunpack.c.l.b16 %v200
    %v1054 = vunpack.c.h.b16 %v200
    %v1055 = vunpack.c.l.b16 %v201
    %v1056 = vunpack.c.h.b16 %v201
    %v1057 = vunpack.c.l.b16 %v202
    %v1058 = vunpack.c.h.b16 %v202
    %v1059 = vunpack.c.l.b16 %v203
    %v1060 = vunpack.c.h.b16 %v203
    %v1061 = vunpack.c.l.b16 %v204
    %v1062 = vunpack.c.h.b16 %v204
    %v1063 = vunpack.c.l.b16 %v205
    %v1064 = vunpack.c.h.b16 %v205
    %v1065 = vunpack.c.l.b16 %v206
    %v1066 = vunpack.c.h.b16 %v206
    %v1067 = vunpack.c.l.b16 %v207
    %v1068 = vunpack.c.h.b16 %v207
    %v1069 = vunpack.c.l.b16 %v208
    %v1070 = vunpack.c.h.b16 %v208
    %v1071 = vunpack.c.l.b16 %v209
    %v1072 = vunpack.c.h.b16 %v209
    %v1073 = vunpack.c.l.b16 %v210
    %v1074 = vunpack.c.h.b16 %v210
    %v1075 = vunpack.c.l.b16 %v211
    %v1076 = vunpack.c.h.b16 %v211
    %v1077 = vunpack.c.l.b16 %v212
    %v1078 = vunpack.c.h.b16 %v212
    %v1079 = vunpack.c.l.b16 %v213
    %v1080 = vunpack.c.h.b16 %v213
    %v1081 = vunpack.c.l.b16 %v214
    %v1082 = vunpack.c.h.b16 %v214
    %v1083 = vunpack.c.l.b16 %v215
    %v1084 = vunpack.c.h.b16 %v215
    %v1085 = vunpack.c.l.b16 %v216
    %v1086 = vunpack.c.h.b16 %v216
    %v1087 = vunpack.c.l.b16 %v217
    %v1088 = vunpack.c.h.b16 %v217
    %v1089 = vunpack.c.l.b16 %v218
    %v1090 = vunpack.c.h.b16 %v218
    %v1091 = vunpack.c.l.b16 %v219
    %v1092 = vunpack.c.h.b16 %v219
    %v1093 = vunpack.c.l.b16 %v220
    %v1094 = vunpack.c.h.b16 %v220
    %v1095 = vunpack.c.l.b16 %v221
    %v1096 = vunpack.c.h.b16 %v221
    %v1097 = vunpack.c.l.b16 %v222
    %v1098 = vunpack.c.h.b16 %v222
    %v1099 = vunpack.c.l.b16 %v223
    %v1100 = vunpack.c.h.b16 %v223
    %v1101 = vunpack.c.l.b16 %v224
    %v1102 = vunpack.c.h.b16 %v224
    %v1103 = vunpack.c.l.b16 %v225
    %v1104 = vunpack.c.h.b16 %v225
    %v1105 = vunpack.c.l.b16 %v226
    %v1106 = vunpack.c.h.b16 %v226
    %v1107 = vunpack.c.l.b16 %v227
    %v1108 = vunpack.c.h.b16 %v227
    %v1109 = vunpack.c.l.b16 %v228
    %v1110 = vunpack.c.h.b16 %v228
    %v1111 = vunpack.c.l.b16 %v229
    %v1112 = vunpack.c.h.b16 %v229
    %v1113 = vunpack.c.l.b16 %v230
    %v1114 = vunpack.c.h.b16 %v230
    %v1115 = vunpack.c.l.b16 %v231
    %v1116 = vunpack.c.h.b16 %v231
    %v1117 = vunpack.c.l.b16 %v232
    %v1118 = vunpack.c.h.b16 %v232
    %v1119 = vunpack.c.l.b16 %v233
    %v1120 = vunpack.c.h.b16 %v233
    %v1121 = vunpack.c.l.b16 %v234
    %v1122 = vunpack.c.h.b16 %v234
    %v1123 = vunpack.c.l.b16 %v235
    %v1124 = vunpack.c.h.b16 %v235
    %v1125 = vunpack.c.l.b16 %v236
    %v1126 = vunpack.c.h.b16 %v236
    %v1127 = vunpack.c.l.b16 %v237
    %v1128 = vunpack.c.h.b16 %v237
    %v1129 = vunpack.c.l.b16 %v238
    %v1130 = vunpack.c.h.b16 %v238
    %v1131 = vunpack.c.l.b16 %v239
    %v1132 = vunpack.c.h.b16 %v239
    %v1133 = vunpack.c.l.b16 %v240
    %v1134 = vunpack.c.h.b16 %v240
    %v1135 = vunpack.c.l.b16 %v241
    %v1136 = vunpack.c.h.b16 %v241
    %v1137 = vunpack.c.l.b16 %v242
    %v1138 = vunpack.c.h.b16 %v242
    %v1139 = vunpack.c.l.b16 %v243
    %v1140 = vunpack.c.h.b16 %v243
    %v1141 = vunpack.c.l.b16 %v244
    %v1142 = vunpack.c.h.b16 %v244
    %v1143 = vunpack.c.l.b16 %v245
    %v1144 = vunpack.c.h.b16 %v245
    %v1145 = vunpack.c.l.b16 %v246
    %v1146 = vunpack.c.h.b16 %v246
    %v1147 = vunpack.c.l.b16 %v247
    %v1148 = vunpack.c.h.b16 %v247
    %v1149 = vunpack.c.l.b16 %v248
    %v1150 = vunpack.c.h.b16 %v248
    %v1151 = vunpack.c.l.b16 %v249
    %v1152 = vunpack.c.h.b16 %v249
    %v1153 = vunpack.c.l.b16 %v250
    %v1154 = vunpack.c.h.b16 %v250
    %v1155 = vunpack.c.l.b16 %v251
    %v1156 = vunpack.c.h.b16 %v251
    %v1157 = vunpack.c.l.b16 %v252
    %v1158 = vunpack.c.h.b16 %v252
    %v1159 = vunpack.c.l.b16 %v253
    %v1160 = vunpack.c.h.b16 %v253
    %v1161 = vunpack.c.l.b16 %v254
    %v1162 = vunpack.c.h.b16 %v254
    %v1163 = vunpack.c.l.b16 %v255
    %v1164 = vunpack.c.h.b16 %v255
    %v1165 = vunpack.c.l.b16 %v256
    %v1166 = vunpack.c.h.b16 %v256
    %v1167 = vunpack.c.l.b16 %v257
    %v1168 = vunpack.c.h.b16 %v257
    %v1169 = vunpack.c.l.b16 %v258
    %v1170 = vunpack.c.h.b16 %v258
    %v1171 = vunpack.c.l.b16 %v259
    %v1172 = vunpack.c.h.b16 %v259
    %v1173 = vunpack.c.l.b16 %v260
    %v1174 = vunpack.c.h.b16 %v260
    %v1175 = vunpack.c.l.b16 %v261
    %v1176 = vunpack.c.h.b16 %v261
    %v1177 = vunpack.c.l.b16 %v262
    %v1178 = vunpack.c.h.b16 %v262
    %v1179 = vunpack.c.l.b16 %v263
    %v1180 = vunpack.c.h.b16 %v263
    %v1181 = vunpack.c.l.b16 %v264
    %v1182 = vunpack.c.h.b16 %v264
    %v1183 = vunpack.c.l.b16 %v265
    %v1184 = vunpack.c.h.b16 %v265
    %v1185 = vunpack.c.l.b16 %v266
    %v1186 = vunpack.c.h.b16 %v266
    %v1187 = vunpack.c.l.b16 %v267
    %v1188 = vunpack.c.h.b16 %v267
    %v1189 = vunpack.c.l.b16 %v268
    %v1190 = vunpack.c.h.b16 %v268
    %v1191 = vunpack.c.l.b16 %v269
    %v1192 = vunpack.c.h.b16 %v269
    %v1193 = vunpack.c.l.b16 %v270
    %v1194 = vunpack.c.h.b16 %v270
    %v1195 = vunpack.c.l.b16 %v271
    %v1196 = vunpack.c.h.b16 %v271
    %v1197 = vunpack.c.l.b16 %v272
    %v1198 = vunpack.c.h.b16 %v272
    %v1199 = vunpack.c.l.b16 %v273
    %v1200 = vunpack.c.h.b16 %v273
    %v1201 = vunpack.c.l.b16 %v274
    %v1202 = vunpack.c.h.b16 %v274
    %v1203 = vunpack.c.l.b16 %v275
    %v1204 = vunpack.c.h.b16 %v275
    %v1205 = vunpack.c.l.b16 %v276
    %v1206 = vunpack.c.h.b16 %v276
    %v1207 = vunpack.c.l.b16 %v277
    %v1208 = vunpack.c.h.b16 %v277
    %v1209 = vunpack.c.l.b16 %v278
    %v1210 = vunpack.c.h.b16 %v278
    %v1211 = vunpack.c.l.b16 %v279
    %v1212 = vunpack.c.h.b16 %v279
    %v1213 = vunpack.c.l.b16 %v280
    %v1214 = vunpack.c.h.b16 %v280
    %v1215 = vunpack.c.l.b16 %v281
    %v1216 = vunpack.c.h.b16 %v281
    %v1217 = vunpack.c.l.b16 %v282
    %v1218 = vunpack.c.h.b16 %v282
    %v1219 = vunpack.c.l.b16 %v283
    %v1220 = vunpack.c.h.b16 %v283
    %v1221 = vunpack.c.l.b16 %v284
    %v1222 = vunpack.c.h.b16 %v284
    %v1223 = vunpack.c.l.b16 %v285
    %v1224 = vunpack.c.h.b16 %v285
    %v1225 = vunpack.c.l.b16 %v286
    %v1226 = vunpack.c.h.b16 %v286
    %v1227 = vunpack.c.l.b16 %v287
    %v1228 = vunpack.c.h.b16 %v287
    %v1229 = vunpack.c.l.b16 %v288
    %v1230 = vunpack.c.h.b16 %v288
    %v1231 = vunpack.c.l.b16 %v289
    %v1232 = vunpack.c.h.b16 %v289
    %v1233 = vunpack.c.l.b16 %v290
    %v1234 = vunpack.c.h.b16 %v290
    %v1235 = vunpack.c.l.b16 %v291
    %v1236 = vunpack.c.h.b16 %v291
    %v1237 = vunpack.c.l.b16 %v292
    %v1238 = vunpack.c.h.b16 %v292
    %v1239 = vunpack.c.l.b16 %v293
    %v1240 = vunpack.c.h.b16 %v293
    %v1241 = vunpack.c.l.b16 %v294
    %v1242 = vunpack.c.h.b16 %v294
    %v1243 = vunpack.c.l.b16 %v295
    %v1244 = vunpack.c.h.b16 %v295
    %v1245 = vunpack.c.l.b16 %v296
    %v1246 = vunpack.c.h.b16 %v296
    %v1247 = vunpack.c.l.b16 %v297
    %v1248 = vunpack.c.h.b16 %v297
    %v1249 = vunpack.c.l.b16 %v298
    %v1250 = vunpack.c.h.b16 %v298
    %v1251 = vunpack.c.l.b16 %v299
    %v1252 = vunpack.c.h.b16 %v299
    %v1253 = vunpack.c.l.b16 %v300
    %v1254 = vunpack.c.h.b16 %v300
    %v1255 = vunpack.c.l.b16 %v301
    %v1256 = vunpack.c.h.b16 %v301
    %v1257 = vunpack.c.l.b16 %v302
    %v1258 = vunpack.c.h.b16 %v302
    %v1259 = vunpack.c.l.b16 %v303
    %v1260 = vunpack.c.h.b16 %v303
    %v1261 = vunpack.c.l.b16 %v304
    %v1262 = vunpack.c.h.b16 %v304
    %v1263 = vunpack.c.l.b16 %v305
    %v1264 = vunpack.c.h.b16 %v305
    %v1265 = vunpack.c.l.b16 %v306
    %v1266 = vunpack.c.h.b16 %v306
    %v1267 = vunpack.c.l.b16 %v307
    %v1268 = vunpack.c.h.b16 %v307
    %v1269 = vunpack.c.l.b16 %v308
    %v1270 = vunpack.c.h.b16 %v308
    %v1271 = vunpack.c.l.b16 %v309
    %v1272 = vunpack.c.h.b16 %v309
    %v1273 = vunpack.c.l.b16 %v310
    %v1274 = vunpack.c.h.b16 %v310
    %v1275 = vunpack.c.l.b16 %v311
    %v1276 = vunpack.c.h.b16 %v311
    %v1277 = vunpack.c.l.b16 %v312
    %v1278 = vunpack.c.h.b16 %v312
    %v1279 = vunpack.c.l.b16 %v313
    %v1280 = vunpack.c.h.b16 %v313
    %v1281 = vunpack.c.l.b16 %v314
    %v1282 = vunpack.c.h.b16 %v314
    %v1283 = vunpack.c.l.b16 %v315
    %v1284 = vunpack.c.h.b16 %v315
    %v1285 = vunpack.c.l.b16 %v316
    %v1286 = vunpack.c.h.b16 %v316
    %v1287 = vunpack.c.l.b16 %v317
    %v1288 = vunpack.c.h.b16 %v317
    %v1289 = vunpack.c.l.b16 %v318
    %v1290 = vunpack.c.h.b16 %v318
    %v1291 = vunpack.c.l.b16 %v319
    %v1292 = vunpack.c.h.b16 %v319
    %v1293 = vunpack.c.l.b16 %v320
    %v1294 = vunpack.c.h.b16 %v320
    %v1295 = vunpack.c.l.b16 %v321
    %v1296 = vunpack.c.h.b16 %v321
    %v1297 = vunpack.c.l.b16 %v322
    %v1298 = vunpack.c.h.b16 %v322
    %v1299 = vunpack.c.l.b16 %v323
    %v1300 = vunpack.c.h.b16 %v323
    %v1301 = vunpack.c.l.b16 %v324
    %v1302 = vunpack.c.h.b16 %v324
    %v1303 = vunpack.c.l.b16 %v325
    %v1304 = vunpack.c.h.b16 %v325
    %v1305 = vunpack.c.l.b16 %v326
    %v1306 = vunpack.c.h.b16 %v326
    %v1307 = vunpack.c.l.b16 %v327
    %v1308 = vunpack.c.h.b16 %v327
    %v1309 = vunpack.c.l.b16 %v328
    %v1310 = vunpack.c.h.b16 %v328
    %v1311 = vpack.c.b16 %v867, %v863
    %v1312 = vpack.c.b16 %v868, %v864
    %v1313 = vpack.c.b16 %v869, %v865
    %v1314 = vpack.c.b16 %v870, %v866
    %v1315 = vpack.c.b16 %v875, %v871
    %v1316 = vpack.c.b16 %v876, %v872
    %v1317 = vpack.c.b16 %v877, %v873
    %v1318 = vpack.c.b16 %v878, %v874
    %v1319 = vpack.c.b16 %v883, %v879
    %v1320 = vpack.c.b16 %v884, %v880
    %v1321 = vpack.c.b16 %v885, %v881
    %v1322 = vpack.c.b16 %v886, %v882
    %v1323 = vpack.c.b16 %v891, %v887
    %v1324 = vpack.c.b16 %v892, %v888
    %v1325 = vpack.c.b16 %v893, %v889
    %v1326 = vpack.c.b16 %v894, %v890
    %v1327 = vpack.c.b16 %v899, %v895
    %v1328 = vpack.c.b16 %v900, %v896
    %v1329 = vpack.c.b16 %v901, %v897
    %v1330 = vpack.c.b16 %v902, %v898
    %v1331 = vpack.c.b16 %v907, %v903
    %v1332 = vpack.c.b16 %v908, %v904
    %v1333 = vpack.c.b16 %v909, %v905
    %v1334 = vpack.c.b16 %v910, %v906
    %v1335 = vpack.c.b16 %v915, %v911
    %v1336 = vpack.c.b16 %v916, %v912
    %v1337 = vpack.c.b16 %v917, %v913
    %v1338 = vpack.c.b16 %v918, %v914
    %v1339 = vpack.c.b16 %v923, %v919
    %v1340 = vpack.c.b16 %v924, %v920
    %v1341 = vpack.c.b16 %v925, %v921
    %v1342 = vpack.c.b16 %v926, %v922
    %v1343 = vpack.c.b16 %v931, %v927
    %v1344 = vpack.c.b16 %v932, %v928
    %v1345 = vpack.c.b16 %v933, %v929
    %v1346 = vpack.c.b16 %v934, %v930
    %v1347 = vpack.c.b16 %v939, %v935
    %v1348 = vpack.c.b16 %v940, %v936
    %v1349 = vpack.c.b16 %v941, %v937
    %v1350 = vpack.c.b16 %v942, %v938
    %v1351 = vpack.c.b16 %v947, %v943
    %v1352 = vpack.c.b16 %v948, %v944
    %v1353 = vpack.c.b16 %v949, %v945
    %v1354 = vpack.c.b16 %v950, %v946
    %v1355 = vpack.c.b16 %v955, %v951
    %v1356 = vpack.c.b16 %v956, %v952
    %v1357 = vpack.c.b16 %v957, %v953
    %v1358 = vpack.c.b16 %v958, %v954
    %v1359 = vpack.c.b16 %v963, %v959
    %v1360 = vpack.c.b16 %v964, %v960
    %v1361 = vpack.c.b16 %v965, %v961
    %v1362 = vpack.c.b16 %v966, %v962
    %v1363 = vpack.c.b16 %v971, %v967
    %v1364 = vpack.c.b16 %v972, %v968
    %v1365 = vpack.c.b16 %v973, %v969
    %v1366 = vpack.c.b16 %v974, %v970
    %v1367 = vpack.c.b16 %v979, %v975
    %v1368 = vpack.c.b16 %v980, %v976
    %v1369 = vpack.c.b16 %v981, %v977
    %v1370 = vpack.c.b16 %v982, %v978
    %v1371 = vpack.c.b16 %v987, %v983
    %v1372 = vpack.c.b16 %v988, %v984
    %v1373 = vpack.c.b16 %v989, %v985
    %v1374 = vpack.c.b16 %v990, %v986
    %v1375 = vpack.c.b16 %v995, %v991
    %v1376 = vpack.c.b16 %v996, %v992
    %v1377 = vpack.c.b16 %v997, %v993
    %v1378 = vpack.c.b16 %v998, %v994
    %v1379 = vpack.c.b16 %v1003, %v999
    %v1380 = vpack.c.b16 %v1004, %v1000
    %v1381 = vpack.c.b16 %v1005, %v1001
    %v1382 = vpack.c.b16 %v1006, %v1002
    %v1383 = vpack.c.b16 %v1011, %v1007
    %v1384 = vpack.c.b16 %v1012, %v1008
    %v1385 = vpack.c.b16 %v1013, %v1009
    %v1386 = vpack.c.b16 %v1014, %v1010
    %v1387 = vpack.c.b16 %v1019, %v1015
    %v1388 = vpack.c.b16 %v1020, %v1016
    %v1389 = vpack.c.b16 %v1021, %v1017
    %v1390 = vpack.c.b16 %v1022, %v1018
    %v1391 = vpack.c.b16 %v1027, %v1023
    %v1392 = vpack.c.b16 %v1028, %v1024
    %v1393 = vpack.c.b16 %v1029, %v1025
    %v1394 = vpack.c.b16 %v1030, %v1026
    %v1395 = vpack.c.b16 %v1035, %v1031
    %v1396 = vpack.c.b16 %v1036, %v1032
    %v1397 = vpack.c.b16 %v1037, %v1033
    %v1398 = vpack.c.b16 %v1038, %v1034
    %v1399 = vpack.c.b16 %v1043, %v1039
    %v1400 = vpack.c.b16 %v1044, %v1040
    %v1401 = vpack.c.b16 %v1045, %v1041
    %v1402 = vpack.c.b16 %v1046, %v1042
    %v1403 = vpack.c.b16 %v1051, %v1047
    %v1404 = vpack.c.b16 %v1052, %v1048
    %v1405 = vpack.c.b16 %v1053, %v1049
    %v1406 = vpack.c.b16 %v1054, %v1050
    %v1407 = vpack.c.b16 %v1059, %v1055
    %v1408 = vpack.c.b16 %v1060, %v1056
    %v1409 = vpack.c.b16 %v1061, %v1057
    %v1410 = vpack.c.b16 %v1062, %v1058
    %v1411 = vpack.c.b16 %v1067, %v1063
    %v1412 = vpack.c.b16 %v1068, %v1064
    %v1413 = vpack.c.b16 %v1069, %v1065
    %v1414 = vpack.c.b16 %v1070, %v1066
    %v1415 = vpack.c.b16 %v1075, %v1071
    %v1416 = vpack.c.b16 %v1076, %v1072
    %v1417 = vpack.c.b16 %v1077, %v1073
    %v1418 = vpack.c.b16 %v1078, %v1074
    %v1419 = vpack.c.b16 %v1083, %v1079
    %v1420 = vpack.c.b16 %v1084, %v1080
    %v1421 = vpack.c.b16 %v1085, %v1081
    %v1422 = vpack.c.b16 %v1086, %v1082
    %v1423 = vpack.c.b16 %v1091, %v1087
    %v1424 = vpack.c.b16 %v1092, %v1088
    %v1425 = vpack.c.b16 %v1093, %v1089
    %v1426 = vpack.c.b16 %v1094, %v1090
    %v1427 = vpack.c.b16 %v1099, %v1095
    %v1428 = vpack.c.b16 %v1100, %v1096
    %v1429 = vpack.c.b16 %v1101, %v1097
    %v1430 = vpack.c.b16 %v1102, %v1098
    %v1431 = vpack.c.b16 %v1107, %v1103
    %v1432 = vpack.c.b16 %v1108, %v1104
    %v1433 = vpack.c.b16 %v1109, %v1105
    %v1434 = vpack.c.b16 %v1110, %v1106
    %v1435 = vpack.c.b16 %v1115, %v1111
    %v1436 = vpack.c.b16 %v1116, %v1112
    %v1437 = vpack.c.b16 %v1117, %v1113
    %v1438 = vpack.c.b16 %v1118, %v1114
    %v1439 = vpack.c.b16 %v1123, %v1119
    %v1440 = vpack.c.b16 %v1124, %v1120
    %v1441 = vpack.c.b16 %v1125, %v1121
    %v1442 = vpack.c.b16 %v1126, %v1122
    %v1443 = vpack.c.b16 %v1131, %v1127
    %v1444 = vpack.c.b16 %v1132, %v1128
    %v1445 = vpack.c.b16 %v1133, %v1129
    %v1446 = vpack.c.b16 %v1134, %v1130
    %v1447 = vpack.c.b16 %v1139, %v1135
    %v1448 = vpack.c.b16 %v1140, %v1136
    %v1449 = vpack.c.b16 %v1141, %v1137
    %v1450 = vpack.c.b16 %v1142, %v1138
    %v1451 = vpack.c.b16 %v1147, %v1143
    %v1452 = vpack.c.b16 %v1148, %v1144
    %v1453 = vpack.c.b16 %v1149, %v1145
    %v1454 = vpack.c.b16 %v1150, %v1146
    %v1455 = vpack.c.b16 %v1155, %v1151
    %v1456 = vpack.c.b16 %v1156, %v1152
    %v1457 = vpack.c.b16 %v1157, %v1153
    %v1458 = vpack.c.b16 %v1158, %v1154
    %v1459 = vpack.c.b16 %v1163, %v1159
    %v1460 = vpack.c.b16 %v1164, %v1160
    %v1461 = vpack.c.b16 %v1165, %v1161
    %v1462 = vpack.c.b16 %v1166, %v1162
    %v1463 = vpack.c.b16 %v1171, %v1167
    %v1464 = vpack.c.b16 %v1172, %v1168
    %v1465 = vpack.c.b16 %v1173, %v1169
    %v1466 = vpack.c.b16 %v1174, %v1170
    %v1467 = vpack.c.b16 %v1179, %v1175
    %v1468 = vpack.c.b16 %v1180, %v1176
    %v1469 = vpack.c.b16 %v1181, %v1177
    %v1470 = vpack.c.b16 %v1182, %v1178
    %v1471 = vpack.c.b16 %v1187, %v1183
    %v1472 = vpack.c.b16 %v1188, %v1184
    %v1473 = vpack.c.b16 %v1189, %v1185
    %v1474 = vpack.c.b16 %v1190, %v1186
    %v1475 = vpack.c.b16 %v1195, %v1191
    %v1476 = vpack.c.b16 %v1196, %v1192
    %v1477 = vpack.c.b16 %v1197, %v1193
    %v1478 = vpack.c.b16 %v1198, %v1194
    %v1479 = vpack.c.b16 %v1203, %v1199
    %v1480 = vpack.c.b16 %v1204, %v1200
    %v1481 = vpack.c.b16 %v1205, %v1201
    %v1482 = vpack.c.b16 %v1206, %v1202
    %v1483 = vpack.c.b16 %v1211, %v1207
    %v1484 = vpack.c.b16 %v1212, %v1208
    %v1485 = vpack.c.b16 %v1213, %v1209
    %v1486 = vpack.c.b16 %v1214, %v1210
    %v1487 = vpack.c.b16 %v1219, %v1215
    %v1488 = vpack.c.b16 %v1220, %v1216
    %v1489 = vpack.c.b16 %v1221, %v1217
    %v1490 = vpack.c.b16 %v1222, %v1218
    %v1491 = vpack.c.b16 %v1227, %v1223
    %v1492 = vpack.c.b16 %v1228, %v1224
    %v1493 = vpack.c.b16 %v1229, %v1225
    %v1494 = vpack.c.b16 %v1230, %v1226
    %v1495 = vpack.c.b16 %v1235, %v1231
    %v1496 = vpack.c.b16 %v1236, %v1232
    %v1497 = vpack.c.b16 %v1237, %v1233
    %v1498 = vpack.c.b16 %v1238, %v1234
    %v1499 = vpack.c.b16 %v1243, %v1239
    %v1500 = vpack.c.b16 %v1244, %v1240
    %v1501 = vpack.c.b16 %v1245, %v1241
    %v1502 = vpack.c.b16 %v1246, %v1242
    %v1503 = vpack.c.b16 %v1251, %v1247
    %v1504 = vpack.c.b16 %v1252, %v1248
    %v1505 = vpack.c.b16 %v1253, %v1249
    %v1506 = vpack.c.b16 %v1254, %v1250
    %v1507 = vpack.c.b16 %v1259, %v1255
    %v1508 = vpack.c.b16 %v1260, %v1256
    %v1509 = vpack.c.b16 %v1261, %v1257
    %v1510 = vpack.c.b16 %v1262, %v1258
    %v1511 = vpack.c.b16 %v1267, %v1263
    %v1512 = vpack.c.b16 %v1268, %v1264
    %v1513 = vpack.c.b16 %v1269, %v1265
    %v1514 = vpack.c.b16 %v1270, %v1266
    %v1515 = vpack.c.b16 %v1275, %v1271
    %v1516 = vpack.c.b16 %v1276, %v1272
    %v1517 = vpack.c.b16 %v1277, %v1273
    %v1518 = vpack.c.b16 %v1278, %v1274
    %v1519 = vpack.c.b16 %v1283, %v1279
    %v1520 = vpack.c.b16 %v1284, %v1280
    %v1521 = vpack.c.b16 %v1285, %v1281
    %v1522 = vpack.c.b16 %v1286, %v1282
    %v1523 = vpack.c.b16 %v1291, %v1287
    %v1524 = vpack.c.b16 %v1292, %v1288
    %v1525 = vpack.c.b16 %v1293, %v1289
    %v1526 = vpack.c.b16 %v1294, %v1290
    %v1527 = vpack.c.b16 %v1299, %v1295
    %v1528 = vpack.c.b16 %v1300, %v1296
    %v1529 = vpack.c.b16 %v1301, %v1297
    %v1530 = vpack.c.b16 %v1302, %v1298
    %v1531 = vpack.c.b16 %v1307, %v1303
    %v1532 = vpack.c.b16 %v1308, %v1304
    %v1533 = vpack.c.b16 %v1309, %v1305
    %v1534 = vpack.c.b16 %v1310, %v1306
    %1759 = vmatprep.subr.bf16.mxu0 %v1340
    %1760 = vmatpush1.bf16.msra.mxu0 %v1339
    %1761 = vmatprep.subr.bf16.mxu0 %v1336
    %1762 = vmatpush1.bf16.msra.mxu0 %v1335
    %1763 = vmatprep.subr.bf16.mxu0 %v1332
    %1764 = vmatpush1.bf16.msra.mxu0 %v1331
    %1765 = vmatprep.subr.bf16.mxu0 %v1328
    %1766 = vmatpush1.bf16.msra.mxu0 %v1327
    %1767 = vmatprep.subr.bf16.mxu0 %v1324
    %1768 = vmatpush1.bf16.msra.mxu0 %v1323
    %1769 = vmatprep.subr.bf16.mxu0 %v1320
    %1770 = vmatpush1.bf16.msra.mxu0 %v1319
    %1771 = vmatprep.subr.bf16.mxu0 %v1316
    %1772 = vmatpush1.bf16.msra.mxu0 %v1315
    %1773 = vmatprep.subr.bf16.mxu0 %v1312
    %1774 = vmatpush1.bf16.msra.mxu0 %v1311
    %1775 = vmatprep.subr.bf16.mxu0 %v1372
    %1776 = vmatpush2.bf16.msra.mxu0 %v1371
    %1777 = vmatprep.subr.bf16.mxu0 %v1368
    %1778 = vmatpush2.bf16.msra.mxu0 %v1367
    %1779 = vmatprep.subr.bf16.mxu0 %v1364
    %1780 = vmatpush2.bf16.msra.mxu0 %v1363
    %1781 = vmatprep.subr.bf16.mxu0 %v1360
    %1782 = vmatpush2.bf16.msra.mxu0 %v1359
    %1783 = vmatprep.subr.bf16.mxu0 %v1356
    %1784 = vmatpush2.bf16.msra.mxu0 %v1355
    %1785 = vmatprep.subr.bf16.mxu0 %v1352
    %1786 = vmatpush2.bf16.msra.mxu0 %v1351
    %1787 = vmatprep.subr.bf16.mxu0 %v1348
    %1788 = vmatpush2.bf16.msra.mxu0 %v1347
    %1789 = vmatprep.subr.bf16.mxu0 %v1344
    %1790 = vmatpush2.bf16.msra.mxu0 %v1343
    %1791 = vmatprep.mubr.bf16.mxu0 %v528
    %1792 = vmatmul.mubr.bf16.gmra.mxu0 %v527
    %v1793 = vpop.f32.mrf.mxu0
    %v1794 = vadd.f32 %v334, %v1793
    %v1795 = vpop.f32.mrf.mxu0
    %v1796 = vadd.f32 %v338, %v1795
    %v1797 = vpop.f32.mrf.mxu0
    %v1798 = vadd.f32 %v334, %v1797
    %v1799 = vpop.f32.mrf.mxu0
    %v1800 = vadd.f32 %v338, %v1799
    %1801 = vmatprep.mubr.bf16.mxu0 %v535
    %1802 = vmatmul.mubr.bf16.gmra.mxu0 %v534
    %v1803 = vpop.f32.mrf.mxu0
    %v1804 = vadd.f32 %v334, %v1803
    %v1805 = vpop.f32.mrf.mxu0
    %v1806 = vadd.f32 %v338, %v1805
    %v1807 = vpop.f32.mrf.mxu0
    %v1808 = vadd.f32 %v334, %v1807
    %v1809 = vpop.f32.mrf.mxu0
    %v1810 = vadd.f32 %v338, %v1809
    %1811 = vmatprep.mubr.bf16.mxu0 %v542
    %1812 = vmatmul.mubr.bf16.gmra.mxu0 %v541
    %v1813 = vpop.f32.mrf.mxu0
    %v1814 = vadd.f32 %v334, %v1813
    %v1815 = vpop.f32.mrf.mxu0
    %v1816 = vadd.f32 %v338, %v1815
    %v1817 = vpop.f32.mrf.mxu0
    %v1818 = vadd.f32 %v334, %v1817
    %v1819 = vpop.f32.mrf.mxu0
    %v1820 = vadd.f32 %v338, %v1819
    %1821 = vmatprep.mubr.bf16.mxu0 %v549
    %1822 = vmatmul.mubr.bf16.gmra.mxu0 %v548
    %v1823 = vpop.f32.mrf.mxu0
    %v1824 = vadd.f32 %v334, %v1823
    %v1825 = vpop.f32.mrf.mxu0
    %v1826 = vadd.f32 %v338, %v1825
    %v1827 = vpop.f32.mrf.mxu0
    %v1828 = vadd.f32 %v334, %v1827
    %v1829 = vpop.f32.mrf.mxu0
    %v1830 = vadd.f32 %v338, %v1829
    %1831 = vmatprep.mubr.bf16.mxu0 %v556
    %1832 = vmatmul.mubr.bf16.gmra.mxu0 %v555
    %v1833 = vpop.f32.mrf.mxu0
    %v1834 = vadd.f32 %v334, %v1833
    %v1835 = vpop.f32.mrf.mxu0
    %v1836 = vadd.f32 %v338, %v1835
    %v1837 = vpop.f32.mrf.mxu0
    %v1838 = vadd.f32 %v334, %v1837
    %v1839 = vpop.f32.mrf.mxu0
    %v1840 = vadd.f32 %v338, %v1839
    %1841 = vmatprep.mubr.bf16.mxu0 %v563
    %1842 = vmatmul.mubr.bf16.gmra.mxu0 %v562
    %v1843 = vpop.f32.mrf.mxu0
    %v1844 = vadd.f32 %v334, %v1843
    %v1845 = vpop.f32.mrf.mxu0
    %v1846 = vadd.f32 %v338, %v1845
    %v1847 = vpop.f32.mrf.mxu0
    %v1848 = vadd.f32 %v334, %v1847
    %v1849 = vpop.f32.mrf.mxu0
    %v1850 = vadd.f32 %v338, %v1849
    %1851 = vmatprep.mubr.bf16.mxu0 %v570
    %1852 = vmatmul.mubr.bf16.gmra.mxu0 %v569
    %v1853 = vpop.f32.mrf.mxu0
    %v1854 = vadd.f32 %v334, %v1853
    %v1855 = vpop.f32.mrf.mxu0
    %v1856 = vadd.f32 %v338, %v1855
    %v1857 = vpop.f32.mrf.mxu0
    %v1858 = vadd.f32 %v334, %v1857
    %v1859 = vpop.f32.mrf.mxu0
    %v1860 = vadd.f32 %v338, %v1859
    %1861 = vmatprep.mubr.bf16.mxu0 %v577
    %1862 = vmatmul.mubr.bf16.gmra.mxu0 %v576
    %v1863 = vpop.f32.mrf.mxu0
    %v1864 = vadd.f32 %v334, %v1863
    %v1865 = vpop.f32.mrf.mxu0
    %v1866 = vadd.f32 %v338, %v1865
    %v1867 = vpop.f32.mrf.mxu0
    %v1868 = vadd.f32 %v334, %v1867
    %v1869 = vpop.f32.mrf.mxu0
    %v1870 = vadd.f32 %v338, %v1869
    %1871 = vdwg.mxu0
    %1872 = vmatprep.subr.bf16.mxu0 %v1404
    %1873 = vmatpush1.bf16.msra.mxu0 %v1403
    %1874 = vmatprep.subr.bf16.mxu0 %v1400
    %1875 = vmatpush1.bf16.msra.mxu0 %v1399
    %1876 = vmatprep.subr.bf16.mxu0 %v1396
    %1877 = vmatpush1.bf16.msra.mxu0 %v1395
    %1878 = vmatprep.subr.bf16.mxu0 %v1392
    %1879 = vmatpush1.bf16.msra.mxu0 %v1391
    %1880 = vmatprep.subr.bf16.mxu0 %v1388
    %1881 = vmatpush1.bf16.msra.mxu0 %v1387
    %1882 = vmatprep.subr.bf16.mxu0 %v1384
    %1883 = vmatpush1.bf16.msra.mxu0 %v1383
    %1884 = vmatprep.subr.bf16.mxu0 %v1380
    %1885 = vmatpush1.bf16.msra.mxu0 %v1379
    %1886 = vmatprep.subr.bf16.mxu0 %v1376
    %1887 = vmatpush1.bf16.msra.mxu0 %v1375
    %1888 = vmatprep.subr.bf16.mxu0 %v1436
    %1889 = vmatpush2.bf16.msra.mxu0 %v1435
    %1890 = vmatprep.subr.bf16.mxu0 %v1432
    %1891 = vmatpush2.bf16.msra.mxu0 %v1431
    %1892 = vmatprep.subr.bf16.mxu0 %v1428
    %1893 = vmatpush2.bf16.msra.mxu0 %v1427
    %1894 = vmatprep.subr.bf16.mxu0 %v1424
    %1895 = vmatpush2.bf16.msra.mxu0 %v1423
    %1896 = vmatprep.subr.bf16.mxu0 %v1420
    %1897 = vmatpush2.bf16.msra.mxu0 %v1419
    %1898 = vmatprep.subr.bf16.mxu0 %v1416
    %1899 = vmatpush2.bf16.msra.mxu0 %v1415
    %1900 = vmatprep.subr.bf16.mxu0 %v1412
    %1901 = vmatpush2.bf16.msra.mxu0 %v1411
    %1902 = vmatprep.subr.bf16.mxu0 %v1408
    %1903 = vmatpush2.bf16.msra.mxu0 %v1407
    %1904 = vmatprep.mubr.bf16.mxu0 %v530
    %1905 = vmatmul.mubr.bf16.gmra.mxu0 %v529
    %v1906 = vpop.f32.mrf.mxu0
    %v1907 = vadd.f32 %v1794, %v1906
    %v1908 = vpop.f32.mrf.mxu0
    %v1909 = vadd.f32 %v1796, %v1908
    %v1910 = vpop.f32.mrf.mxu0
    %v1911 = vadd.f32 %v1798, %v1910
    %v1912 = vpop.f32.mrf.mxu0
    %v1913 = vadd.f32 %v1800, %v1912
    %1914 = vmatprep.mubr.bf16.mxu0 %v537
    %1915 = vmatmul.mubr.bf16.gmra.mxu0 %v536
    %v1916 = vpop.f32.mrf.mxu0
    %v1917 = vadd.f32 %v1804, %v1916
    %v1918 = vpop.f32.mrf.mxu0
    %v1919 = vadd.f32 %v1806, %v1918
    %v1920 = vpop.f32.mrf.mxu0
    %v1921 = vadd.f32 %v1808, %v1920
    %v1922 = vpop.f32.mrf.mxu0
    %v1923 = vadd.f32 %v1810, %v1922
    %1924 = vmatprep.mubr.bf16.mxu0 %v544
    %1925 = vmatmul.mubr.bf16.gmra.mxu0 %v543
    %v1926 = vpop.f32.mrf.mxu0
    %v1927 = vadd.f32 %v1814, %v1926
    %v1928 = vpop.f32.mrf.mxu0
    %v1929 = vadd.f32 %v1816, %v1928
    %v1930 = vpop.f32.mrf.mxu0
    %v1931 = vadd.f32 %v1818, %v1930
    %v1932 = vpop.f32.mrf.mxu0
    %v1933 = vadd.f32 %v1820, %v1932
    %1934 = vmatprep.mubr.bf16.mxu0 %v551
    %1935 = vmatmul.mubr.bf16.gmra.mxu0 %v550
    %v1936 = vpop.f32.mrf.mxu0
    %v1937 = vadd.f32 %v1824, %v1936
    %v1938 = vpop.f32.mrf.mxu0
    %v1939 = vadd.f32 %v1826, %v1938
    %v1940 = vpop.f32.mrf.mxu0
    %v1941 = vadd.f32 %v1828, %v1940
    %v1942 = vpop.f32.mrf.mxu0
    %v1943 = vadd.f32 %v1830, %v1942
    %1944 = vmatprep.mubr.bf16.mxu0 %v558
    %1945 = vmatmul.mubr.bf16.gmra.mxu0 %v557
    %v1946 = vpop.f32.mrf.mxu0
    %v1947 = vadd.f32 %v1834, %v1946
    %v1948 = vpop.f32.mrf.mxu0
    %v1949 = vadd.f32 %v1836, %v1948
    %v1950 = vpop.f32.mrf.mxu0
    %v1951 = vadd.f32 %v1838, %v1950
    %v1952 = vpop.f32.mrf.mxu0
    %v1953 = vadd.f32 %v1840, %v1952
    %1954 = vmatprep.mubr.bf16.mxu0 %v565
    %1955 = vmatmul.mubr.bf16.gmra.mxu0 %v564
    %v1956 = vpop.f32.mrf.mxu0
    %v1957 = vadd.f32 %v1844, %v1956
    %v1958 = vpop.f32.mrf.mxu0
    %v1959 = vadd.f32 %v1846, %v1958
    %v1960 = vpop.f32.mrf.mxu0
    %v1961 = vadd.f32 %v1848, %v1960
    %v1962 = vpop.f32.mrf.mxu0
    %v1963 = vadd.f32 %v1850, %v1962
    %1964 = vmatprep.mubr.bf16.mxu0 %v572
    %1965 = vmatmul.mubr.bf16.gmra.mxu0 %v571
    %v1966 = vpop.f32.mrf.mxu0
    %v1967 = vadd.f32 %v1854, %v1966
    %v1968 = vpop.f32.mrf.mxu0
    %v1969 = vadd.f32 %v1856, %v1968
    %v1970 = vpop.f32.mrf.mxu0
    %v1971 = vadd.f32 %v1858, %v1970
    %v1972 = vpop.f32.mrf.mxu0
    %v1973 = vadd.f32 %v1860, %v1972
    %1974 = vmatprep.mubr.bf16.mxu0 %v579
    %1975 = vmatmul.mubr.bf16.gmra.mxu0 %v578
    %v1976 = vpop.f32.mrf.mxu0
    %v1977 = vadd.f32 %v1864, %v1976
    %v1978 = vpop.f32.mrf.mxu0
    %v1979 = vadd.f32 %v1866, %v1978
    %v1980 = vpop.f32.mrf.mxu0
    %v1981 = vadd.f32 %v1868, %v1980
    %v1982 = vpop.f32.mrf.mxu0
    %v1983 = vadd.f32 %v1870, %v1982
    %1984 = vdwg.mxu0
    %1985 = vmatprep.subr.bf16.mxu0 %v1468
    %1986 = vmatpush1.bf16.msra.mxu0 %v1467
    %1987 = vmatprep.subr.bf16.mxu0 %v1464
    %1988 = vmatpush1.bf16.msra.mxu0 %v1463
    %1989 = vmatprep.subr.bf16.mxu0 %v1460
    %1990 = vmatpush1.bf16.msra.mxu0 %v1459
    %1991 = vmatprep.subr.bf16.mxu0 %v1456
    %1992 = vmatpush1.bf16.msra.mxu0 %v1455
    %1993 = vmatprep.subr.bf16.mxu0 %v1452
    %1994 = vmatpush1.bf16.msra.mxu0 %v1451
    %1995 = vmatprep.subr.bf16.mxu0 %v1448
    %1996 = vmatpush1.bf16.msra.mxu0 %v1447
    %1997 = vmatprep.subr.bf16.mxu0 %v1444
    %1998 = vmatpush1.bf16.msra.mxu0 %v1443
    %1999 = vmatprep.subr.bf16.mxu0 %v1440
    %2000 = vmatpush1.bf16.msra.mxu0 %v1439
    %2001 = vmatprep.subr.bf16.mxu0 %v1500
    %2002 = vmatpush2.bf16.msra.mxu0 %v1499
    %2003 = vmatprep.subr.bf16.mxu0 %v1496
    %2004 = vmatpush2.bf16.msra.mxu0 %v1495
    %2005 = vmatprep.subr.bf16.mxu0 %v1492
    %2006 = vmatpush2.bf16.msra.mxu0 %v1491
    %2007 = vmatprep.subr.bf16.mxu0 %v1488
    %2008 = vmatpush2.bf16.msra.mxu0 %v1487
    %2009 = vmatprep.subr.bf16.mxu0 %v1484
    %2010 = vmatpush2.bf16.msra.mxu0 %v1483
    %2011 = vmatprep.subr.bf16.mxu0 %v1480
    %2012 = vmatpush2.bf16.msra.mxu0 %v1479
    %2013 = vmatprep.subr.bf16.mxu0 %v1476
    %2014 = vmatpush2.bf16.msra.mxu0 %v1475
    %2015 = vmatprep.subr.bf16.mxu0 %v1472
    %2016 = vmatpush2.bf16.msra.mxu0 %v1471
    %2017 = vmatprep.mubr.bf16.mxu0 %v532
    %2018 = vmatmul.mubr.bf16.gmra.mxu0 %v531
    %v2019 = vpop.f32.mrf.mxu0
    %v2020 = vadd.f32 %v1907, %v2019
    %v2021 = vpop.f32.mrf.mxu0
    %v2022 = vadd.f32 %v1909, %v2021
    %v2023 = vpop.f32.mrf.mxu0
    %v2024 = vadd.f32 %v1911, %v2023
    %v2025 = vpop.f32.mrf.mxu0
    %v2026 = vadd.f32 %v1913, %v2025
    %2027 = vmatprep.mubr.bf16.mxu0 %v539
    %2028 = vmatmul.mubr.bf16.gmra.mxu0 %v538
    %v2029 = vpop.f32.mrf.mxu0
    %v2030 = vadd.f32 %v1917, %v2029
    %v2031 = vpop.f32.mrf.mxu0
    %v2032 = vadd.f32 %v1919, %v2031
    %v2033 = vpop.f32.mrf.mxu0
    %v2034 = vadd.f32 %v1921, %v2033
    %v2035 = vpop.f32.mrf.mxu0
    %v2036 = vadd.f32 %v1923, %v2035
    %2037 = vmatprep.mubr.bf16.mxu0 %v546
    %2038 = vmatmul.mubr.bf16.gmra.mxu0 %v545
    %v2039 = vpop.f32.mrf.mxu0
    %v2040 = vadd.f32 %v1927, %v2039
    %v2041 = vpop.f32.mrf.mxu0
    %v2042 = vadd.f32 %v1929, %v2041
    %v2043 = vpop.f32.mrf.mxu0
    %v2044 = vadd.f32 %v1931, %v2043
    %v2045 = vpop.f32.mrf.mxu0
    %v2046 = vadd.f32 %v1933, %v2045
    %2047 = vmatprep.mubr.bf16.mxu0 %v553
    %2048 = vmatmul.mubr.bf16.gmra.mxu0 %v552
    %v2049 = vpop.f32.mrf.mxu0
    %v2050 = vadd.f32 %v1937, %v2049
    %v2051 = vpop.f32.mrf.mxu0
    %v2052 = vadd.f32 %v1939, %v2051
    %v2053 = vpop.f32.mrf.mxu0
    %v2054 = vadd.f32 %v1941, %v2053
    %v2055 = vpop.f32.mrf.mxu0
    %v2056 = vadd.f32 %v1943, %v2055
    %2057 = vmatprep.mubr.bf16.mxu0 %v560
    %2058 = vmatmul.mubr.bf16.gmra.mxu0 %v559
    %v2059 = vpop.f32.mrf.mxu0
    %v2060 = vadd.f32 %v1947, %v2059
    %v2061 = vpop.f32.mrf.mxu0
    %v2062 = vadd.f32 %v1949, %v2061
    %v2063 = vpop.f32.mrf.mxu0
    %v2064 = vadd.f32 %v1951, %v2063
    %v2065 = vpop.f32.mrf.mxu0
    %v2066 = vadd.f32 %v1953, %v2065
    %2067 = vmatprep.mubr.bf16.mxu0 %v567
    %2068 = vmatmul.mubr.bf16.gmra.mxu0 %v566
    %v2069 = vpop.f32.mrf.mxu0
    %v2070 = vadd.f32 %v1957, %v2069
    %v2071 = vpop.f32.mrf.mxu0
    %v2072 = vadd.f32 %v1959, %v2071
    %v2073 = vpop.f32.mrf.mxu0
    %v2074 = vadd.f32 %v1961, %v2073
    %v2075 = vpop.f32.mrf.mxu0
    %v2076 = vadd.f32 %v1963, %v2075
    %2077 = vmatprep.mubr.bf16.mxu0 %v574
    %2078 = vmatmul.mubr.bf16.gmra.mxu0 %v573
    %v2079 = vpop.f32.mrf.mxu0
    %v2080 = vadd.f32 %v1967, %v2079
    %v2081 = vpop.f32.mrf.mxu0
    %v2082 = vadd.f32 %v1969, %v2081
    %v2083 = vpop.f32.mrf.mxu0
    %v2084 = vadd.f32 %v1971, %v2083
    %v2085 = vpop.f32.mrf.mxu0
    %v2086 = vadd.f32 %v1973, %v2085
    %2087 = vmatprep.mubr.bf16.mxu0 %v581
    %2088 = vmatmul.mubr.bf16.gmra.mxu0 %v580
    %v2089 = vpop.f32.mrf.mxu0
    %v2090 = vadd.f32 %v1977, %v2089
    %v2091 = vpop.f32.mrf.mxu0
    %v2092 = vadd.f32 %v1979, %v2091
    %v2093 = vpop.f32.mrf.mxu0
    %v2094 = vadd.f32 %v1981, %v2093
    %v2095 = vpop.f32.mrf.mxu0
    %v2096 = vadd.f32 %v1983, %v2095
    %2097 = vdwg.mxu0
    %2098 = vmatprep.subr.bf16.mxu0 %v1532
    %2099 = vmatpush1.bf16.msra.mxu0 %v1531
    %2100 = vmatprep.subr.bf16.mxu0 %v1528
    %2101 = vmatpush1.bf16.msra.mxu0 %v1527
    %2102 = vmatprep.subr.bf16.mxu0 %v1524
    %2103 = vmatpush1.bf16.msra.mxu0 %v1523
    %2104 = vmatprep.subr.bf16.mxu0 %v1520
    %2105 = vmatpush1.bf16.msra.mxu0 %v1519
    %2106 = vmatprep.subr.bf16.mxu0 %v1516
    %2107 = vmatpush1.bf16.msra.mxu0 %v1515
    %2108 = vmatprep.subr.bf16.mxu0 %v1512
    %2109 = vmatpush1.bf16.msra.mxu0 %v1511
    %2110 = vmatprep.subr.bf16.mxu0 %v1508
    %2111 = vmatpush1.bf16.msra.mxu0 %v1507
    %2112 = vmatprep.subr.bf16.mxu0 %v1504
    %2113 = vmatpush1.bf16.msra.mxu0 %v1503
    %2114 = vmatprep.subr.bf16.mxu0 0
    %2115 = vmatpush2.bf16.msra.mxu0 0
    %2116 = vmatprep.subr.bf16.mxu0 0
    %2117 = vmatpush2.bf16.msra.mxu0 0
    %2118 = vmatprep.subr.bf16.mxu0 0
    %2119 = vmatpush2.bf16.msra.mxu0 0
    %2120 = vmatprep.subr.bf16.mxu0 0
    %2121 = vmatpush2.bf16.msra.mxu0 0
    %2122 = vmatprep.subr.bf16.mxu0 0
    %2123 = vmatpush2.bf16.msra.mxu0 0
    %2124 = vmatprep.subr.bf16.mxu0 0
    %2125 = vmatpush2.bf16.msra.mxu0 0
    %2126 = vmatprep.subr.bf16.mxu0 0
    %2127 = vmatpush2.bf16.msra.mxu0 0
    %2128 = vmatprep.subr.bf16.mxu0 0
    %2129 = vmatpush2.bf16.msra.mxu0 0
    %2130 = vmatprep.mubr.bf16.mxu0 0
    %2131 = vmatmul.mubr.bf16.gmra.mxu0 %v533
    %v2132 = vpop.f32.mrf.mxu0
    %v2133 = vadd.f32 %v2020, %v2132
    %v2134 = vpop.f32.mrf.mxu0
    %v2135 = vadd.f32 %v2022, %v2134
    %v2136 = vpop.f32.mrf.mxu0
    %v2137 = vadd.f32 %v2024, %v2136
    %v2138 = vpop.f32.mrf.mxu0
    %v2139 = vadd.f32 %v2026, %v2138
    %2140 = vmatprep.mubr.bf16.mxu0 0
    %2141 = vmatmul.mubr.bf16.gmra.mxu0 %v540
    %v2142 = vpop.f32.mrf.mxu0
    %v2143 = vadd.f32 %v2030, %v2142
    %v2144 = vpop.f32.mrf.mxu0
    %v2145 = vadd.f32 %v2032, %v2144
    %v2146 = vpop.f32.mrf.mxu0
    %v2147 = vadd.f32 %v2034, %v2146
    %v2148 = vpop.f32.mrf.mxu0
    %v2149 = vadd.f32 %v2036, %v2148
    %2150 = vmatprep.mubr.bf16.mxu0 0
    %2151 = vmatmul.mubr.bf16.gmra.mxu0 %v547
    %v2152 = vpop.f32.mrf.mxu0
    %v2153 = vadd.f32 %v2040, %v2152
    %v2154 = vpop.f32.mrf.mxu0
    %v2155 = vadd.f32 %v2042, %v2154
    %v2156 = vpop.f32.mrf.mxu0
    %v2157 = vadd.f32 %v2044, %v2156
    %v2158 = vpop.f32.mrf.mxu0
    %v2159 = vadd.f32 %v2046, %v2158
    %2160 = vmatprep.mubr.bf16.mxu0 0
    %2161 = vmatmul.mubr.bf16.gmra.mxu0 %v554
    %v2162 = vpop.f32.mrf.mxu0
    %v2163 = vadd.f32 %v2050, %v2162
    %v2164 = vpop.f32.mrf.mxu0
    %v2165 = vadd.f32 %v2052, %v2164
    %v2166 = vpop.f32.mrf.mxu0
    %v2167 = vadd.f32 %v2054, %v2166
    %v2168 = vpop.f32.mrf.mxu0
    %v2169 = vadd.f32 %v2056, %v2168
    %2170 = vmatprep.mubr.bf16.mxu0 0
    %2171 = vmatmul.mubr.bf16.gmra.mxu0 %v561
    %v2172 = vpop.f32.mrf.mxu0
    %v2173 = vadd.f32 %v2060, %v2172
    %v2174 = vpop.f32.mrf.mxu0
    %v2175 = vadd.f32 %v2062, %v2174
    %v2176 = vpop.f32.mrf.mxu0
    %v2177 = vadd.f32 %v2064, %v2176
    %v2178 = vpop.f32.mrf.mxu0
    %v2179 = vadd.f32 %v2066, %v2178
    %2180 = vmatprep.mubr.bf16.mxu0 0
    %2181 = vmatmul.mubr.bf16.gmra.mxu0 %v568
    %v2182 = vpop.f32.mrf.mxu0
    %v2183 = vadd.f32 %v2070, %v2182
    %v2184 = vpop.f32.mrf.mxu0
    %v2185 = vadd.f32 %v2072, %v2184
    %v2186 = vpop.f32.mrf.mxu0
    %v2187 = vadd.f32 %v2074, %v2186
    %v2188 = vpop.f32.mrf.mxu0
    %v2189 = vadd.f32 %v2076, %v2188
    %2190 = vmatprep.mubr.bf16.mxu0 0
    %2191 = vmatmul.mubr.bf16.gmra.mxu0 %v575
    %v2192 = vpop.f32.mrf.mxu0
    %v2193 = vadd.f32 %v2080, %v2192
    %v2194 = vpop.f32.mrf.mxu0
    %v2195 = vadd.f32 %v2082, %v2194
    %v2196 = vpop.f32.mrf.mxu0
    %v2197 = vadd.f32 %v2084, %v2196
    %v2198 = vpop.f32.mrf.mxu0
    %v2199 = vadd.f32 %v2086, %v2198
    %2200 = vmatprep.mubr.bf16.mxu0 0
    %2201 = vmatmul.mubr.bf16.gmra.mxu0 %v582
    %v2202 = vpop.f32.mrf.mxu0
    %v2203 = vadd.f32 %v2090, %v2202
    %v2204 = vpop.f32.mrf.mxu0
    %v2205 = vadd.f32 %v2092, %v2204
    %v2206 = vpop.f32.mrf.mxu0
    %v2207 = vadd.f32 %v2094, %v2206
    %v2208 = vpop.f32.mrf.mxu0
    %v2209 = vadd.f32 %v2096, %v2208
    %2210 = vdwg.mxu0
    %2211 = vmatprep.subr.bf16.mxu0 %v1342
    %2212 = vmatpush1.bf16.msra.mxu0 %v1341
    %2213 = vmatprep.subr.bf16.mxu0 %v1338
    %2214 = vmatpush1.bf16.msra.mxu0 %v1337
    %2215 = vmatprep.subr.bf16.mxu0 %v1334
    %2216 = vmatpush1.bf16.msra.mxu0 %v1333
    %2217 = vmatprep.subr.bf16.mxu0 %v1330
    %2218 = vmatpush1.bf16.msra.mxu0 %v1329
    %2219 = vmatprep.subr.bf16.mxu0 %v1326
    %2220 = vmatpush1.bf16.msra.mxu0 %v1325
    %2221 = vmatprep.subr.bf16.mxu0 %v1322
    %2222 = vmatpush1.bf16.msra.mxu0 %v1321
    %2223 = vmatprep.subr.bf16.mxu0 %v1318
    %2224 = vmatpush1.bf16.msra.mxu0 %v1317
    %2225 = vmatprep.subr.bf16.mxu0 %v1314
    %2226 = vmatpush1.bf16.msra.mxu0 %v1313
    %2227 = vmatprep.subr.bf16.mxu0 %v1374
    %2228 = vmatpush2.bf16.msra.mxu0 %v1373
    %2229 = vmatprep.subr.bf16.mxu0 %v1370
    %2230 = vmatpush2.bf16.msra.mxu0 %v1369
    %2231 = vmatprep.subr.bf16.mxu0 %v1366
    %2232 = vmatpush2.bf16.msra.mxu0 %v1365
    %2233 = vmatprep.subr.bf16.mxu0 %v1362
    %2234 = vmatpush2.bf16.msra.mxu0 %v1361
    %2235 = vmatprep.subr.bf16.mxu0 %v1358
    %2236 = vmatpush2.bf16.msra.mxu0 %v1357
    %2237 = vmatprep.subr.bf16.mxu0 %v1354
    %2238 = vmatpush2.bf16.msra.mxu0 %v1353
    %2239 = vmatprep.subr.bf16.mxu0 %v1350
    %2240 = vmatpush2.bf16.msra.mxu0 %v1349
    %2241 = vmatprep.subr.bf16.mxu0 %v1346
    %2242 = vmatpush2.bf16.msra.mxu0 %v1345
    %2243 = vmatprep.mubr.bf16.mxu0 %v528
    %2244 = vmatmul.mubr.bf16.gmra.mxu0 %v527
    %v2245 = vpop.f32.mrf.mxu0
    %v2246 = vadd.f32 %v342, %v2245
    %v2247 = vpop.f32.mrf.mxu0
    %v2248 = vadd.f32 %v346, %v2247
    %v2249 = vpop.f32.mrf.mxu0
    %v2250 = vadd.f32 %v342, %v2249
    %v2251 = vpop.f32.mrf.mxu0
    %v2252 = vadd.f32 %v346, %v2251
    %2253 = vmatprep.mubr.bf16.mxu0 %v535
    %2254 = vmatmul.mubr.bf16.gmra.mxu0 %v534
    %v2255 = vpop.f32.mrf.mxu0
    %v2256 = vadd.f32 %v342, %v2255
    %v2257 = vpop.f32.mrf.mxu0
    %v2258 = vadd.f32 %v346, %v2257
    %v2259 = vpop.f32.mrf.mxu0
    %v2260 = vadd.f32 %v342, %v2259
    %v2261 = vpop.f32.mrf.mxu0
    %v2262 = vadd.f32 %v346, %v2261
    %2263 = vmatprep.mubr.bf16.mxu0 %v542
    %2264 = vmatmul.mubr.bf16.gmra.mxu0 %v541
    %v2265 = vpop.f32.mrf.mxu0
    %v2266 = vadd.f32 %v342, %v2265
    %v2267 = vpop.f32.mrf.mxu0
    %v2268 = vadd.f32 %v346, %v2267
    %v2269 = vpop.f32.mrf.mxu0
    %v2270 = vadd.f32 %v342, %v2269
    %v2271 = vpop.f32.mrf.mxu0
    %v2272 = vadd.f32 %v346, %v2271
    %2273 = vmatprep.mubr.bf16.mxu0 %v549
    %2274 = vmatmul.mubr.bf16.gmra.mxu0 %v548
    %v2275 = vpop.f32.mrf.mxu0
    %v2276 = vadd.f32 %v342, %v2275
    %v2277 = vpop.f32.mrf.mxu0
    %v2278 = vadd.f32 %v346, %v2277
    %v2279 = vpop.f32.mrf.mxu0
    %v2280 = vadd.f32 %v342, %v2279
    %v2281 = vpop.f32.mrf.mxu0
    %v2282 = vadd.f32 %v346, %v2281
    %2283 = vmatprep.mubr.bf16.mxu0 %v556
    %2284 = vmatmul.mubr.bf16.gmra.mxu0 %v555
    %v2285 = vpop.f32.mrf.mxu0
    %v2286 = vadd.f32 %v342, %v2285
    %v2287 = vpop.f32.mrf.mxu0
    %v2288 = vadd.f32 %v346, %v2287
    %v2289 = vpop.f32.mrf.mxu0
    %v2290 = vadd.f32 %v342, %v2289
    %v2291 = vpop.f32.mrf.mxu0
    %v2292 = vadd.f32 %v346, %v2291
    %2293 = vmatprep.mubr.bf16.mxu0 %v563
    %2294 = vmatmul.mubr.bf16.gmra.mxu0 %v562
    %v2295 = vpop.f32.mrf.mxu0
    %v2296 = vadd.f32 %v342, %v2295
    %v2297 = vpop.f32.mrf.mxu0
    %v2298 = vadd.f32 %v346, %v2297
    %v2299 = vpop.f32.mrf.mxu0
    %v2300 = vadd.f32 %v342, %v2299
    %v2301 = vpop.f32.mrf.mxu0
    %v2302 = vadd.f32 %v346, %v2301
    %2303 = vmatprep.mubr.bf16.mxu0 %v570
    %2304 = vmatmul.mubr.bf16.gmra.mxu0 %v569
    %v2305 = vpop.f32.mrf.mxu0
    %v2306 = vadd.f32 %v342, %v2305
    %v2307 = vpop.f32.mrf.mxu0
    %v2308 = vadd.f32 %v346, %v2307
    %v2309 = vpop.f32.mrf.mxu0
    %v2310 = vadd.f32 %v342, %v2309
    %v2311 = vpop.f32.mrf.mxu0
    %v2312 = vadd.f32 %v346, %v2311
    %2313 = vmatprep.mubr.bf16.mxu0 %v577
    %2314 = vmatmul.mubr.bf16.gmra.mxu0 %v576
    %v2315 = vpop.f32.mrf.mxu0
    %v2316 = vadd.f32 %v342, %v2315
    %v2317 = vpop.f32.mrf.mxu0
    %v2318 = vadd.f32 %v346, %v2317
    %v2319 = vpop.f32.mrf.mxu0
    %v2320 = vadd.f32 %v342, %v2319
    %v2321 = vpop.f32.mrf.mxu0
    %v2322 = vadd.f32 %v346, %v2321
    %2323 = vdwg.mxu0
    %2324 = vmatprep.subr.bf16.mxu0 %v1406
    %2325 = vmatpush1.bf16.msra.mxu0 %v1405
    %2326 = vmatprep.subr.bf16.mxu0 %v1402
    %2327 = vmatpush1.bf16.msra.mxu0 %v1401
    %2328 = vmatprep.subr.bf16.mxu0 %v1398
    %2329 = vmatpush1.bf16.msra.mxu0 %v1397
    %2330 = vmatprep.subr.bf16.mxu0 %v1394
    %2331 = vmatpush1.bf16.msra.mxu0 %v1393
    %2332 = vmatprep.subr.bf16.mxu0 %v1390
    %2333 = vmatpush1.bf16.msra.mxu0 %v1389
    %2334 = vmatprep.subr.bf16.mxu0 %v1386
    %2335 = vmatpush1.bf16.msra.mxu0 %v1385
    %2336 = vmatprep.subr.bf16.mxu0 %v1382
    %2337 = vmatpush1.bf16.msra.mxu0 %v1381
    %2338 = vmatprep.subr.bf16.mxu0 %v1378
    %2339 = vmatpush1.bf16.msra.mxu0 %v1377
    %2340 = vmatprep.subr.bf16.mxu0 %v1438
    %2341 = vmatpush2.bf16.msra.mxu0 %v1437
    %2342 = vmatprep.subr.bf16.mxu0 %v1434
    %2343 = vmatpush2.bf16.msra.mxu0 %v1433
    %2344 = vmatprep.subr.bf16.mxu0 %v1430
    %2345 = vmatpush2.bf16.msra.mxu0 %v1429
    %2346 = vmatprep.subr.bf16.mxu0 %v1426
    %2347 = vmatpush2.bf16.msra.mxu0 %v1425
    %2348 = vmatprep.subr.bf16.mxu0 %v1422
    %2349 = vmatpush2.bf16.msra.mxu0 %v1421
    %2350 = vmatprep.subr.bf16.mxu0 %v1418
    %2351 = vmatpush2.bf16.msra.mxu0 %v1417
    %2352 = vmatprep.subr.bf16.mxu0 %v1414
    %2353 = vmatpush2.bf16.msra.mxu0 %v1413
    %2354 = vmatprep.subr.bf16.mxu0 %v1410
    %2355 = vmatpush2.bf16.msra.mxu0 %v1409
    %2356 = vmatprep.mubr.bf16.mxu0 %v530
    %2357 = vmatmul.mubr.bf16.gmra.mxu0 %v529
    %v2358 = vpop.f32.mrf.mxu0
    %v2359 = vadd.f32 %v2246, %v2358
    %v2360 = vpop.f32.mrf.mxu0
    %v2361 = vadd.f32 %v2248, %v2360
    %v2362 = vpop.f32.mrf.mxu0
    %v2363 = vadd.f32 %v2250, %v2362
    %v2364 = vpop.f32.mrf.mxu0
    %v2365 = vadd.f32 %v2252, %v2364
    %2366 = vmatprep.mubr.bf16.mxu0 %v537
    %2367 = vmatmul.mubr.bf16.gmra.mxu0 %v536
    %v2368 = vpop.f32.mrf.mxu0
    %v2369 = vadd.f32 %v2256, %v2368
    %v2370 = vpop.f32.mrf.mxu0
    %v2371 = vadd.f32 %v2258, %v2370
    %v2372 = vpop.f32.mrf.mxu0
    %v2373 = vadd.f32 %v2260, %v2372
    %v2374 = vpop.f32.mrf.mxu0
    %v2375 = vadd.f32 %v2262, %v2374
    %2376 = vmatprep.mubr.bf16.mxu0 %v544
    %2377 = vmatmul.mubr.bf16.gmra.mxu0 %v543
    %v2378 = vpop.f32.mrf.mxu0
    %v2379 = vadd.f32 %v2266, %v2378
    %v2380 = vpop.f32.mrf.mxu0
    %v2381 = vadd.f32 %v2268, %v2380
    %v2382 = vpop.f32.mrf.mxu0
    %v2383 = vadd.f32 %v2270, %v2382
    %v2384 = vpop.f32.mrf.mxu0
    %v2385 = vadd.f32 %v2272, %v2384
    %2386 = vmatprep.mubr.bf16.mxu0 %v551
    %2387 = vmatmul.mubr.bf16.gmra.mxu0 %v550
    %v2388 = vpop.f32.mrf.mxu0
    %v2389 = vadd.f32 %v2276, %v2388
    %v2390 = vpop.f32.mrf.mxu0
    %v2391 = vadd.f32 %v2278, %v2390
    %v2392 = vpop.f32.mrf.mxu0
    %v2393 = vadd.f32 %v2280, %v2392
    %v2394 = vpop.f32.mrf.mxu0
    %v2395 = vadd.f32 %v2282, %v2394
    %2396 = vmatprep.mubr.bf16.mxu0 %v558
    %2397 = vmatmul.mubr.bf16.gmra.mxu0 %v557
    %v2398 = vpop.f32.mrf.mxu0
    %v2399 = vadd.f32 %v2286, %v2398
    %v2400 = vpop.f32.mrf.mxu0
    %v2401 = vadd.f32 %v2288, %v2400
    %v2402 = vpop.f32.mrf.mxu0
    %v2403 = vadd.f32 %v2290, %v2402
    %v2404 = vpop.f32.mrf.mxu0
    %v2405 = vadd.f32 %v2292, %v2404
    %2406 = vmatprep.mubr.bf16.mxu0 %v565
    %2407 = vmatmul.mubr.bf16.gmra.mxu0 %v564
    %v2408 = vpop.f32.mrf.mxu0
    %v2409 = vadd.f32 %v2296, %v2408
    %v2410 = vpop.f32.mrf.mxu0
    %v2411 = vadd.f32 %v2298, %v2410
    %v2412 = vpop.f32.mrf.mxu0
    %v2413 = vadd.f32 %v2300, %v2412
    %v2414 = vpop.f32.mrf.mxu0
    %v2415 = vadd.f32 %v2302, %v2414
    %2416 = vmatprep.mubr.bf16.mxu0 %v572
    %2417 = vmatmul.mubr.bf16.gmra.mxu0 %v571
    %v2418 = vpop.f32.mrf.mxu0
    %v2419 = vadd.f32 %v2306, %v2418
    %v2420 = vpop.f32.mrf.mxu0
    %v2421 = vadd.f32 %v2308, %v2420
    %v2422 = vpop.f32.mrf.mxu0
    %v2423 = vadd.f32 %v2310, %v2422
    %v2424 = vpop.f32.mrf.mxu0
    %v2425 = vadd.f32 %v2312, %v2424
    %2426 = vmatprep.mubr.bf16.mxu0 %v579
    %2427 = vmatmul.mubr.bf16.gmra.mxu0 %v578
    %v2428 = vpop.f32.mrf.mxu0
    %v2429 = vadd.f32 %v2316, %v2428
    %v2430 = vpop.f32.mrf.mxu0
    %v2431 = vadd.f32 %v2318, %v2430
    %v2432 = vpop.f32.mrf.mxu0
    %v2433 = vadd.f32 %v2320, %v2432
    %v2434 = vpop.f32.mrf.mxu0
    %v2435 = vadd.f32 %v2322, %v2434
    %2436 = vdwg.mxu0
    %2437 = vmatprep.subr.bf16.mxu0 %v1470
    %2438 = vmatpush1.bf16.msra.mxu0 %v1469
    %2439 = vmatprep.subr.bf16.mxu0 %v1466
    %2440 = vmatpush1.bf16.msra.mxu0 %v1465
    %2441 = vmatprep.subr.bf16.mxu0 %v1462
    %2442 = vmatpush1.bf16.msra.mxu0 %v1461
    %2443 = vmatprep.subr.bf16.mxu0 %v1458
    %2444 = vmatpush1.bf16.msra.mxu0 %v1457
    %2445 = vmatprep.subr.bf16.mxu0 %v1454
    %2446 = vmatpush1.bf16.msra.mxu0 %v1453
    %2447 = vmatprep.subr.bf16.mxu0 %v1450
    %2448 = vmatpush1.bf16.msra.mxu0 %v1449
    %2449 = vmatprep.subr.bf16.mxu0 %v1446
    %2450 = vmatpush1.bf16.msra.mxu0 %v1445
    %2451 = vmatprep.subr.bf16.mxu0 %v1442
    %2452 = vmatpush1.bf16.msra.mxu0 %v1441
    %2453 = vmatprep.subr.bf16.mxu0 %v1502
    %2454 = vmatpush2.bf16.msra.mxu0 %v1501
    %2455 = vmatprep.subr.bf16.mxu0 %v1498
    %2456 = vmatpush2.bf16.msra.mxu0 %v1497
    %2457 = vmatprep.subr.bf16.mxu0 %v1494
    %2458 = vmatpush2.bf16.msra.mxu0 %v1493
    %2459 = vmatprep.subr.bf16.mxu0 %v1490
    %2460 = vmatpush2.bf16.msra.mxu0 %v1489
    %2461 = vmatprep.subr.bf16.mxu0 %v1486
    %2462 = vmatpush2.bf16.msra.mxu0 %v1485
    %2463 = vmatprep.subr.bf16.mxu0 %v1482
    %2464 = vmatpush2.bf16.msra.mxu0 %v1481
    %2465 = vmatprep.subr.bf16.mxu0 %v1478
    %2466 = vmatpush2.bf16.msra.mxu0 %v1477
    %2467 = vmatprep.subr.bf16.mxu0 %v1474
    %2468 = vmatpush2.bf16.msra.mxu0 %v1473
    %2469 = vmatprep.mubr.bf16.mxu0 %v532
    %2470 = vmatmul.mubr.bf16.gmra.mxu0 %v531
    %v2471 = vpop.f32.mrf.mxu0
    %v2472 = vadd.f32 %v2359, %v2471
    %v2473 = vpop.f32.mrf.mxu0
    %v2474 = vadd.f32 %v2361, %v2473
    %v2475 = vpop.f32.mrf.mxu0
    %v2476 = vadd.f32 %v2363, %v2475
    %v2477 = vpop.f32.mrf.mxu0
    %v2478 = vadd.f32 %v2365, %v2477
    %2479 = vmatprep.mubr.bf16.mxu0 %v539
    %2480 = vmatmul.mubr.bf16.gmra.mxu0 %v538
    %v2481 = vpop.f32.mrf.mxu0
    %v2482 = vadd.f32 %v2369, %v2481
    %v2483 = vpop.f32.mrf.mxu0
    %v2484 = vadd.f32 %v2371, %v2483
    %v2485 = vpop.f32.mrf.mxu0
    %v2486 = vadd.f32 %v2373, %v2485
    %v2487 = vpop.f32.mrf.mxu0
    %v2488 = vadd.f32 %v2375, %v2487
    %2489 = vmatprep.mubr.bf16.mxu0 %v546
    %2490 = vmatmul.mubr.bf16.gmra.mxu0 %v545
    %v2491 = vpop.f32.mrf.mxu0
    %v2492 = vadd.f32 %v2379, %v2491
    %v2493 = vpop.f32.mrf.mxu0
    %v2494 = vadd.f32 %v2381, %v2493
    %v2495 = vpop.f32.mrf.mxu0
    %v2496 = vadd.f32 %v2383, %v2495
    %v2497 = vpop.f32.mrf.mxu0
    %v2498 = vadd.f32 %v2385, %v2497
    %2499 = vmatprep.mubr.bf16.mxu0 %v553
    %2500 = vmatmul.mubr.bf16.gmra.mxu0 %v552
    %v2501 = vpop.f32.mrf.mxu0
    %v2502 = vadd.f32 %v2389, %v2501
    %v2503 = vpop.f32.mrf.mxu0
    %v2504 = vadd.f32 %v2391, %v2503
    %v2505 = vpop.f32.mrf.mxu0
    %v2506 = vadd.f32 %v2393, %v2505
    %v2507 = vpop.f32.mrf.mxu0
    %v2508 = vadd.f32 %v2395, %v2507
    %2509 = vmatprep.mubr.bf16.mxu0 %v560
    %2510 = vmatmul.mubr.bf16.gmra.mxu0 %v559
    %v2511 = vpop.f32.mrf.mxu0
    %v2512 = vadd.f32 %v2399, %v2511
    %v2513 = vpop.f32.mrf.mxu0
    %v2514 = vadd.f32 %v2401, %v2513
    %v2515 = vpop.f32.mrf.mxu0
    %v2516 = vadd.f32 %v2403, %v2515
    %v2517 = vpop.f32.mrf.mxu0
    %v2518 = vadd.f32 %v2405, %v2517
    %2519 = vmatprep.mubr.bf16.mxu0 %v567
    %2520 = vmatmul.mubr.bf16.gmra.mxu0 %v566
    %v2521 = vpop.f32.mrf.mxu0
    %v2522 = vadd.f32 %v2409, %v2521
    %v2523 = vpop.f32.mrf.mxu0
    %v2524 = vadd.f32 %v2411, %v2523
    %v2525 = vpop.f32.mrf.mxu0
    %v2526 = vadd.f32 %v2413, %v2525
    %v2527 = vpop.f32.mrf.mxu0
    %v2528 = vadd.f32 %v2415, %v2527
    %2529 = vmatprep.mubr.bf16.mxu0 %v574
    %2530 = vmatmul.mubr.bf16.gmra.mxu0 %v573
    %v2531 = vpop.f32.mrf.mxu0
    %v2532 = vadd.f32 %v2419, %v2531
    %v2533 = vpop.f32.mrf.mxu0
    %v2534 = vadd.f32 %v2421, %v2533
    %v2535 = vpop.f32.mrf.mxu0
    %v2536 = vadd.f32 %v2423, %v2535
    %v2537 = vpop.f32.mrf.mxu0
    %v2538 = vadd.f32 %v2425, %v2537
    %2539 = vmatprep.mubr.bf16.mxu0 %v581
    %2540 = vmatmul.mubr.bf16.gmra.mxu0 %v580
    %v2541 = vpop.f32.mrf.mxu0
    %v2542 = vadd.f32 %v2429, %v2541
    %v2543 = vpop.f32.mrf.mxu0
    %v2544 = vadd.f32 %v2431, %v2543
    %v2545 = vpop.f32.mrf.mxu0
    %v2546 = vadd.f32 %v2433, %v2545
    %v2547 = vpop.f32.mrf.mxu0
    %v2548 = vadd.f32 %v2435, %v2547
    %2549 = vdwg.mxu0
    %2550 = vmatprep.subr.bf16.mxu0 %v1534
    %2551 = vmatpush1.bf16.msra.mxu0 %v1533
    %2552 = vmatprep.subr.bf16.mxu0 %v1530
    %2553 = vmatpush1.bf16.msra.mxu0 %v1529
    %2554 = vmatprep.subr.bf16.mxu0 %v1526
    %2555 = vmatpush1.bf16.msra.mxu0 %v1525
    %2556 = vmatprep.subr.bf16.mxu0 %v1522
    %2557 = vmatpush1.bf16.msra.mxu0 %v1521
    %2558 = vmatprep.subr.bf16.mxu0 %v1518
    %2559 = vmatpush1.bf16.msra.mxu0 %v1517
    %2560 = vmatprep.subr.bf16.mxu0 %v1514
    %2561 = vmatpush1.bf16.msra.mxu0 %v1513
    %2562 = vmatprep.subr.bf16.mxu0 %v1510
    %2563 = vmatpush1.bf16.msra.mxu0 %v1509
    %2564 = vmatprep.subr.bf16.mxu0 %v1506
    %2565 = vmatpush1.bf16.msra.mxu0 %v1505
    %2566 = vmatprep.subr.bf16.mxu0 0
    %2567 = vmatpush2.bf16.msra.mxu0 0
    %2568 = vmatprep.subr.bf16.mxu0 0
    %2569 = vmatpush2.bf16.msra.mxu0 0
    %2570 = vmatprep.subr.bf16.mxu0 0
    %2571 = vmatpush2.bf16.msra.mxu0 0
    %2572 = vmatprep.subr.bf16.mxu0 0
    %2573 = vmatpush2.bf16.msra.mxu0 0
    %2574 = vmatprep.subr.bf16.mxu0 0
    %2575 = vmatpush2.bf16.msra.mxu0 0
    %2576 = vmatprep.subr.bf16.mxu0 0
    %2577 = vmatpush2.bf16.msra.mxu0 0
    %2578 = vmatprep.subr.bf16.mxu0 0
    %2579 = vmatpush2.bf16.msra.mxu0 0
    %2580 = vmatprep.subr.bf16.mxu0 0
    %2581 = vmatpush2.bf16.msra.mxu0 0
    %2582 = vmatprep.mubr.bf16.mxu0 0
    %2583 = vmatmul.mubr.bf16.gmra.mxu0 %v533
    %v2584 = vpop.f32.mrf.mxu0
    %v2585 = vadd.f32 %v2472, %v2584
    %v2586 = vpop.f32.mrf.mxu0
    %v2587 = vadd.f32 %v2474, %v2586
    %v2588 = vpop.f32.mrf.mxu0
    %v2589 = vadd.f32 %v2476, %v2588
    %v2590 = vpop.f32.mrf.mxu0
    %v2591 = vadd.f32 %v2478, %v2590
    %2592 = vmatprep.mubr.bf16.mxu0 0
    %2593 = vmatmul.mubr.bf16.gmra.mxu0 %v540
    %v2594 = vpop.f32.mrf.mxu0
    %v2595 = vadd.f32 %v2482, %v2594
    %v2596 = vpop.f32.mrf.mxu0
    %v2597 = vadd.f32 %v2484, %v2596
    %v2598 = vpop.f32.mrf.mxu0
    %v2599 = vadd.f32 %v2486, %v2598
    %v2600 = vpop.f32.mrf.mxu0
    %v2601 = vadd.f32 %v2488, %v2600
    %2602 = vmatprep.mubr.bf16.mxu0 0
    %2603 = vmatmul.mubr.bf16.gmra.mxu0 %v547
    %v2604 = vpop.f32.mrf.mxu0
    %v2605 = vadd.f32 %v2492, %v2604
    %v2606 = vpop.f32.mrf.mxu0
    %v2607 = vadd.f32 %v2494, %v2606
    %v2608 = vpop.f32.mrf.mxu0
    %v2609 = vadd.f32 %v2496, %v2608
    %v2610 = vpop.f32.mrf.mxu0
    %v2611 = vadd.f32 %v2498, %v2610
    %2612 = vmatprep.mubr.bf16.mxu0 0
    %2613 = vmatmul.mubr.bf16.gmra.mxu0 %v554
    %v2614 = vpop.f32.mrf.mxu0
    %v2615 = vadd.f32 %v2502, %v2614
    %v2616 = vpop.f32.mrf.mxu0
    %v2617 = vadd.f32 %v2504, %v2616
    %v2618 = vpop.f32.mrf.mxu0
    %v2619 = vadd.f32 %v2506, %v2618
    %v2620 = vpop.f32.mrf.mxu0
    %v2621 = vadd.f32 %v2508, %v2620
    %2622 = vmatprep.mubr.bf16.mxu0 0
    %2623 = vmatmul.mubr.bf16.gmra.mxu0 %v561
    %v2624 = vpop.f32.mrf.mxu0
    %v2625 = vadd.f32 %v2512, %v2624
    %v2626 = vpop.f32.mrf.mxu0
    %v2627 = vadd.f32 %v2514, %v2626
    %v2628 = vpop.f32.mrf.mxu0
    %v2629 = vadd.f32 %v2516, %v2628
    %v2630 = vpop.f32.mrf.mxu0
    %v2631 = vadd.f32 %v2518, %v2630
    %2632 = vmatprep.mubr.bf16.mxu0 0
    %2633 = vmatmul.mubr.bf16.gmra.mxu0 %v568
    %v2634 = vpop.f32.mrf.mxu0
    %v2635 = vadd.f32 %v2522, %v2634
    %v2636 = vpop.f32.mrf.mxu0
    %v2637 = vadd.f32 %v2524, %v2636
    %v2638 = vpop.f32.mrf.mxu0
    %v2639 = vadd.f32 %v2526, %v2638
    %v2640 = vpop.f32.mrf.mxu0
    %v2641 = vadd.f32 %v2528, %v2640
    %2642 = vmatprep.mubr.bf16.mxu0 0
    %2643 = vmatmul.mubr.bf16.gmra.mxu0 %v575
    %v2644 = vpop.f32.mrf.mxu0
    %v2645 = vadd.f32 %v2532, %v2644
    %v2646 = vpop.f32.mrf.mxu0
    %v2647 = vadd.f32 %v2534, %v2646
    %v2648 = vpop.f32.mrf.mxu0
    %v2649 = vadd.f32 %v2536, %v2648
    %v2650 = vpop.f32.mrf.mxu0
    %v2651 = vadd.f32 %v2538, %v2650
    %2652 = vmatprep.mubr.bf16.mxu0 0
    %2653 = vmatmul.mubr.bf16.gmra.mxu0 %v582
    %v2654 = vpop.f32.mrf.mxu0
    %v2655 = vadd.f32 %v2542, %v2654
    %v2656 = vpop.f32.mrf.mxu0
    %v2657 = vadd.f32 %v2544, %v2656
    %v2658 = vpop.f32.mrf.mxu0
    %v2659 = vadd.f32 %v2546, %v2658
    %v2660 = vpop.f32.mrf.mxu0
    %v2661 = vadd.f32 %v2548, %v2660
    %2662 = vdwg.mxu0
    %v2663 = vmax.f32 %v2133, 0.0
    %v2664 = vmax.f32 %v2135, 0.0
    %v2665 = vmax.f32 %v2585, 0.0
    %v2666 = vmax.f32 %v2587, 0.0
    %v2667 = vmax.f32 %v2137, 0.0
    %v2668 = vmax.f32 %v2139, 0.0
    %v2669 = vmax.f32 %v2589, 0.0
    %v2670 = vmax.f32 %v2591, 0.0
    %v2671 = vmax.f32 %v2143, 0.0
    %v2672 = vmax.f32 %v2145, 0.0
    %v2673 = vmax.f32 %v2595, 0.0
    %v2674 = vmax.f32 %v2597, 0.0
    %v2675 = vmax.f32 %v2147, 0.0
    %v2676 = vmax.f32 %v2149, 0.0
    %v2677 = vmax.f32 %v2599, 0.0
    %v2678 = vmax.f32 %v2601, 0.0
    %v2679 = vmax.f32 %v2153, 0.0
    %v2680 = vmax.f32 %v2155, 0.0
    %v2681 = vmax.f32 %v2605, 0.0
    %v2682 = vmax.f32 %v2607, 0.0
    %v2683 = vmax.f32 %v2157, 0.0
    %v2684 = vmax.f32 %v2159, 0.0
    %v2685 = vmax.f32 %v2609, 0.0
    %v2686 = vmax.f32 %v2611, 0.0
    %v2687 = vmax.f32 %v2163, 0.0
    %v2688 = vmax.f32 %v2165, 0.0
    %v2689 = vmax.f32 %v2615, 0.0
    %v2690 = vmax.f32 %v2617, 0.0
    %v2691 = vmax.f32 %v2167, 0.0
    %v2692 = vmax.f32 %v2169, 0.0
    %v2693 = vmax.f32 %v2619, 0.0
    %v2694 = vmax.f32 %v2621, 0.0
    %v2695 = vmax.f32 %v2173, 0.0
    %v2696 = vmax.f32 %v2175, 0.0
    %v2697 = vmax.f32 %v2625, 0.0
    %v2698 = vmax.f32 %v2627, 0.0
    %v2699 = vmax.f32 %v2177, 0.0
    %v2700 = vmax.f32 %v2179, 0.0
    %v2701 = vmax.f32 %v2629, 0.0
    %v2702 = vmax.f32 %v2631, 0.0
    %v2703 = vmax.f32 %v2183, 0.0
    %v2704 = vmax.f32 %v2185, 0.0
    %v2705 = vmax.f32 %v2635, 0.0
    %v2706 = vmax.f32 %v2637, 0.0
    %v2707 = vmax.f32 %v2187, 0.0
    %v2708 = vmax.f32 %v2189, 0.0
    %v2709 = vmax.f32 %v2639, 0.0
    %v2710 = vmax.f32 %v2641, 0.0
    %v2711 = vmax.f32 %v2193, 0.0
    %v2712 = vmax.f32 %v2195, 0.0
    %v2713 = vmax.f32 %v2645, 0.0
    %v2714 = vmax.f32 %v2647, 0.0
    %v2715 = vmax.f32 %v2197, 0.0
    %v2716 = vmax.f32 %v2199, 0.0
    %v2717 = vmax.f32 %v2649, 0.0
    %v2718 = vmax.f32 %v2651, 0.0
    %v2719 = vmax.f32 %v2203, 0.0
    %v2720 = vmax.f32 %v2205, 0.0
    %v2721 = vmax.f32 %v2655, 0.0
    %v2722 = vmax.f32 %v2657, 0.0
    %v2723 = vmax.f32 %v2207, 0.0
    %v2724 = vmax.f32 %v2209, 0.0
    %v2725 = vmax.f32 %v2659, 0.0
    %v2726 = vmax.f32 %v2661, 0.0
    %v2727 = vpack.c.bf16 %v2667, %v2663
    %v2728 = vpack.c.bf16 %v2668, %v2664
    %v2729 = vpack.c.bf16 %v2669, %v2665
    %v2730 = vpack.c.bf16 %v2670, %v2666
    %v2731 = vpack.c.bf16 %v2675, %v2671
    %v2732 = vpack.c.bf16 %v2676, %v2672
    %v2733 = vpack.c.bf16 %v2677, %v2673
    %v2734 = vpack.c.bf16 %v2678, %v2674
    %v2735 = vpack.c.bf16 %v2683, %v2679
    %v2736 = vpack.c.bf16 %v2684, %v2680
    %v2737 = vpack.c.bf16 %v2685, %v2681
    %v2738 = vpack.c.bf16 %v2686, %v2682
    %v2739 = vpack.c.bf16 %v2691, %v2687
    %v2740 = vpack.c.bf16 %v2692, %v2688
    %v2741 = vpack.c.bf16 %v2693, %v2689
    %v2742 = vpack.c.bf16 %v2694, %v2690
    %v2743 = vpack.c.bf16 %v2699, %v2695
    %v2744 = vpack.c.bf16 %v2700, %v2696
    %v2745 = vpack.c.bf16 %v2701, %v2697
    %v2746 = vpack.c.bf16 %v2702, %v2698
    %v2747 = vpack.c.bf16 %v2707, %v2703
    %v2748 = vpack.c.bf16 %v2708, %v2704
    %v2749 = vpack.c.bf16 %v2709, %v2705
    %v2750 = vpack.c.bf16 %v2710, %v2706
    %v2751 = vpack.c.bf16 %v2715, %v2711
    %v2752 = vpack.c.bf16 %v2716, %v2712
    %v2753 = vpack.c.bf16 %v2717, %v2713
    %v2754 = vpack.c.bf16 %v2718, %v2714
    %v2755 = vpack.c.bf16 %v2723, %v2719
    %v2756 = vpack.c.bf16 %v2724, %v2720
    %v2757 = vpack.c.bf16 %v2725, %v2721
    %v2758 = vpack.c.bf16 %v2726, %v2722
    %v2759 = vld [vmem:[%s3] sm:$0xff]
    %v2760 = vld [vmem:[%s3 + $0x8] sm:$0xff]
    %v2761 = vld [vmem:[%s3 + $0x10] sm:$0xff]
    %v2762 = vld [vmem:[%s3 + $0x18] sm:$0xff]
    %v2763 = vld [vmem:[%s3 + $0x20] sm:$0xff]
    %v2764 = vld [vmem:[%s3 + $0x28] sm:$0xff]
    %v2765 = vld [vmem:[%s3 + $0x30] sm:$0xff]
    %v2766 = vld [vmem:[%s3 + $0x38] sm:$0xff]
    %v2767 = vld [vmem:[%s3 + $0x40] sm:$0xff]
    %v2768 = vld [vmem:[%s3 + $0x48] sm:$0xff]
    %v2769 = vld [vmem:[%s3 + $0x50] sm:$0xff]
    %v2770 = vld [vmem:[%s3 + $0x58] sm:$0xff]
    %v2771 = vld [vmem:[%s3 + $0x60] sm:$0xff]
    %v2772 = vld [vmem:[%s3 + $0x68] sm:$0xff]
    %v2773 = vld [vmem:[%s3 + $0x70] sm:$0xff]
    %v2774 = vld [vmem:[%s3 + $0x78] sm:$0xff]
    %v2775 = vld [vmem:[%s3 + $0x80] sm:$0xff]
    %v2776 = vld [vmem:[%s3 + $0x88] sm:$0xff]
    %v2777 = vld [vmem:[%s3 + $0x90] sm:$0xff]
    %v2778 = vld [vmem:[%s3 + $0x98] sm:$0xff]
    %v2779 = vld [vmem:[%s3 + $0xa0] sm:$0xff]
    %v2780 = vld [vmem:[%s3 + $0xa8] sm:$0xff]
    %v2781 = vld [vmem:[%s3 + $0xb0] sm:$0xff]
    %v2782 = vld [vmem:[%s3 + $0xb8] sm:$0xff]
    %v2783 = vld [vmem:[%s3 + $0xc0] sm:$0xff]
    %v2784 = vld [vmem:[%s3 + $0xc8] sm:$0xff]
    %v2785 = vld [vmem:[%s3 + $0xd0] sm:$0xff]
    %v2786 = vld [vmem:[%s3 + $0xd8] sm:$0xff]
    %v2787 = vld [vmem:[%s3 + $0xe0] sm:$0xff]
    %v2788 = vld [vmem:[%s3 + $0xe8] sm:$0xff]
    %v2789 = vld [vmem:[%s3 + $0xf0] sm:$0xff]
    %v2790 = vld [vmem:[%s3 + $0xf8] sm:$0xff]
    %v2791 = vld [vmem:[%s3 + $0x100] sm:$0xff]
    %v2792 = vld [vmem:[%s3 + $0x108] sm:$0xff]
    %v2793 = vld [vmem:[%s3 + $0x110] sm:$0xff]
    %v2794 = vld [vmem:[%s3 + $0x118] sm:$0xff]
    %v2795 = vld [vmem:[%s3 + $0x120] sm:$0xff]
    %v2796 = vld [vmem:[%s3 + $0x128] sm:$0xff]
    %v2797 = vld [vmem:[%s3 + $0x130] sm:$0xff]
    %v2798 = vld [vmem:[%s3 + $0x138] sm:$0xff]
    %v2799 = vld [vmem:[%s3 + $0x140] sm:$0xff]
    %v2800 = vld [vmem:[%s3 + $0x148] sm:$0xff]
    %v2801 = vld [vmem:[%s3 + $0x150] sm:$0xff]
    %v2802 = vld [vmem:[%s3 + $0x158] sm:$0xff]
    %v2803 = vld [vmem:[%s3 + $0x160] sm:$0xff]
    %v2804 = vld [vmem:[%s3 + $0x168] sm:$0xff]
    %v2805 = vld [vmem:[%s3 + $0x170] sm:$0xff]
    %v2806 = vld [vmem:[%s3 + $0x178] sm:$0xff]
    %v2807 = vld [vmem:[%s3 + $0x180] sm:$0xff]
    %v2808 = vld [vmem:[%s3 + $0x188] sm:$0xff]
    %v2809 = vld [vmem:[%s3 + $0x190] sm:$0xff]
    %v2810 = vld [vmem:[%s3 + $0x198] sm:$0xff]
    %v2811 = vld [vmem:[%s3 + $0x1a0] sm:$0xff]
    %v2812 = vld [vmem:[%s3 + $0x1a8] sm:$0xff]
    %v2813 = vld [vmem:[%s3 + $0x1b0] sm:$0xff]
    %v2814 = vld [vmem:[%s3 + $0x1b8] sm:$0xff]
    %v2815 = vld [vmem:[%s3 + $0x1c0] sm:$0xff]
    %v2816 = vld [vmem:[%s3 + $0x1c8] sm:$0xff]
    %v2817 = vld [vmem:[%s3 + $0x1d0] sm:$0xff]
    %v2818 = vld [vmem:[%s3 + $0x1d8] sm:$0xff]
    %v2819 = vld [vmem:[%s3 + $0x1e0] sm:$0xff]
    %v2820 = vld [vmem:[%s3 + $0x1e8] sm:$0xff]
    %v2821 = vld [vmem:[%s3 + $0x1f0] sm:$0xff]
    %v2822 = vld [vmem:[%s3 + $0x1f8] sm:$0xff]
    %v2823 = vld [vmem:[%s4] sm:$0x3]
    %v2825 = vlaneseq
    %v2826 = vshrl.u32 %v2825, 7
    %v2827 = vsub.s32 0, %v2826
    %v2828 = vrot.slane %v2823, %v2827
    %v2829 = vlaneseq
    %v2830 = vshrl.u32 %v2829, 7
    %v2831 = vsub.s32 1, %v2830
    %v2832 = vrot.slane %v2823, %v2831
    %v2899 = vunpack.c.l.b16 %v2759
    %v2900 = vunpack.c.h.b16 %v2759
    %v2901 = vunpack.c.l.b16 %v2760
    %v2902 = vunpack.c.h.b16 %v2760
    %v2903 = vunpack.c.l.b16 %v2761
    %v2904 = vunpack.c.h.b16 %v2761
    %v2905 = vunpack.c.l.b16 %v2762
    %v2906 = vunpack.c.h.b16 %v2762
    %v2907 = vunpack.c.l.b16 %v2763
    %v2908 = vunpack.c.h.b16 %v2763
    %v2909 = vunpack.c.l.b16 %v2764
    %v2910 = vunpack.c.h.b16 %v2764
    %v2911 = vunpack.c.l.b16 %v2765
    %v2912 = vunpack.c.h.b16 %v2765
    %v2913 = vunpack.c.l.b16 %v2766
    %v2914 = vunpack.c.h.b16 %v2766
    %v2915 = vunpack.c.l.b16 %v2767
    %v2916 = vunpack.c.h.b16 %v2767
    %v2917 = vunpack.c.l.b16 %v2768
    %v2918 = vunpack.c.h.b16 %v2768
    %v2919 = vunpack.c.l.b16 %v2769
    %v2920 = vunpack.c.h.b16 %v2769
    %v2921 = vunpack.c.l.b16 %v2770
    %v2922 = vunpack.c.h.b16 %v2770
    %v2923 = vunpack.c.l.b16 %v2771
    %v2924 = vunpack.c.h.b16 %v2771
    %v2925 = vunpack.c.l.b16 %v2772
    %v2926 = vunpack.c.h.b16 %v2772
    %v2927 = vunpack.c.l.b16 %v2773
    %v2928 = vunpack.c.h.b16 %v2773
    %v2929 = vunpack.c.l.b16 %v2774
    %v2930 = vunpack.c.h.b16 %v2774
    %v2931 = vunpack.c.l.b16 %v2775
    %v2932 = vunpack.c.h.b16 %v2775
    %v2933 = vunpack.c.l.b16 %v2776
    %v2934 = vunpack.c.h.b16 %v2776
    %v2935 = vunpack.c.l.b16 %v2777
    %v2936 = vunpack.c.h.b16 %v2777
    %v2937 = vunpack.c.l.b16 %v2778
    %v2938 = vunpack.c.h.b16 %v2778
    %v2939 = vunpack.c.l.b16 %v2779
    %v2940 = vunpack.c.h.b16 %v2779
    %v2941 = vunpack.c.l.b16 %v2780
    %v2942 = vunpack.c.h.b16 %v2780
    %v2943 = vunpack.c.l.b16 %v2781
    %v2944 = vunpack.c.h.b16 %v2781
    %v2945 = vunpack.c.l.b16 %v2782
    %v2946 = vunpack.c.h.b16 %v2782
    %v2947 = vunpack.c.l.b16 %v2783
    %v2948 = vunpack.c.h.b16 %v2783
    %v2949 = vunpack.c.l.b16 %v2784
    %v2950 = vunpack.c.h.b16 %v2784
    %v2951 = vunpack.c.l.b16 %v2785
    %v2952 = vunpack.c.h.b16 %v2785
    %v2953 = vunpack.c.l.b16 %v2786
    %v2954 = vunpack.c.h.b16 %v2786
    %v2955 = vunpack.c.l.b16 %v2787
    %v2956 = vunpack.c.h.b16 %v2787
    %v2957 = vunpack.c.l.b16 %v2788
    %v2958 = vunpack.c.h.b16 %v2788
    %v2959 = vunpack.c.l.b16 %v2789
    %v2960 = vunpack.c.h.b16 %v2789
    %v2961 = vunpack.c.l.b16 %v2790
    %v2962 = vunpack.c.h.b16 %v2790
    %v2963 = vunpack.c.l.b16 %v2791
    %v2964 = vunpack.c.h.b16 %v2791
    %v2965 = vunpack.c.l.b16 %v2792
    %v2966 = vunpack.c.h.b16 %v2792
    %v2967 = vunpack.c.l.b16 %v2793
    %v2968 = vunpack.c.h.b16 %v2793
    %v2969 = vunpack.c.l.b16 %v2794
    %v2970 = vunpack.c.h.b16 %v2794
    %v2971 = vunpack.c.l.b16 %v2795
    %v2972 = vunpack.c.h.b16 %v2795
    %v2973 = vunpack.c.l.b16 %v2796
    %v2974 = vunpack.c.h.b16 %v2796
    %v2975 = vunpack.c.l.b16 %v2797
    %v2976 = vunpack.c.h.b16 %v2797
    %v2977 = vunpack.c.l.b16 %v2798
    %v2978 = vunpack.c.h.b16 %v2798
    %v2979 = vunpack.c.l.b16 %v2799
    %v2980 = vunpack.c.h.b16 %v2799
    %v2981 = vunpack.c.l.b16 %v2800
    %v2982 = vunpack.c.h.b16 %v2800
    %v2983 = vunpack.c.l.b16 %v2801
    %v2984 = vunpack.c.h.b16 %v2801
    %v2985 = vunpack.c.l.b16 %v2802
    %v2986 = vunpack.c.h.b16 %v2802
    %v2987 = vunpack.c.l.b16 %v2803
    %v2988 = vunpack.c.h.b16 %v2803
    %v2989 = vunpack.c.l.b16 %v2804
    %v2990 = vunpack.c.h.b16 %v2804
    %v2991 = vunpack.c.l.b16 %v2805
    %v2992 = vunpack.c.h.b16 %v2805
    %v2993 = vunpack.c.l.b16 %v2806
    %v2994 = vunpack.c.h.b16 %v2806
    %v2995 = vunpack.c.l.b16 %v2807
    %v2996 = vunpack.c.h.b16 %v2807
    %v2997 = vunpack.c.l.b16 %v2808
    %v2998 = vunpack.c.h.b16 %v2808
    %v2999 = vunpack.c.l.b16 %v2809
    %v3000 = vunpack.c.h.b16 %v2809
    %v3001 = vunpack.c.l.b16 %v2810
    %v3002 = vunpack.c.h.b16 %v2810
    %v3003 = vunpack.c.l.b16 %v2811
    %v3004 = vunpack.c.h.b16 %v2811
    %v3005 = vunpack.c.l.b16 %v2812
    %v3006 = vunpack.c.h.b16 %v2812
    %v3007 = vunpack.c.l.b16 %v2813
    %v3008 = vunpack.c.h.b16 %v2813
    %v3009 = vunpack.c.l.b16 %v2814
    %v3010 = vunpack.c.h.b16 %v2814
    %v3011 = vunpack.c.l.b16 %v2815
    %v3012 = vunpack.c.h.b16 %v2815
    %v3013 = vunpack.c.l.b16 %v2816
    %v3014 = vunpack.c.h.b16 %v2816
    %v3015 = vunpack.c.l.b16 %v2817
    %v3016 = vunpack.c.h.b16 %v2817
    %v3017 = vunpack.c.l.b16 %v2818
    %v3018 = vunpack.c.h.b16 %v2818
    %v3019 = vunpack.c.l.b16 %v2819
    %v3020 = vunpack.c.h.b16 %v2819
    %v3021 = vunpack.c.l.b16 %v2820
    %v3022 = vunpack.c.h.b16 %v2820
    %v3023 = vunpack.c.l.b16 %v2821
    %v3024 = vunpack.c.h.b16 %v2821
    %v3025 = vunpack.c.l.b16 %v2822
    %v3026 = vunpack.c.h.b16 %v2822
    %v3027 = vpack.c.b16 %v2901, %v2899
    %v3028 = vpack.c.b16 %v2902, %v2900
    %v3029 = vpack.c.b16 %v2905, %v2903
    %v3030 = vpack.c.b16 %v2906, %v2904
    %v3031 = vpack.c.b16 %v2909, %v2907
    %v3032 = vpack.c.b16 %v2910, %v2908
    %v3033 = vpack.c.b16 %v2913, %v2911
    %v3034 = vpack.c.b16 %v2914, %v2912
    %v3035 = vpack.c.b16 %v2917, %v2915
    %v3036 = vpack.c.b16 %v2918, %v2916
    %v3037 = vpack.c.b16 %v2921, %v2919
    %v3038 = vpack.c.b16 %v2922, %v2920
    %v3039 = vpack.c.b16 %v2925, %v2923
    %v3040 = vpack.c.b16 %v2926, %v2924
    %v3041 = vpack.c.b16 %v2929, %v2927
    %v3042 = vpack.c.b16 %v2930, %v2928
    %v3043 = vpack.c.b16 %v2933, %v2931
    %v3044 = vpack.c.b16 %v2934, %v2932
    %v3045 = vpack.c.b16 %v2937, %v2935
    %v3046 = vpack.c.b16 %v2938, %v2936
    %v3047 = vpack.c.b16 %v2941, %v2939
    %v3048 = vpack.c.b16 %v2942, %v2940
    %v3049 = vpack.c.b16 %v2945, %v2943
    %v3050 = vpack.c.b16 %v2946, %v2944
    %v3051 = vpack.c.b16 %v2949, %v2947
    %v3052 = vpack.c.b16 %v2950, %v2948
    %v3053 = vpack.c.b16 %v2953, %v2951
    %v3054 = vpack.c.b16 %v2954, %v2952
    %v3055 = vpack.c.b16 %v2957, %v2955
    %v3056 = vpack.c.b16 %v2958, %v2956
    %v3057 = vpack.c.b16 %v2961, %v2959
    %v3058 = vpack.c.b16 %v2962, %v2960
    %v3059 = vpack.c.b16 %v2965, %v2963
    %v3060 = vpack.c.b16 %v2966, %v2964
    %v3061 = vpack.c.b16 %v2969, %v2967
    %v3062 = vpack.c.b16 %v2970, %v2968
    %v3063 = vpack.c.b16 %v2973, %v2971
    %v3064 = vpack.c.b16 %v2974, %v2972
    %v3065 = vpack.c.b16 %v2977, %v2975
    %v3066 = vpack.c.b16 %v2978, %v2976
    %v3067 = vpack.c.b16 %v2981, %v2979
    %v3068 = vpack.c.b16 %v2982, %v2980
    %v3069 = vpack.c.b16 %v2985, %v2983
    %v3070 = vpack.c.b16 %v2986, %v2984
    %v3071 = vpack.c.b16 %v2989, %v2987
    %v3072 = vpack.c.b16 %v2990, %v2988
    %v3073 = vpack.c.b16 %v2993, %v2991
    %v3074 = vpack.c.b16 %v2994, %v2992
    %v3075 = vpack.c.b16 %v2997, %v2995
    %v3076 = vpack.c.b16 %v2998, %v2996
    %v3077 = vpack.c.b16 %v3001, %v2999
    %v3078 = vpack.c.b16 %v3002, %v3000
    %v3079 = vpack.c.b16 %v3005, %v3003
    %v3080 = vpack.c.b16 %v3006, %v3004
    %v3081 = vpack.c.b16 %v3009, %v3007
    %v3082 = vpack.c.b16 %v3010, %v3008
    %v3083 = vpack.c.b16 %v3013, %v3011
    %v3084 = vpack.c.b16 %v3014, %v3012
    %v3085 = vpack.c.b16 %v3017, %v3015
    %v3086 = vpack.c.b16 %v3018, %v3016
    %v3087 = vpack.c.b16 %v3021, %v3019
    %v3088 = vpack.c.b16 %v3022, %v3020
    %v3089 = vpack.c.b16 %v3025, %v3023
    %v3090 = vpack.c.b16 %v3026, %v3024
    %3155 = vmatprep.subr.bf16.mxu0 %v3042
    %3156 = vmatpush1.bf16.msra.mxu0 %v3041
    %3157 = vmatprep.subr.bf16.mxu0 %v3040
    %3158 = vmatpush1.bf16.msra.mxu0 %v3039
    %3159 = vmatprep.subr.bf16.mxu0 %v3038
    %3160 = vmatpush1.bf16.msra.mxu0 %v3037
    %3161 = vmatprep.subr.bf16.mxu0 %v3036
    %3162 = vmatpush1.bf16.msra.mxu0 %v3035
    %3163 = vmatprep.subr.bf16.mxu0 %v3034
    %3164 = vmatpush1.bf16.msra.mxu0 %v3033
    %3165 = vmatprep.subr.bf16.mxu0 %v3032
    %3166 = vmatpush1.bf16.msra.mxu0 %v3031
    %3167 = vmatprep.subr.bf16.mxu0 %v3030
    %3168 = vmatpush1.bf16.msra.mxu0 %v3029
    %3169 = vmatprep.subr.bf16.mxu0 %v3028
    %3170 = vmatpush1.bf16.msra.mxu0 %v3027
    %3171 = vmatprep.subr.bf16.mxu0 %v3058
    %3172 = vmatpush2.bf16.msra.mxu0 %v3057
    %3173 = vmatprep.subr.bf16.mxu0 %v3056
    %3174 = vmatpush2.bf16.msra.mxu0 %v3055
    %3175 = vmatprep.subr.bf16.mxu0 %v3054
    %3176 = vmatpush2.bf16.msra.mxu0 %v3053
    %3177 = vmatprep.subr.bf16.mxu0 %v3052
    %3178 = vmatpush2.bf16.msra.mxu0 %v3051
    %3179 = vmatprep.subr.bf16.mxu0 %v3050
    %3180 = vmatpush2.bf16.msra.mxu0 %v3049
    %3181 = vmatprep.subr.bf16.mxu0 %v3048
    %3182 = vmatpush2.bf16.msra.mxu0 %v3047
    %3183 = vmatprep.subr.bf16.mxu0 %v3046
    %3184 = vmatpush2.bf16.msra.mxu0 %v3045
    %3185 = vmatprep.subr.bf16.mxu0 %v3044
    %3186 = vmatpush2.bf16.msra.mxu0 %v3043
    %3187 = vmatprep.mubr.bf16.mxu0 %v2728
    %3188 = vmatmul.mubr.bf16.gmra.mxu0 %v2727
    %v3189 = vpop.f32.mrf.mxu0
    %v3190 = vadd.f32 %v2828, %v3189
    %v3191 = vpop.f32.mrf.mxu0
    %v3192 = vadd.f32 %v2832, %v3191
    %v3193 = vpop.f32.mrf.mxu0
    %v3194 = vadd.f32 %v2828, %v3193
    %v3195 = vpop.f32.mrf.mxu0
    %v3196 = vadd.f32 %v2832, %v3195
    %3197 = vmatprep.mubr.bf16.mxu0 %v2732
    %3198 = vmatmul.mubr.bf16.gmra.mxu0 %v2731
    %v3199 = vpop.f32.mrf.mxu0
    %v3200 = vadd.f32 %v2828, %v3199
    %v3201 = vpop.f32.mrf.mxu0
    %v3202 = vadd.f32 %v2832, %v3201
    %v3203 = vpop.f32.mrf.mxu0
    %v3204 = vadd.f32 %v2828, %v3203
    %v3205 = vpop.f32.mrf.mxu0
    %v3206 = vadd.f32 %v2832, %v3205
    %3207 = vmatprep.mubr.bf16.mxu0 %v2736
    %3208 = vmatmul.mubr.bf16.gmra.mxu0 %v2735
    %v3209 = vpop.f32.mrf.mxu0
    %v3210 = vadd.f32 %v2828, %v3209
    %v3211 = vpop.f32.mrf.mxu0
    %v3212 = vadd.f32 %v2832, %v3211
    %v3213 = vpop.f32.mrf.mxu0
    %v3214 = vadd.f32 %v2828, %v3213
    %v3215 = vpop.f32.mrf.mxu0
    %v3216 = vadd.f32 %v2832, %v3215
    %3217 = vmatprep.mubr.bf16.mxu0 %v2740
    %3218 = vmatmul.mubr.bf16.gmra.mxu0 %v2739
    %v3219 = vpop.f32.mrf.mxu0
    %v3220 = vadd.f32 %v2828, %v3219
    %v3221 = vpop.f32.mrf.mxu0
    %v3222 = vadd.f32 %v2832, %v3221
    %v3223 = vpop.f32.mrf.mxu0
    %v3224 = vadd.f32 %v2828, %v3223
    %v3225 = vpop.f32.mrf.mxu0
    %v3226 = vadd.f32 %v2832, %v3225
    %3227 = vmatprep.mubr.bf16.mxu0 %v2744
    %3228 = vmatmul.mubr.bf16.gmra.mxu0 %v2743
    %v3229 = vpop.f32.mrf.mxu0
    %v3230 = vadd.f32 %v2828, %v3229
    %v3231 = vpop.f32.mrf.mxu0
    %v3232 = vadd.f32 %v2832, %v3231
    %v3233 = vpop.f32.mrf.mxu0
    %v3234 = vadd.f32 %v2828, %v3233
    %v3235 = vpop.f32.mrf.mxu0
    %v3236 = vadd.f32 %v2832, %v3235
    %3237 = vmatprep.mubr.bf16.mxu0 %v2748
    %3238 = vmatmul.mubr.bf16.gmra.mxu0 %v2747
    %v3239 = vpop.f32.mrf.mxu0
    %v3240 = vadd.f32 %v2828, %v3239
    %v3241 = vpop.f32.mrf.mxu0
    %v3242 = vadd.f32 %v2832, %v3241
    %v3243 = vpop.f32.mrf.mxu0
    %v3244 = vadd.f32 %v2828, %v3243
    %v3245 = vpop.f32.mrf.mxu0
    %v3246 = vadd.f32 %v2832, %v3245
    %3247 = vmatprep.mubr.bf16.mxu0 %v2752
    %3248 = vmatmul.mubr.bf16.gmra.mxu0 %v2751
    %v3249 = vpop.f32.mrf.mxu0
    %v3250 = vadd.f32 %v2828, %v3249
    %v3251 = vpop.f32.mrf.mxu0
    %v3252 = vadd.f32 %v2832, %v3251
    %v3253 = vpop.f32.mrf.mxu0
    %v3254 = vadd.f32 %v2828, %v3253
    %v3255 = vpop.f32.mrf.mxu0
    %v3256 = vadd.f32 %v2832, %v3255
    %3257 = vmatprep.mubr.bf16.mxu0 %v2756
    %3258 = vmatmul.mubr.bf16.gmra.mxu0 %v2755
    %v3259 = vpop.f32.mrf.mxu0
    %v3260 = vadd.f32 %v2828, %v3259
    %v3261 = vpop.f32.mrf.mxu0
    %v3262 = vadd.f32 %v2832, %v3261
    %v3263 = vpop.f32.mrf.mxu0
    %v3264 = vadd.f32 %v2828, %v3263
    %v3265 = vpop.f32.mrf.mxu0
    %v3266 = vadd.f32 %v2832, %v3265
    %3267 = vdwg.mxu0
    %3268 = vmatprep.subr.bf16.mxu0 %v3074
    %3269 = vmatpush1.bf16.msra.mxu0 %v3073
    %3270 = vmatprep.subr.bf16.mxu0 %v3072
    %3271 = vmatpush1.bf16.msra.mxu0 %v3071
    %3272 = vmatprep.subr.bf16.mxu0 %v3070
    %3273 = vmatpush1.bf16.msra.mxu0 %v3069
    %3274 = vmatprep.subr.bf16.mxu0 %v3068
    %3275 = vmatpush1.bf16.msra.mxu0 %v3067
    %3276 = vmatprep.subr.bf16.mxu0 %v3066
    %3277 = vmatpush1.bf16.msra.mxu0 %v3065
    %3278 = vmatprep.subr.bf16.mxu0 %v3064
    %3279 = vmatpush1.bf16.msra.mxu0 %v3063
    %3280 = vmatprep.subr.bf16.mxu0 %v3062
    %3281 = vmatpush1.bf16.msra.mxu0 %v3061
    %3282 = vmatprep.subr.bf16.mxu0 %v3060
    %3283 = vmatpush1.bf16.msra.mxu0 %v3059
    %3284 = vmatprep.subr.bf16.mxu0 %v3090
    %3285 = vmatpush2.bf16.msra.mxu0 %v3089
    %3286 = vmatprep.subr.bf16.mxu0 %v3088
    %3287 = vmatpush2.bf16.msra.mxu0 %v3087
    %3288 = vmatprep.subr.bf16.mxu0 %v3086
    %3289 = vmatpush2.bf16.msra.mxu0 %v3085
    %3290 = vmatprep.subr.bf16.mxu0 %v3084
    %3291 = vmatpush2.bf16.msra.mxu0 %v3083
    %3292 = vmatprep.subr.bf16.mxu0 %v3082
    %3293 = vmatpush2.bf16.msra.mxu0 %v3081
    %3294 = vmatprep.subr.bf16.mxu0 %v3080
    %3295 = vmatpush2.bf16.msra.mxu0 %v3079
    %3296 = vmatprep.subr.bf16.mxu0 %v3078
    %3297 = vmatpush2.bf16.msra.mxu0 %v3077
    %3298 = vmatprep.subr.bf16.mxu0 %v3076
    %3299 = vmatpush2.bf16.msra.mxu0 %v3075
    %3300 = vmatprep.mubr.bf16.mxu0 %v2730
    %3301 = vmatmul.mubr.bf16.gmra.mxu0 %v2729
    %v3302 = vpop.f32.mrf.mxu0
    %v3303 = vadd.f32 %v3190, %v3302
    %v3304 = vpop.f32.mrf.mxu0
    %v3305 = vadd.f32 %v3192, %v3304
    %v3306 = vpop.f32.mrf.mxu0
    %v3307 = vadd.f32 %v3194, %v3306
    %v3308 = vpop.f32.mrf.mxu0
    %v3309 = vadd.f32 %v3196, %v3308
    %3310 = vmatprep.mubr.bf16.mxu0 %v2734
    %3311 = vmatmul.mubr.bf16.gmra.mxu0 %v2733
    %v3312 = vpop.f32.mrf.mxu0
    %v3313 = vadd.f32 %v3200, %v3312
    %v3314 = vpop.f32.mrf.mxu0
    %v3315 = vadd.f32 %v3202, %v3314
    %v3316 = vpop.f32.mrf.mxu0
    %v3317 = vadd.f32 %v3204, %v3316
    %v3318 = vpop.f32.mrf.mxu0
    %v3319 = vadd.f32 %v3206, %v3318
    %3320 = vmatprep.mubr.bf16.mxu0 %v2738
    %3321 = vmatmul.mubr.bf16.gmra.mxu0 %v2737
    %v3322 = vpop.f32.mrf.mxu0
    %v3323 = vadd.f32 %v3210, %v3322
    %v3324 = vpop.f32.mrf.mxu0
    %v3325 = vadd.f32 %v3212, %v3324
    %v3326 = vpop.f32.mrf.mxu0
    %v3327 = vadd.f32 %v3214, %v3326
    %v3328 = vpop.f32.mrf.mxu0
    %v3329 = vadd.f32 %v3216, %v3328
    %3330 = vmatprep.mubr.bf16.mxu0 %v2742
    %3331 = vmatmul.mubr.bf16.gmra.mxu0 %v2741
    %v3332 = vpop.f32.mrf.mxu0
    %v3333 = vadd.f32 %v3220, %v3332
    %v3334 = vpop.f32.mrf.mxu0
    %v3335 = vadd.f32 %v3222, %v3334
    %v3336 = vpop.f32.mrf.mxu0
    %v3337 = vadd.f32 %v3224, %v3336
    %v3338 = vpop.f32.mrf.mxu0
    %v3339 = vadd.f32 %v3226, %v3338
    %3340 = vmatprep.mubr.bf16.mxu0 %v2746
    %3341 = vmatmul.mubr.bf16.gmra.mxu0 %v2745
    %v3342 = vpop.f32.mrf.mxu0
    %v3343 = vadd.f32 %v3230, %v3342
    %v3344 = vpop.f32.mrf.mxu0
    %v3345 = vadd.f32 %v3232, %v3344
    %v3346 = vpop.f32.mrf.mxu0
    %v3347 = vadd.f32 %v3234, %v3346
    %v3348 = vpop.f32.mrf.mxu0
    %v3349 = vadd.f32 %v3236, %v3348
    %3350 = vmatprep.mubr.bf16.mxu0 %v2750
    %3351 = vmatmul.mubr.bf16.gmra.mxu0 %v2749
    %v3352 = vpop.f32.mrf.mxu0
    %v3353 = vadd.f32 %v3240, %v3352
    %v3354 = vpop.f32.mrf.mxu0
    %v3355 = vadd.f32 %v3242, %v3354
    %v3356 = vpop.f32.mrf.mxu0
    %v3357 = vadd.f32 %v3244, %v3356
    %v3358 = vpop.f32.mrf.mxu0
    %v3359 = vadd.f32 %v3246, %v3358
    %3360 = vmatprep.mubr.bf16.mxu0 %v2754
    %3361 = vmatmul.mubr.bf16.gmra.mxu0 %v2753
    %v3362 = vpop.f32.mrf.mxu0
    %v3363 = vadd.f32 %v3250, %v3362
    %v3364 = vpop.f32.mrf.mxu0
    %v3365 = vadd.f32 %v3252, %v3364
    %v3366 = vpop.f32.mrf.mxu0
    %v3367 = vadd.f32 %v3254, %v3366
    %v3368 = vpop.f32.mrf.mxu0
    %v3369 = vadd.f32 %v3256, %v3368
    %3370 = vmatprep.mubr.bf16.mxu0 %v2758
    %3371 = vmatmul.mubr.bf16.gmra.mxu0 %v2757
    %v3372 = vpop.f32.mrf.mxu0
    %v3373 = vadd.f32 %v3260, %v3372
    %v3374 = vpop.f32.mrf.mxu0
    %v3375 = vadd.f32 %v3262, %v3374
    %v3376 = vpop.f32.mrf.mxu0
    %v3377 = vadd.f32 %v3264, %v3376
    %v3378 = vpop.f32.mrf.mxu0
    %v3379 = vadd.f32 %v3266, %v3378
    %3380 = vdwg.mxu0
    %v3381 = vmax.f32 %v3303, 0.0
    %v3382 = vmax.f32 %v3305, 0.0
    %v3383 = vmax.f32 %v3307, 0.0
    %v3384 = vmax.f32 %v3309, 0.0
    %v3385 = vmax.f32 %v3313, 0.0
    %v3386 = vmax.f32 %v3315, 0.0
    %v3387 = vmax.f32 %v3317, 0.0
    %v3388 = vmax.f32 %v3319, 0.0
    %v3389 = vmax.f32 %v3323, 0.0
    %v3390 = vmax.f32 %v3325, 0.0
    %v3391 = vmax.f32 %v3327, 0.0
    %v3392 = vmax.f32 %v3329, 0.0
    %v3393 = vmax.f32 %v3333, 0.0
    %v3394 = vmax.f32 %v3335, 0.0
    %v3395 = vmax.f32 %v3337, 0.0
    %v3396 = vmax.f32 %v3339, 0.0
    %v3397 = vmax.f32 %v3343, 0.0
    %v3398 = vmax.f32 %v3345, 0.0
    %v3399 = vmax.f32 %v3347, 0.0
    %v3400 = vmax.f32 %v3349, 0.0
    %v3401 = vmax.f32 %v3353, 0.0
    %v3402 = vmax.f32 %v3355, 0.0
    %v3403 = vmax.f32 %v3357, 0.0
    %v3404 = vmax.f32 %v3359, 0.0
    %v3405 = vmax.f32 %v3363, 0.0
    %v3406 = vmax.f32 %v3365, 0.0
    %v3407 = vmax.f32 %v3367, 0.0
    %v3408 = vmax.f32 %v3369, 0.0
    %v3409 = vmax.f32 %v3373, 0.0
    %v3410 = vmax.f32 %v3375, 0.0
    %v3411 = vmax.f32 %v3377, 0.0
    %v3412 = vmax.f32 %v3379, 0.0
    %v3413 = vpack.c.bf16 %v3383, %v3381
    %v3414 = vpack.c.bf16 %v3384, %v3382
    %v3415 = vpack.c.bf16 %v3387, %v3385
    %v3416 = vpack.c.bf16 %v3388, %v3386
    %v3417 = vpack.c.bf16 %v3391, %v3389
    %v3418 = vpack.c.bf16 %v3392, %v3390
    %v3419 = vpack.c.bf16 %v3395, %v3393
    %v3420 = vpack.c.bf16 %v3396, %v3394
    %v3421 = vpack.c.bf16 %v3399, %v3397
    %v3422 = vpack.c.bf16 %v3400, %v3398
    %v3423 = vpack.c.bf16 %v3403, %v3401
    %v3424 = vpack.c.bf16 %v3404, %v3402
    %v3425 = vpack.c.bf16 %v3407, %v3405
    %v3426 = vpack.c.bf16 %v3408, %v3406
    %v3427 = vpack.c.bf16 %v3411, %v3409
    %v3428 = vpack.c.bf16 %v3412, %v3410
    %v3429 = vld [vmem:[%s5] sm:$0xf]
    %v3430 = vld [vmem:[%s5 + $0x4] sm:$0xf]
    %v3431 = vld [vmem:[%s5 + $0x8] sm:$0xf]
    %v3432 = vld [vmem:[%s5 + $0xc] sm:$0xf]
    %v3433 = vld [vmem:[%s5 + $0x10] sm:$0xf]
    %v3434 = vld [vmem:[%s5 + $0x14] sm:$0xf]
    %v3435 = vld [vmem:[%s5 + $0x18] sm:$0xf]
    %v3436 = vld [vmem:[%s5 + $0x1c] sm:$0xf]
    %v3437 = vld [vmem:[%s5 + $0x20] sm:$0xf]
    %v3438 = vld [vmem:[%s5 + $0x24] sm:$0xf]
    %v3439 = vld [vmem:[%s5 + $0x28] sm:$0xf]
    %v3440 = vld [vmem:[%s5 + $0x2c] sm:$0xf]
    %v3441 = vld [vmem:[%s5 + $0x30] sm:$0xf]
    %v3442 = vld [vmem:[%s5 + $0x34] sm:$0xf]
    %v3443 = vld [vmem:[%s5 + $0x38] sm:$0xf]
    %v3444 = vld [vmem:[%s5 + $0x3c] sm:$0xf]
    %v3445 = vld [vmem:[%s5 + $0x40] sm:$0xf]
    %v3446 = vld [vmem:[%s5 + $0x44] sm:$0xf]
    %v3447 = vld [vmem:[%s5 + $0x48] sm:$0xf]
    %v3448 = vld [vmem:[%s5 + $0x4c] sm:$0xf]
    %v3449 = vld [vmem:[%s5 + $0x50] sm:$0xf]
    %v3450 = vld [vmem:[%s5 + $0x54] sm:$0xf]
    %v3451 = vld [vmem:[%s5 + $0x58] sm:$0xf]
    %v3452 = vld [vmem:[%s5 + $0x5c] sm:$0xf]
    %v3453 = vld [vmem:[%s5 + $0x60] sm:$0xf]
    %v3454 = vld [vmem:[%s5 + $0x64] sm:$0xf]
    %v3455 = vld [vmem:[%s5 + $0x68] sm:$0xf]
    %v3456 = vld [vmem:[%s5 + $0x6c] sm:$0xf]
    %v3457 = vld [vmem:[%s5 + $0x70] sm:$0xf]
    %v3458 = vld [vmem:[%s5 + $0x74] sm:$0xf]
    %v3459 = vld [vmem:[%s5 + $0x78] sm:$0xf]
    %v3460 = vld [vmem:[%s5 + $0x7c] sm:$0xf]
    %v3461 = vld [vmem:[%s6] sm:$0x1]
    %v3463 = vlaneseq
    %v3464 = vshrl.u32 %v3463, 7
    %v3465 = vsub.s32 0, %v3464
    %v3466 = vrot.slane %v3461, %v3465
    %v3500 = vunpack.c.l.b16 %v3429
    %v3501 = vunpack.c.l.b16 %v3430
    %v3502 = vunpack.c.l.b16 %v3431
    %v3503 = vunpack.c.l.b16 %v3432
    %v3504 = vunpack.c.l.b16 %v3433
    %v3505 = vunpack.c.l.b16 %v3434
    %v3506 = vunpack.c.l.b16 %v3435
    %v3507 = vunpack.c.l.b16 %v3436
    %v3508 = vunpack.c.l.b16 %v3437
    %v3509 = vunpack.c.l.b16 %v3438
    %v3510 = vunpack.c.l.b16 %v3439
    %v3511 = vunpack.c.l.b16 %v3440
    %v3512 = vunpack.c.l.b16 %v3441
    %v3513 = vunpack.c.l.b16 %v3442
    %v3514 = vunpack.c.l.b16 %v3443
    %v3515 = vunpack.c.l.b16 %v3444
    %v3516 = vunpack.c.l.b16 %v3445
    %v3517 = vunpack.c.l.b16 %v3446
    %v3518 = vunpack.c.l.b16 %v3447
    %v3519 = vunpack.c.l.b16 %v3448
    %v3520 = vunpack.c.l.b16 %v3449
    %v3521 = vunpack.c.l.b16 %v3450
    %v3522 = vunpack.c.l.b16 %v3451
    %v3523 = vunpack.c.l.b16 %v3452
    %v3524 = vunpack.c.l.b16 %v3453
    %v3525 = vunpack.c.l.b16 %v3454
    %v3526 = vunpack.c.l.b16 %v3455
    %v3527 = vunpack.c.l.b16 %v3456
    %v3528 = vunpack.c.l.b16 %v3457
    %v3529 = vunpack.c.l.b16 %v3458
    %v3530 = vunpack.c.l.b16 %v3459
    %v3531 = vunpack.c.l.b16 %v3460
    %v3532 = vpack.c.b16 %v3501, %v3500
    %v3533 = vpack.c.b16 %v3503, %v3502
    %v3534 = vpack.c.b16 %v3505, %v3504
    %v3535 = vpack.c.b16 %v3507, %v3506
    %v3536 = vpack.c.b16 %v3509, %v3508
    %v3537 = vpack.c.b16 %v3511, %v3510
    %v3538 = vpack.c.b16 %v3513, %v3512
    %v3539 = vpack.c.b16 %v3515, %v3514
    %v3540 = vpack.c.b16 %v3517, %v3516
    %v3541 = vpack.c.b16 %v3519, %v3518
    %v3542 = vpack.c.b16 %v3521, %v3520
    %v3543 = vpack.c.b16 %v3523, %v3522
    %v3544 = vpack.c.b16 %v3525, %v3524
    %v3545 = vpack.c.b16 %v3527, %v3526
    %v3546 = vpack.c.b16 %v3529, %v3528
    %v3547 = vpack.c.b16 %v3531, %v3530
    %3564 = vmatprep.subr.bf16.mxu0 0
    %3565 = vmatpush1.bf16.msra.mxu0 %v3539
    %3566 = vmatprep.subr.bf16.mxu0 0
    %3567 = vmatpush1.bf16.msra.mxu0 %v3538
    %3568 = vmatprep.subr.bf16.mxu0 0
    %3569 = vmatpush1.bf16.msra.mxu0 %v3537
    %3570 = vmatprep.subr.bf16.mxu0 0
    %3571 = vmatpush1.bf16.msra.mxu0 %v3536
    %3572 = vmatprep.subr.bf16.mxu0 0
    %3573 = vmatpush1.bf16.msra.mxu0 %v3535
    %3574 = vmatprep.subr.bf16.mxu0 0
    %3575 = vmatpush1.bf16.msra.mxu0 %v3534
    %3576 = vmatprep.subr.bf16.mxu0 0
    %3577 = vmatpush1.bf16.msra.mxu0 %v3533
    %3578 = vmatprep.subr.bf16.mxu0 0
    %3579 = vmatpush1.bf16.msra.mxu0 %v3532
    %3580 = vmatprep.subr.bf16.mxu0 0
    %3581 = vmatpush2.bf16.msra.mxu0 %v3547
    %3582 = vmatprep.subr.bf16.mxu0 0
    %3583 = vmatpush2.bf16.msra.mxu0 %v3546
    %3584 = vmatprep.subr.bf16.mxu0 0
    %3585 = vmatpush2.bf16.msra.mxu0 %v3545
    %3586 = vmatprep.subr.bf16.mxu0 0
    %3587 = vmatpush2.bf16.msra.mxu0 %v3544
    %3588 = vmatprep.subr.bf16.mxu0 0
    %3589 = vmatpush2.bf16.msra.mxu0 %v3543
    %3590 = vmatprep.subr.bf16.mxu0 0
    %3591 = vmatpush2.bf16.msra.mxu0 %v3542
    %3592 = vmatprep.subr.bf16.mxu0 0
    %3593 = vmatpush2.bf16.msra.mxu0 %v3541
    %3594 = vmatprep.subr.bf16.mxu0 0
    %3595 = vmatpush2.bf16.msra.mxu0 %v3540
    %3596 = vmatprep.mubr.bf16.mxu0 %v3414
    %3597 = vmatmul.mubr.bf16.gmra.mxu0 %v3413
    %v3598 = vpop.f32.mrf.mxu0
    %v3599 = vadd.f32 %v3466, %v3598
    %v3600 = vpop.f32.mrf.mxu0
    %v3601 = vpop.f32.mrf.mxu0
    %v3602 = vadd.f32 %v3466, %v3601
    %v3603 = vpop.f32.mrf.mxu0
    %3604 = vmatprep.mubr.bf16.mxu0 %v3416
    %3605 = vmatmul.mubr.bf16.gmra.mxu0 %v3415
    %v3606 = vpop.f32.mrf.mxu0
    %v3607 = vadd.f32 %v3466, %v3606
    %v3608 = vpop.f32.mrf.mxu0
    %v3609 = vpop.f32.mrf.mxu0
    %v3610 = vadd.f32 %v3466, %v3609
    %v3611 = vpop.f32.mrf.mxu0
    %3612 = vmatprep.mubr.bf16.mxu0 %v3418
    %3613 = vmatmul.mubr.bf16.gmra.mxu0 %v3417
    %v3614 = vpop.f32.mrf.mxu0
    %v3615 = vadd.f32 %v3466, %v3614
    %v3616 = vpop.f32.mrf.mxu0
    %v3617 = vpop.f32.mrf.mxu0
    %v3618 = vadd.f32 %v3466, %v3617
    %v3619 = vpop.f32.mrf.mxu0
    %3620 = vmatprep.mubr.bf16.mxu0 %v3420
    %3621 = vmatmul.mubr.bf16.gmra.mxu0 %v3419
    %v3622 = vpop.f32.mrf.mxu0
    %v3623 = vadd.f32 %v3466, %v3622
    %v3624 = vpop.f32.mrf.mxu0
    %v3625 = vpop.f32.mrf.mxu0
    %v3626 = vadd.f32 %v3466, %v3625
    %v3627 = vpop.f32.mrf.mxu0
    %3628 = vmatprep.mubr.bf16.mxu0 %v3422
    %3629 = vmatmul.mubr.bf16.gmra.mxu0 %v3421
    %v3630 = vpop.f32.mrf.mxu0
    %v3631 = vadd.f32 %v3466, %v3630
    %v3632 = vpop.f32.mrf.mxu0
    %v3633 = vpop.f32.mrf.mxu0
    %v3634 = vadd.f32 %v3466, %v3633
    %v3635 = vpop.f32.mrf.mxu0
    %3636 = vmatprep.mubr.bf16.mxu0 %v3424
    %3637 = vmatmul.mubr.bf16.gmra.mxu0 %v3423
    %v3638 = vpop.f32.mrf.mxu0
    %v3639 = vadd.f32 %v3466, %v3638
    %v3640 = vpop.f32.mrf.mxu0
    %v3641 = vpop.f32.mrf.mxu0
    %v3642 = vadd.f32 %v3466, %v3641
    %v3643 = vpop.f32.mrf.mxu0
    %3644 = vmatprep.mubr.bf16.mxu0 %v3426
    %3645 = vmatmul.mubr.bf16.gmra.mxu0 %v3425
    %v3646 = vpop.f32.mrf.mxu0
    %v3647 = vadd.f32 %v3466, %v3646
    %v3648 = vpop.f32.mrf.mxu0
    %v3649 = vpop.f32.mrf.mxu0
    %v3650 = vadd.f32 %v3466, %v3649
    %v3651 = vpop.f32.mrf.mxu0
    %3652 = vmatprep.mubr.bf16.mxu0 %v3428
    %3653 = vmatmul.mubr.bf16.gmra.mxu0 %v3427
    %v3654 = vpop.f32.mrf.mxu0
    %v3655 = vadd.f32 %v3466, %v3654
    %v3656 = vpop.f32.mrf.mxu0
    %v3657 = vpop.f32.mrf.mxu0
    %v3658 = vadd.f32 %v3466, %v3657
    %v3659 = vpop.f32.mrf.mxu0
    %3660 = vdwg.mxu0
    %v3661 = vpack.c.bf16 %v3602, %v3599
    %v3662 = vpack.c.bf16 %v3610, %v3607
    %v3663 = vpack.c.bf16 %v3618, %v3615
    %v3664 = vpack.c.bf16 %v3626, %v3623
    %v3665 = vpack.c.bf16 %v3634, %v3631
    %v3666 = vpack.c.bf16 %v3642, %v3639
    %v3667 = vpack.c.bf16 %v3650, %v3647
    %v3668 = vpack.c.bf16 %v3658, %v3655
    %v3677 = vunpack.c.l.b16 %v3661
    %v3678 = vunpack.c.h.b16 %v3661
    %v3679 = vunpack.c.l.b16 %v3662
    %v3680 = vunpack.c.h.b16 %v3662
    %v3681 = vunpack.c.l.b16 %v3663
    %v3682 = vunpack.c.h.b16 %v3663
    %v3683 = vunpack.c.l.b16 %v3664
    %v3684 = vunpack.c.h.b16 %v3664
    %v3685 = vunpack.c.l.b16 %v3665
    %v3686 = vunpack.c.h.b16 %v3665
    %v3687 = vunpack.c.l.b16 %v3666
    %v3688 = vunpack.c.h.b16 %v3666
    %v3689 = vunpack.c.l.b16 %v3667
    %v3690 = vunpack.c.h.b16 %v3667
    %v3691 = vunpack.c.l.b16 %v3668
    %v3692 = vunpack.c.h.b16 %v3668
    %v3693 = vpack.c.b16 %v3677, %v3677
    %v3694 = vpack.c.b16 %v3678, %v3678
    %v3695 = vpack.c.b16 %v3679, %v3679
    %v3696 = vpack.c.b16 %v3680, %v3680
    %v3697 = vpack.c.b16 %v3681, %v3681
    %v3698 = vpack.c.b16 %v3682, %v3682
    %v3699 = vpack.c.b16 %v3683, %v3683
    %v3700 = vpack.c.b16 %v3684, %v3684
    %v3701 = vpack.c.b16 %v3685, %v3685
    %v3702 = vpack.c.b16 %v3686, %v3686
    %v3703 = vpack.c.b16 %v3687, %v3687
    %v3704 = vpack.c.b16 %v3688, %v3688
    %v3705 = vpack.c.b16 %v3689, %v3689
    %v3706 = vpack.c.b16 %v3690, %v3690
    %v3707 = vpack.c.b16 %v3691, %v3691
    %v3708 = vpack.c.b16 %v3692, %v3692
    %3725 = vst [vmem:[%s7] sm:$0xf] %v3693
    %3726 = vst [vmem:[%s7 + $0x4] sm:$0xf] %v3694
    %3727 = vst [vmem:[%s7 + $0x8] sm:$0xf] %v3695
    %3728 = vst [vmem:[%s7 + $0xc] sm:$0xf] %v3696
    %3729 = vst [vmem:[%s7 + $0x10] sm:$0xf] %v3697
    %3730 = vst [vmem:[%s7 + $0x14] sm:$0xf] %v3698
    %3731 = vst [vmem:[%s7 + $0x18] sm:$0xf] %v3699
    %3732 = vst [vmem:[%s7 + $0x1c] sm:$0xf] %v3700
    %3733 = vst [vmem:[%s7 + $0x20] sm:$0xf] %v3701
    %3734 = vst [vmem:[%s7 + $0x24] sm:$0xf] %v3702
    %3735 = vst [vmem:[%s7 + $0x28] sm:$0xf] %v3703
    %3736 = vst [vmem:[%s7 + $0x2c] sm:$0xf] %v3704
    %3737 = vst [vmem:[%s7 + $0x30] sm:$0xf] %v3705
    %3738 = vst [vmem:[%s7 + $0x34] sm:$0xf] %v3706
    %3739 = vst [vmem:[%s7 + $0x38] sm:$0xf] %v3707
    %3740 = vst [vmem:[%s7 + $0x3c] sm:$0xf] %v3708
    // Predicated region
    $region34: #{net_forward.1} parent=1 // pred_check
      _
    $region35: #{net_forward.1} parent=1 // pred_check_branch
      %3742 = sbr.rel (0) target = $region37
    $region36: #{net_forward.1} parent=1 // pred_region
      _
    $region37: #{net_forward.1} parent=1 // pred_fallthru
      _
    // Predicated region
    $region38: #{net_forward.1} parent=1 // pred_check
      _
    $region39: #{net_forward.1} parent=1 // pred_check_branch
      %3744 = sbr.rel (0) target = $region41
    $region40: #{net_forward.1} parent=1 // pred_region
      _
    $region41: #{net_forward.1} parent=1 // pred_fallthru
      _
    %3745 = vsyncpa [#allocation3], 1

</llo_original>
